<compile_context>
chip_gen: v7x
topology: tpu7x:2x2x1
jax: 0.10.0
libtpu: 0.0.40
codegen_flags: <defaults>
</compile_context>

<pallas_src>
import functools

import jax
import jax.numpy as jnp
from jax.experimental import pallas as pl
from jax.experimental.pallas import tpu as pltpu

HIDDEN = 64


def _lstm_cell(gates, c_prev):
    """PyTorch gate order [i, f, g, o] applied to raw pre-activation gates."""
    H = HIDDEN
    sig = jax.nn.sigmoid(gates)              # one full-width (Bp, 4H) EUP pass
    i = sig[:, 0 * H:1 * H]
    f = sig[:, 1 * H:2 * H]
    o = sig[:, 3 * H:4 * H]
    g = jnp.tanh(gates[:, 2 * H:3 * H])
    c = f * c_prev + i * g
    h = o * jnp.tanh(c)
    return h, c


def discriminator_kernel(
    x_ref,                        # (T*Bp, D)   time-major, batch-padded input
    wih1_ref, whh1_ref, b1_ref,   # layer 1: (D, 4H), (H, 4H), (1, 4H)
    w2_ref, b2_ref,               # layer 2 fused [Wih; Whh]: (2H, 4H), (1, 4H)
    w3_ref, b3_ref,               # layer 3 fused [Wih; Whh]: (2H, 4H), (1, 4H)
    wfc_ref, bfc_ref,             # fc: (H, 1), (1, 1)
    out_ref,                      # (Bp, 1)
    proj_ref,                     # scratch (T*Bp, 4H): layer-1 input projection
    *, T, Bp,
):
    H = HIDDEN

    # ---- Layer-1 input projection for ALL timesteps: one large MXU matmul,
    # bias folded in once (never re-added on the serial recurrence path).
    proj_ref[...] = (
        jnp.dot(x_ref[...], wih1_ref[...], preferred_element_type=jnp.float32)
        + b1_ref[...]
    )

    # ---- Hoist loop-invariant weight loads / bias broadcasts.
    whh1 = whh1_ref[...]
    w2 = w2_ref[...]
    w3 = w3_ref[...]
    b2 = jnp.broadcast_to(b2_ref[...], (Bp, 4 * H))
    b3 = jnp.broadcast_to(b3_ref[...], (Bp, 4 * H))

    zeros = jnp.zeros((Bp, H), jnp.float32)
    h1, c1 = zeros, zeros
    h2, c2 = zeros, zeros
    h3, c3 = zeros, zeros

    # ---- Wavefront recurrence over diagonals d = t1; t2 = d-1; t3 = d-2.
    # All three gate matmuls in one diagonal read the *previous* diagonal's
    # h-values, so they are independent and can sit in the MXU pipe together.
    # T is small & static -> fully unrolled, all slice offsets static.
    for d in range(T + 2):
        t1, t2, t3 = d, d - 1, d - 2
        g1 = g2 = g3 = None
        if 0 <= t1 < T:
            row = t1 * Bp
            g1 = proj_ref[row:row + Bp, :] + jnp.dot(
                h1, whh1, preferred_element_type=jnp.float32)
        if 0 <= t2 < T:
            # layer-2 input is layer-1's h at time t2 (== current h1, the
            # value from the previous diagonal), recurrent state is h2.
            g2 = jnp.dot(jnp.concatenate([h1, h2], axis=-1), w2,
                         preferred_element_type=jnp.float32) + b2
        if 0 <= t3 < T:
            g3 = jnp.dot(jnp.concatenate([h2, h3], axis=-1), w3,
                         preferred_element_type=jnp.float32) + b3
        # Elementwise updates only after every gate matmul of this diagonal
        # has been formed from the old h values.
        if g1 is not None:
            h1, c1 = _lstm_cell(g1, c1)
        if g2 is not None:
            h2, c2 = _lstm_cell(g2, c2)
        if g3 is not None:
            h3, c3 = _lstm_cell(g3, c3)

    # fc on the last layer's final hidden state (== hn[-1] in PyTorch).
    out_ref[...] = (
        jnp.dot(h3, wfc_ref[...], preferred_element_type=jnp.float32)
        + bfc_ref[...]
    )


def discriminator_forward(x_btd, params):
    """x_btd: (B, T, D) float32 (PyTorch batch_first). Returns (B, 1)."""
    B, T, D = x_btd.shape
    Bp = ((B + 7) // 8) * 8                  # pad batch to full sublane groups
    if Bp != B:
        x_btd = jnp.pad(x_btd, ((0, Bp - B), (0, 0), (0, 0)))
    # Time-major and flattened so rows [t*Bp, (t+1)*Bp) hold timestep t.
    x_flat = jnp.transpose(x_btd, (1, 0, 2)).reshape(T * Bp, D)

    (wih1, whh1, b1, w2, b2, w3, b3, wfc, bfc) = params

    def full_spec(shape):
        return pl.BlockSpec(shape, lambda i: (0,) * len(shape))

    grid_spec = pltpu.PrefetchScalarGridSpec(
        num_scalar_prefetch=0,
        grid=(1,),                           # single fused invocation
        in_specs=[
            full_spec(x_flat.shape),
            full_spec(wih1.shape), full_spec(whh1.shape), full_spec(b1.shape),
            full_spec(w2.shape), full_spec(b2.shape),
            full_spec(w3.shape), full_spec(b3.shape),
            full_spec(wfc.shape), full_spec(bfc.shape),
        ],
        out_specs=pl.BlockSpec((Bp, 1), lambda i: (0, 0)),
        scratch_shapes=[
            pltpu.VMEM((T * Bp, 4 * HIDDEN), jnp.float32),   # proj_ref
        ],
    )

    kernel = functools.partial(discriminator_kernel, T=T, Bp=Bp)
    out = pl.pallas_call(
        kernel,
        out_shape=jax.ShapeDtypeStruct((Bp, 1), jnp.float32),
        grid_spec=grid_spec,
        compiler_params=pltpu.CompilerParams(
            dimension_semantics=("arbitrary",)),
    )(x_flat, wih1, whh1, b1, w2, b2, w3, b3, wfc, bfc)
    return out[:B]


def init_params(key, input_dim):
    """Deterministic synthetic parameters, laid out for the kernel.

    PyTorch stores W_ih: (4H, in), W_hh: (4H, H), b_ih, b_hh: (4H,) with gate
    order [i, f, g, o]. We pre-transpose to (in, 4H)/(H, 4H), fold the two
    biases into one (1, 4H) row, and for layers 2/3 stack [Wih^T; Whh^T] into
    a single (2H, 4H) matrix for the fused per-step contraction.
    """
    def lstm_layer(k, in_dim):
        k1, k2, k3, k4 = jax.random.split(k, 4)
        s = 1.0 / jnp.sqrt(HIDDEN)
        w_ih = jax.random.uniform(k1, (4 * HIDDEN, in_dim), jnp.float32, -s, s)
        w_hh = jax.random.uniform(k2, (4 * HIDDEN, HIDDEN), jnp.float32, -s, s)
        b_ih = jax.random.uniform(k3, (4 * HIDDEN,), jnp.float32, -s, s)
        b_hh = jax.random.uniform(k4, (4 * HIDDEN,), jnp.float32, -s, s)
        return w_ih.T, w_hh.T, (b_ih + b_hh)[None, :]

    k1, k2, k3, k4 = jax.random.split(key, 4)
    wih1, whh1, b1 = lstm_layer(k1, input_dim)
    wih2, whh2, b2 = lstm_layer(k2, HIDDEN)
    wih3, whh3, b3 = lstm_layer(k3, HIDDEN)

    # Fused weights: concat([x_in, h_prev], -1) @ w == x_in@Wih^T + h_prev@Whh^T
    w2 = jnp.concatenate([wih2, whh2], axis=0)     # (2H, 4H)
    w3 = jnp.concatenate([wih3, whh3], axis=0)     # (2H, 4H)

    kfa, kfb = jax.random.split(k4)
    s = 1.0 / jnp.sqrt(HIDDEN)
    w_fc = jax.random.uniform(kfa, (1, HIDDEN), jnp.float32, -s, s)  # torch layout
    b_fc = jax.random.uniform(kfb, (1,), jnp.float32, -s, s)
    return (wih1, whh1, b1, w2, b2, w3, b3, w_fc.T, b_fc[None, :])


def reference_forward(x_btd, params):
    """Pure-JAX reference matching PyTorch LSTM semantics (for validation)."""
    (wih1, whh1, b1, w2, b2, w3, b3, wfc, bfc) = params
    B = x_btd.shape[0]
    H = HIDDEN

    def run_layer(x_tbd, wih, whh, b):
        def step(carry, x_t):
            h, c = carry
            g = x_t @ wih + h @ whh + b
            i = jax.nn.sigmoid(g[:, 0 * H:1 * H])
            f = jax.nn.sigmoid(g[:, 1 * H:2 * H])
            gg = jnp.tanh(g[:, 2 * H:3 * H])
            o = jax.nn.sigmoid(g[:, 3 * H:4 * H])
            c = f * c + i * gg
            h = o * jnp.tanh(c)
            return (h, c), h
        init = (jnp.zeros((B, H)), jnp.zeros((B, H)))
        (h_last, _), hs = jax.lax.scan(step, init, x_tbd)
        return hs, h_last

    x_tbd = jnp.transpose(x_btd, (1, 0, 2))
    hs1, _ = run_layer(x_tbd, wih1, whh1, b1)
    hs2, _ = run_layer(hs1, w2[:H], w2[H:], b2)
    _, hn3 = run_layer(hs2, w3[:H], w3[H:], b3)
    return hn3 @ wfc + bfc


if __name__ == "__main__":
    key = jax.random.PRNGKey(0)
    k_param, k_x = jax.random.split(key)

    B, T, D = 4, 8, 16  # batch, seq, input_dim
    params = init_params(k_param, D)
    x = jax.random.normal(k_x, (B, T, D), dtype=jnp.float32)

    out = jax.block_until_ready(discriminator_forward(x, params))
    ref = jax.block_until_ready(reference_forward(x, params))

    assert out.shape == (B, 1)
    assert jnp.allclose(out, ref, atol=1e-4, rtol=1e-4), (out, ref)

    print("KERNEL_OK")
</pallas_src>

<mosaic_0001>
module attributes {stable_mosaic.version = 11 : i64} {
  func.func @discriminator_kernel(%arg0: i32, %arg1: memref<64x16xf32, #tpu.memory_space<vmem>>, %arg2: memref<16x256xf32, #tpu.memory_space<vmem>>, %arg3: memref<64x256xf32, #tpu.memory_space<vmem>>, %arg4: memref<1x256xf32, #tpu.memory_space<vmem>>, %arg5: memref<128x256xf32, #tpu.memory_space<vmem>>, %arg6: memref<1x256xf32, #tpu.memory_space<vmem>>, %arg7: memref<128x256xf32, #tpu.memory_space<vmem>>, %arg8: memref<1x256xf32, #tpu.memory_space<vmem>>, %arg9: memref<64x1xf32, #tpu.memory_space<vmem>>, %arg10: memref<1x1xf32, #tpu.memory_space<vmem>>, %arg11: memref<8x1xf32, #tpu.memory_space<vmem>>, %arg12: memref<64x256xf32, #tpu.memory_space<vmem>>) attributes {dimension_semantics = [#tpu.dimension_semantics<arbitrary>], iteration_bounds = array<i64: 1>, scalar_prefetch = 0 : i64, scratch_operands = 1 : i64, tpu.core_type = #tpu.core_type<tc>, window_params = [{pipeline_mode = #tpu.pipeline_mode<synchronous>, transform_indices = @transform_0, window_bounds = array<i64: 64, 16>}, {pipeline_mode = #tpu.pipeline_mode<synchronous>, transform_indices = @transform_1, window_bounds = array<i64: 16, 256>}, {pipeline_mode = #tpu.pipeline_mode<synchronous>, transform_indices = @transform_2, window_bounds = array<i64: 64, 256>}, {pipeline_mode = #tpu.pipeline_mode<synchronous>, transform_indices = @transform_3, window_bounds = array<i64: 1, 256>}, {pipeline_mode = #tpu.pipeline_mode<synchronous>, transform_indices = @transform_4, window_bounds = array<i64: 128, 256>}, {pipeline_mode = #tpu.pipeline_mode<synchronous>, transform_indices = @transform_5, window_bounds = array<i64: 1, 256>}, {pipeline_mode = #tpu.pipeline_mode<synchronous>, transform_indices = @transform_6, window_bounds = array<i64: 128, 256>}, {pipeline_mode = #tpu.pipeline_mode<synchronous>, transform_indices = @transform_7, window_bounds = array<i64: 1, 256>}, {pipeline_mode = #tpu.pipeline_mode<synchronous>, transform_indices = @transform_8, window_bounds = array<i64: 64, 1>}, {pipeline_mode = #tpu.pipeline_mode<synchronous>, transform_indices = @transform_9, window_bounds = array<i64: 1, 1>}, {pipeline_mode = #tpu.pipeline_mode<synchronous>, transform_indices = @transform_10, window_bounds = array<i64: 8, 1>}]} {
    %c0 = arith.constant 0 : index
    %c0_0 = arith.constant 0 : index
    %0 = vector.load %arg1[%c0, %c0_0] : memref<64x16xf32, #tpu.memory_space<vmem>>, vector<64x16xf32>
    %c0_1 = arith.constant 0 : index
    %c0_2 = arith.constant 0 : index
    %1 = vector.load %arg2[%c0_1, %c0_2] : memref<16x256xf32, #tpu.memory_space<vmem>>, vector<16x256xf32>
    %cst = arith.constant dense<0.000000e+00> : vector<64x256xf32>
    %2 = tpu.matmul %0, %1, %cst {dimension_numbers = #tpu.dot_dimension_numbers<[1], [0], [0], [1], [0, 0, 1, 1], [], []>} : vector<64x16xf32>, vector<16x256xf32>, vector<64x256xf32> -> vector<64x256xf32>
    %c0_3 = arith.constant 0 : index
    %c0_4 = arith.constant 0 : index
    %3 = vector.load %arg4[%c0_3, %c0_4] : memref<1x256xf32, #tpu.memory_space<vmem>>, vector<1x256xf32>
    %4 = vector.broadcast %3 : vector<1x256xf32> to vector<64x256xf32>
    %5 = arith.addf %2, %4 : vector<64x256xf32>
    %c0_5 = arith.constant 0 : index
    %c0_6 = arith.constant 0 : index
    %6 = vector.load %arg12[%c0_5, %c0_6] : memref<64x256xf32, #tpu.memory_space<vmem>>, vector<64x256xf32>
    tpu.vector_store %arg12[%c0_5, %c0_6], %5 {strides = array<i32>} : memref<64x256xf32, #tpu.memory_space<vmem>>, vector<64x256xf32>,
    %c0_7 = arith.constant 0 : index
    %c0_8 = arith.constant 0 : index
    %7 = vector.load %arg3[%c0_7, %c0_8] : memref<64x256xf32, #tpu.memory_space<vmem>>, vector<64x256xf32>
    %c0_9 = arith.constant 0 : index
    %c0_10 = arith.constant 0 : index
    %8 = vector.load %arg5[%c0_9, %c0_10] : memref<128x256xf32, #tpu.memory_space<vmem>>, vector<128x256xf32>
    %c0_11 = arith.constant 0 : index
    %c0_12 = arith.constant 0 : index
    %9 = vector.load %arg7[%c0_11, %c0_12] : memref<128x256xf32, #tpu.memory_space<vmem>>, vector<128x256xf32>
    %c0_13 = arith.constant 0 : index
    %c0_14 = arith.constant 0 : index
    %10 = vector.load %arg6[%c0_13, %c0_14] : memref<1x256xf32, #tpu.memory_space<vmem>>, vector<1x256xf32>
    %11 = vector.shape_cast %10 : vector<1x256xf32> to vector<1x256xf32>
    %12 = vector.broadcast %11 : vector<1x256xf32> to vector<8x256xf32>
    %c0_15 = arith.constant 0 : index
    %c0_16 = arith.constant 0 : index
    %13 = vector.load %arg8[%c0_15, %c0_16] : memref<1x256xf32, #tpu.memory_space<vmem>>, vector<1x256xf32>
    %14 = vector.shape_cast %13 : vector<1x256xf32> to vector<1x256xf32>
    %15 = vector.broadcast %14 : vector<1x256xf32> to vector<8x256xf32>
    %cst_17 = arith.constant 0.000000e+00 : f32
    %16 = vector.broadcast %cst_17 : f32 to vector<8x64xf32>
    %c0_18 = arith.constant 0 : index
    %c0_19 = arith.constant 0 : index
    %17 = vector.load %arg12[%c0_18, %c0_19] : memref<64x256xf32, #tpu.memory_space<vmem>>, vector<8x256xf32>
    %cst_20 = arith.constant dense<0.000000e+00> : vector<8x256xf32>
    %18 = tpu.matmul %16, %7, %cst_20 {dimension_numbers = #tpu.dot_dimension_numbers<[1], [0], [0], [1], [0, 0, 1, 1], [], []>} : vector<8x64xf32>, vector<64x256xf32>, vector<8x256xf32> -> vector<8x256xf32>
    %19 = arith.addf %17, %18 : vector<8x256xf32>
    %20 = arith.negf %19 : vector<8x256xf32>
    %21 = math.exp %20 : vector<8x256xf32>
    %cst_21 = arith.constant 1.000000e+00 : f32
    %22 = vector.broadcast %cst_21 : f32 to vector<8x256xf32>
    %23 = arith.addf %22, %21 : vector<8x256xf32>
    %24 = arith.divf %22, %23 : vector<8x256xf32>
    %25 = vector.extract_strided_slice %24 {offsets = [0, 0], sizes = [8, 64], strides = [1, 1]} : vector<8x256xf32> to vector<8x64xf32>
    %26 = vector.extract_strided_slice %24 {offsets = [0, 64], sizes = [8, 64], strides = [1, 1]} : vector<8x256xf32> to vector<8x64xf32>
    %27 = vector.extract_strided_slice %24 {offsets = [0, 192], sizes = [8, 64], strides = [1, 1]} : vector<8x256xf32> to vector<8x64xf32>
    %28 = vector.extract_strided_slice %19 {offsets = [0, 128], sizes = [8, 64], strides = [1, 1]} : vector<8x256xf32> to vector<8x64xf32>
    %29 = math.tanh %28 : vector<8x64xf32>
    %30 = arith.mulf %26, %16 : vector<8x64xf32>
    %31 = arith.mulf %25, %29 : vector<8x64xf32>
    %32 = arith.addf %30, %31 : vector<8x64xf32>
    %33 = math.tanh %32 : vector<8x64xf32>
    %34 = arith.mulf %27, %33 : vector<8x64xf32>
    %c8 = arith.constant 8 : index
    %c0_22 = arith.constant 0 : index
    %35 = vector.load %arg12[%c8, %c0_22] : memref<64x256xf32, #tpu.memory_space<vmem>>, vector<8x256xf32>
    %cst_23 = arith.constant dense<0.000000e+00> : vector<8x256xf32>
    %36 = tpu.matmul %34, %7, %cst_23 {dimension_numbers = #tpu.dot_dimension_numbers<[1], [0], [0], [1], [0, 0, 1, 1], [], []>} : vector<8x64xf32>, vector<64x256xf32>, vector<8x256xf32> -> vector<8x256xf32>
    %37 = arith.addf %35, %36 : vector<8x256xf32>
    %38 = tpu.concatenate %34, %16 in 1 : vector<8x64xf32>, vector<8x64xf32> -> vector<8x128xf32>
    %cst_24 = arith.constant dense<0.000000e+00> : vector<8x256xf32>
    %39 = tpu.matmul %38, %8, %cst_24 {dimension_numbers = #tpu.dot_dimension_numbers<[1], [0], [0], [1], [0, 0, 1, 1], [], []>} : vector<8x128xf32>, vector<128x256xf32>, vector<8x256xf32> -> vector<8x256xf32>
    %40 = arith.addf %39, %12 : vector<8x256xf32>
    %41 = arith.negf %37 : vector<8x256xf32>
    %42 = math.exp %41 : vector<8x256xf32>
    %cst_25 = arith.constant 1.000000e+00 : f32
    %43 = vector.broadcast %cst_25 : f32 to vector<8x256xf32>
    %44 = arith.addf %43, %42 : vector<8x256xf32>
    %45 = arith.divf %43, %44 : vector<8x256xf32>
    %46 = vector.extract_strided_slice %45 {offsets = [0, 0], sizes = [8, 64], strides = [1, 1]} : vector<8x256xf32> to vector<8x64xf32>
    %47 = vector.extract_strided_slice %45 {offsets = [0, 64], sizes = [8, 64], strides = [1, 1]} : vector<8x256xf32> to vector<8x64xf32>
    %48 = vector.extract_strided_slice %45 {offsets = [0, 192], sizes = [8, 64], strides = [1, 1]} : vector<8x256xf32> to vector<8x64xf32>
    %49 = vector.extract_strided_slice %37 {offsets = [0, 128], sizes = [8, 64], strides = [1, 1]} : vector<8x256xf32> to vector<8x64xf32>
    %50 = math.tanh %49 : vector<8x64xf32>
    %51 = arith.mulf %47, %32 : vector<8x64xf32>
    %52 = arith.mulf %46, %50 : vector<8x64xf32>
    %53 = arith.addf %51, %52 : vector<8x64xf32>
    %54 = math.tanh %53 : vector<8x64xf32>
    %55 = arith.mulf %48, %54 : vector<8x64xf32>
    %56 = arith.negf %40 : vector<8x256xf32>
    %57 = math.exp %56 : vector<8x256xf32>
    %cst_26 = arith.constant 1.000000e+00 : f32
    %58 = vector.broadcast %cst_26 : f32 to vector<8x256xf32>
    %59 = arith.addf %58, %57 : vector<8x256xf32>
    %60 = arith.divf %58, %59 : vector<8x256xf32>
    %61 = vector.extract_strided_slice %60 {offsets = [0, 0], sizes = [8, 64], strides = [1, 1]} : vector<8x256xf32> to vector<8x64xf32>
    %62 = vector.extract_strided_slice %60 {offsets = [0, 64], sizes = [8, 64], strides = [1, 1]} : vector<8x256xf32> to vector<8x64xf32>
    %63 = vector.extract_strided_slice %60 {offsets = [0, 192], sizes = [8, 64], strides = [1, 1]} : vector<8x256xf32> to vector<8x64xf32>
    %64 = vector.extract_strided_slice %40 {offsets = [0, 128], sizes = [8, 64], strides = [1, 1]} : vector<8x256xf32> to vector<8x64xf32>
    %65 = math.tanh %64 : vector<8x64xf32>
    %66 = arith.mulf %62, %16 : vector<8x64xf32>
    %67 = arith.mulf %61, %65 : vector<8x64xf32>
    %68 = arith.addf %66, %67 : vector<8x64xf32>
    %69 = math.tanh %68 : vector<8x64xf32>
    %70 = arith.mulf %63, %69 : vector<8x64xf32>
    %c16 = arith.constant 16 : index
    %c0_27 = arith.constant 0 : index
    %71 = vector.load %arg12[%c16, %c0_27] : memref<64x256xf32, #tpu.memory_space<vmem>>, vector<8x256xf32>
    %cst_28 = arith.constant dense<0.000000e+00> : vector<8x256xf32>
    %72 = tpu.matmul %55, %7, %cst_28 {dimension_numbers = #tpu.dot_dimension_numbers<[1], [0], [0], [1], [0, 0, 1, 1], [], []>} : vector<8x64xf32>, vector<64x256xf32>, vector<8x256xf32> -> vector<8x256xf32>
    %73 = arith.addf %71, %72 : vector<8x256xf32>
    %74 = tpu.concatenate %55, %70 in 1 : vector<8x64xf32>, vector<8x64xf32> -> vector<8x128xf32>
    %cst_29 = arith.constant dense<0.000000e+00> : vector<8x256xf32>
    %75 = tpu.matmul %74, %8, %cst_29 {dimension_numbers = #tpu.dot_dimension_numbers<[1], [0], [0], [1], [0, 0, 1, 1], [], []>} : vector<8x128xf32>, vector<128x256xf32>, vector<8x256xf32> -> vector<8x256xf32>
    %76 = arith.addf %75, %12 : vector<8x256xf32>
    %77 = tpu.concatenate %70, %16 in 1 : vector<8x64xf32>, vector<8x64xf32> -> vector<8x128xf32>
    %cst_30 = arith.constant dense<0.000000e+00> : vector<8x256xf32>
    %78 = tpu.matmul %77, %9, %cst_30 {dimension_numbers = #tpu.dot_dimension_numbers<[1], [0], [0], [1], [0, 0, 1, 1], [], []>} : vector<8x128xf32>, vector<128x256xf32>, vector<8x256xf32> -> vector<8x256xf32>
    %79 = arith.addf %78, %15 : vector<8x256xf32>
    %80 = arith.negf %73 : vector<8x256xf32>
    %81 = math.exp %80 : vector<8x256xf32>
    %cst_31 = arith.constant 1.000000e+00 : f32
    %82 = vector.broadcast %cst_31 : f32 to vector<8x256xf32>
    %83 = arith.addf %82, %81 : vector<8x256xf32>
    %84 = arith.divf %82, %83 : vector<8x256xf32>
    %85 = vector.extract_strided_slice %84 {offsets = [0, 0], sizes = [8, 64], strides = [1, 1]} : vector<8x256xf32> to vector<8x64xf32>
    %86 = vector.extract_strided_slice %84 {offsets = [0, 64], sizes = [8, 64], strides = [1, 1]} : vector<8x256xf32> to vector<8x64xf32>
    %87 = vector.extract_strided_slice %84 {offsets = [0, 192], sizes = [8, 64], strides = [1, 1]} : vector<8x256xf32> to vector<8x64xf32>
    %88 = vector.extract_strided_slice %73 {offsets = [0, 128], sizes = [8, 64], strides = [1, 1]} : vector<8x256xf32> to vector<8x64xf32>
    %89 = math.tanh %88 : vector<8x64xf32>
    %90 = arith.mulf %86, %53 : vector<8x64xf32>
    %91 = arith.mulf %85, %89 : vector<8x64xf32>
    %92 = arith.addf %90, %91 : vector<8x64xf32>
    %93 = math.tanh %92 : vector<8x64xf32>
    %94 = arith.mulf %87, %93 : vector<8x64xf32>
    %95 = arith.negf %76 : vector<8x256xf32>
    %96 = math.exp %95 : vector<8x256xf32>
    %cst_32 = arith.constant 1.000000e+00 : f32
    %97 = vector.broadcast %cst_32 : f32 to vector<8x256xf32>
    %98 = arith.addf %97, %96 : vector<8x256xf32>
    %99 = arith.divf %97, %98 : vector<8x256xf32>
    %100 = vector.extract_strided_slice %99 {offsets = [0, 0], sizes = [8, 64], strides = [1, 1]} : vector<8x256xf32> to vector<8x64xf32>
    %101 = vector.extract_strided_slice %99 {offsets = [0, 64], sizes = [8, 64], strides = [1, 1]} : vector<8x256xf32> to vector<8x64xf32>
    %102 = vector.extract_strided_slice %99 {offsets = [0, 192], sizes = [8, 64], strides = [1, 1]} : vector<8x256xf32> to vector<8x64xf32>
    %103 = vector.extract_strided_slice %76 {offsets = [0, 128], sizes = [8, 64], strides = [1, 1]} : vector<8x256xf32> to vector<8x64xf32>
    %104 = math.tanh %103 : vector<8x64xf32>
    %105 = arith.mulf %101, %68 : vector<8x64xf32>
    %106 = arith.mulf %100, %104 : vector<8x64xf32>
    %107 = arith.addf %105, %106 : vector<8x64xf32>
    %108 = math.tanh %107 : vector<8x64xf32>
    %109 = arith.mulf %102, %108 : vector<8x64xf32>
    %110 = arith.negf %79 : vector<8x256xf32>
    %111 = math.exp %110 : vector<8x256xf32>
    %cst_33 = arith.constant 1.000000e+00 : f32
    %112 = vector.broadcast %cst_33 : f32 to vector<8x256xf32>
    %113 = arith.addf %112, %111 : vector<8x256xf32>
    %114 = arith.divf %112, %113 : vector<8x256xf32>
    %115 = vector.extract_strided_slice %114 {offsets = [0, 0], sizes = [8, 64], strides = [1, 1]} : vector<8x256xf32> to vector<8x64xf32>
    %116 = vector.extract_strided_slice %114 {offsets = [0, 64], sizes = [8, 64], strides = [1, 1]} : vector<8x256xf32> to vector<8x64xf32>
    %117 = vector.extract_strided_slice %114 {offsets = [0, 192], sizes = [8, 64], strides = [1, 1]} : vector<8x256xf32> to vector<8x64xf32>
    %118 = vector.extract_strided_slice %79 {offsets = [0, 128], sizes = [8, 64], strides = [1, 1]} : vector<8x256xf32> to vector<8x64xf32>
    %119 = math.tanh %118 : vector<8x64xf32>
    %120 = arith.mulf %116, %16 : vector<8x64xf32>
    %121 = arith.mulf %115, %119 : vector<8x64xf32>
    %122 = arith.addf %120, %121 : vector<8x64xf32>
    %123 = math.tanh %122 : vector<8x64xf32>
    %124 = arith.mulf %117, %123 : vector<8x64xf32>
    %c24 = arith.constant 24 : index
    %c0_34 = arith.constant 0 : index
    %125 = vector.load %arg12[%c24, %c0_34] : memref<64x256xf32, #tpu.memory_space<vmem>>, vector<8x256xf32>
    %cst_35 = arith.constant dense<0.000000e+00> : vector<8x256xf32>
    %126 = tpu.matmul %94, %7, %cst_35 {dimension_numbers = #tpu.dot_dimension_numbers<[1], [0], [0], [1], [0, 0, 1, 1], [], []>} : vector<8x64xf32>, vector<64x256xf32>, vector<8x256xf32> -> vector<8x256xf32>
    %127 = arith.addf %125, %126 : vector<8x256xf32>
    %128 = tpu.concatenate %94, %109 in 1 : vector<8x64xf32>, vector<8x64xf32> -> vector<8x128xf32>
    %cst_36 = arith.constant dense<0.000000e+00> : vector<8x256xf32>
    %129 = tpu.matmul %128, %8, %cst_36 {dimension_numbers = #tpu.dot_dimension_numbers<[1], [0], [0], [1], [0, 0, 1, 1], [], []>} : vector<8x128xf32>, vector<128x256xf32>, vector<8x256xf32> -> vector<8x256xf32>
    %130 = arith.addf %129, %12 : vector<8x256xf32>
    %131 = tpu.concatenate %109, %124 in 1 : vector<8x64xf32>, vector<8x64xf32> -> vector<8x128xf32>
    %cst_37 = arith.constant dense<0.000000e+00> : vector<8x256xf32>
    %132 = tpu.matmul %131, %9, %cst_37 {dimension_numbers = #tpu.dot_dimension_numbers<[1], [0], [0], [1], [0, 0, 1, 1], [], []>} : vector<8x128xf32>, vector<128x256xf32>, vector<8x256xf32> -> vector<8x256xf32>
    %133 = arith.addf %132, %15 : vector<8x256xf32>
    %134 = arith.negf %127 : vector<8x256xf32>
    %135 = math.exp %134 : vector<8x256xf32>
    %cst_38 = arith.constant 1.000000e+00 : f32
    %136 = vector.broadcast %cst_38 : f32 to vector<8x256xf32>
    %137 = arith.addf %136, %135 : vector<8x256xf32>
    %138 = arith.divf %136, %137 : vector<8x256xf32>
    %139 = vector.extract_strided_slice %138 {offsets = [0, 0], sizes = [8, 64], strides = [1, 1]} : vector<8x256xf32> to vector<8x64xf32>
    %140 = vector.extract_strided_slice %138 {offsets = [0, 64], sizes = [8, 64], strides = [1, 1]} : vector<8x256xf32> to vector<8x64xf32>
    %141 = vector.extract_strided_slice %138 {offsets = [0, 192], sizes = [8, 64], strides = [1, 1]} : vector<8x256xf32> to vector<8x64xf32>
    %142 = vector.extract_strided_slice %127 {offsets = [0, 128], sizes = [8, 64], strides = [1, 1]} : vector<8x256xf32> to vector<8x64xf32>
    %143 = math.tanh %142 : vector<8x64xf32>
    %144 = arith.mulf %140, %92 : vector<8x64xf32>
    %145 = arith.mulf %139, %143 : vector<8x64xf32>
    %146 = arith.addf %144, %145 : vector<8x64xf32>
    %147 = math.tanh %146 : vector<8x64xf32>
    %148 = arith.mulf %141, %147 : vector<8x64xf32>
    %149 = arith.negf %130 : vector<8x256xf32>
    %150 = math.exp %149 : vector<8x256xf32>
    %cst_39 = arith.constant 1.000000e+00 : f32
    %151 = vector.broadcast %cst_39 : f32 to vector<8x256xf32>
    %152 = arith.addf %151, %150 : vector<8x256xf32>
    %153 = arith.divf %151, %152 : vector<8x256xf32>
    %154 = vector.extract_strided_slice %153 {offsets = [0, 0], sizes = [8, 64], strides = [1, 1]} : vector<8x256xf32> to vector<8x64xf32>
    %155 = vector.extract_strided_slice %153 {offsets = [0, 64], sizes = [8, 64], strides = [1, 1]} : vector<8x256xf32> to vector<8x64xf32>
    %156 = vector.extract_strided_slice %153 {offsets = [0, 192], sizes = [8, 64], strides = [1, 1]} : vector<8x256xf32> to vector<8x64xf32>
    %157 = vector.extract_strided_slice %130 {offsets = [0, 128], sizes = [8, 64], strides = [1, 1]} : vector<8x256xf32> to vector<8x64xf32>
    %158 = math.tanh %157 : vector<8x64xf32>
    %159 = arith.mulf %155, %107 : vector<8x64xf32>
    %160 = arith.mulf %154, %158 : vector<8x64xf32>
    %161 = arith.addf %159, %160 : vector<8x64xf32>
    %162 = math.tanh %161 : vector<8x64xf32>
    %163 = arith.mulf %156, %162 : vector<8x64xf32>
    %164 = arith.negf %133 : vector<8x256xf32>
    %165 = math.exp %164 : vector<8x256xf32>
    %cst_40 = arith.constant 1.000000e+00 : f32
    %166 = vector.broadcast %cst_40 : f32 to vector<8x256xf32>
    %167 = arith.addf %166, %165 : vector<8x256xf32>
    %168 = arith.divf %166, %167 : vector<8x256xf32>
    %169 = vector.extract_strided_slice %168 {offsets = [0, 0], sizes = [8, 64], strides = [1, 1]} : vector<8x256xf32> to vector<8x64xf32>
    %170 = vector.extract_strided_slice %168 {offsets = [0, 64], sizes = [8, 64], strides = [1, 1]} : vector<8x256xf32> to vector<8x64xf32>
    %171 = vector.extract_strided_slice %168 {offsets = [0, 192], sizes = [8, 64], strides = [1, 1]} : vector<8x256xf32> to vector<8x64xf32>
    %172 = vector.extract_strided_slice %133 {offsets = [0, 128], sizes = [8, 64], strides = [1, 1]} : vector<8x256xf32> to vector<8x64xf32>
    %173 = math.tanh %172 : vector<8x64xf32>
    %174 = arith.mulf %170, %122 : vector<8x64xf32>
    %175 = arith.mulf %169, %173 : vector<8x64xf32>
    %176 = arith.addf %174, %175 : vector<8x64xf32>
    %177 = math.tanh %176 : vector<8x64xf32>
    %178 = arith.mulf %171, %177 : vector<8x64xf32>
    %c32 = arith.constant 32 : index
    %c0_41 = arith.constant 0 : index
    %179 = vector.load %arg12[%c32, %c0_41] : memref<64x256xf32, #tpu.memory_space<vmem>>, vector<8x256xf32>
    %cst_42 = arith.constant dense<0.000000e+00> : vector<8x256xf32>
    %180 = tpu.matmul %148, %7, %cst_42 {dimension_numbers = #tpu.dot_dimension_numbers<[1], [0], [0], [1], [0, 0, 1, 1], [], []>} : vector<8x64xf32>, vector<64x256xf32>, vector<8x256xf32> -> vector<8x256xf32>
    %181 = arith.addf %179, %180 : vector<8x256xf32>
    %182 = tpu.concatenate %148, %163 in 1 : vector<8x64xf32>, vector<8x64xf32> -> vector<8x128xf32>
    %cst_43 = arith.constant dense<0.000000e+00> : vector<8x256xf32>
    %183 = tpu.matmul %182, %8, %cst_43 {dimension_numbers = #tpu.dot_dimension_numbers<[1], [0], [0], [1], [0, 0, 1, 1], [], []>} : vector<8x128xf32>, vector<128x256xf32>, vector<8x256xf32> -> vector<8x256xf32>
    %184 = arith.addf %183, %12 : vector<8x256xf32>
    %185 = tpu.concatenate %163, %178 in 1 : vector<8x64xf32>, vector<8x64xf32> -> vector<8x128xf32>
    %cst_44 = arith.constant dense<0.000000e+00> : vector<8x256xf32>
    %186 = tpu.matmul %185, %9, %cst_44 {dimension_numbers = #tpu.dot_dimension_numbers<[1], [0], [0], [1], [0, 0, 1, 1], [], []>} : vector<8x128xf32>, vector<128x256xf32>, vector<8x256xf32> -> vector<8x256xf32>
    %187 = arith.addf %186, %15 : vector<8x256xf32>
    %188 = arith.negf %181 : vector<8x256xf32>
    %189 = math.exp %188 : vector<8x256xf32>
    %cst_45 = arith.constant 1.000000e+00 : f32
    %190 = vector.broadcast %cst_45 : f32 to vector<8x256xf32>
    %191 = arith.addf %190, %189 : vector<8x256xf32>
    %192 = arith.divf %190, %191 : vector<8x256xf32>
    %193 = vector.extract_strided_slice %192 {offsets = [0, 0], sizes = [8, 64], strides = [1, 1]} : vector<8x256xf32> to vector<8x64xf32>
    %194 = vector.extract_strided_slice %192 {offsets = [0, 64], sizes = [8, 64], strides = [1, 1]} : vector<8x256xf32> to vector<8x64xf32>
    %195 = vector.extract_strided_slice %192 {offsets = [0, 192], sizes = [8, 64], strides = [1, 1]} : vector<8x256xf32> to vector<8x64xf32>
    %196 = vector.extract_strided_slice %181 {offsets = [0, 128], sizes = [8, 64], strides = [1, 1]} : vector<8x256xf32> to vector<8x64xf32>
    %197 = math.tanh %196 : vector<8x64xf32>
    %198 = arith.mulf %194, %146 : vector<8x64xf32>
    %199 = arith.mulf %193, %197 : vector<8x64xf32>
    %200 = arith.addf %198, %199 : vector<8x64xf32>
    %201 = math.tanh %200 : vector<8x64xf32>
    %202 = arith.mulf %195, %201 : vector<8x64xf32>
    %203 = arith.negf %184 : vector<8x256xf32>
    %204 = math.exp %203 : vector<8x256xf32>
    %cst_46 = arith.constant 1.000000e+00 : f32
    %205 = vector.broadcast %cst_46 : f32 to vector<8x256xf32>
    %206 = arith.addf %205, %204 : vector<8x256xf32>
    %207 = arith.divf %205, %206 : vector<8x256xf32>
    %208 = vector.extract_strided_slice %207 {offsets = [0, 0], sizes = [8, 64], strides = [1, 1]} : vector<8x256xf32> to vector<8x64xf32>
    %209 = vector.extract_strided_slice %207 {offsets = [0, 64], sizes = [8, 64], strides = [1, 1]} : vector<8x256xf32> to vector<8x64xf32>
    %210 = vector.extract_strided_slice %207 {offsets = [0, 192], sizes = [8, 64], strides = [1, 1]} : vector<8x256xf32> to vector<8x64xf32>
    %211 = vector.extract_strided_slice %184 {offsets = [0, 128], sizes = [8, 64], strides = [1, 1]} : vector<8x256xf32> to vector<8x64xf32>
    %212 = math.tanh %211 : vector<8x64xf32>
    %213 = arith.mulf %209, %161 : vector<8x64xf32>
    %214 = arith.mulf %208, %212 : vector<8x64xf32>
    %215 = arith.addf %213, %214 : vector<8x64xf32>
    %216 = math.tanh %215 : vector<8x64xf32>
    %217 = arith.mulf %210, %216 : vector<8x64xf32>
    %218 = arith.negf %187 : vector<8x256xf32>
    %219 = math.exp %218 : vector<8x256xf32>
    %cst_47 = arith.constant 1.000000e+00 : f32
    %220 = vector.broadcast %cst_47 : f32 to vector<8x256xf32>
    %221 = arith.addf %220, %219 : vector<8x256xf32>
    %222 = arith.divf %220, %221 : vector<8x256xf32>
    %223 = vector.extract_strided_slice %222 {offsets = [0, 0], sizes = [8, 64], strides = [1, 1]} : vector<8x256xf32> to vector<8x64xf32>
    %224 = vector.extract_strided_slice %222 {offsets = [0, 64], sizes = [8, 64], strides = [1, 1]} : vector<8x256xf32> to vector<8x64xf32>
    %225 = vector.extract_strided_slice %222 {offsets = [0, 192], sizes = [8, 64], strides = [1, 1]} : vector<8x256xf32> to vector<8x64xf32>
    %226 = vector.extract_strided_slice %187 {offsets = [0, 128], sizes = [8, 64], strides = [1, 1]} : vector<8x256xf32> to vector<8x64xf32>
    %227 = math.tanh %226 : vector<8x64xf32>
    %228 = arith.mulf %224, %176 : vector<8x64xf32>
    %229 = arith.mulf %223, %227 : vector<8x64xf32>
    %230 = arith.addf %228, %229 : vector<8x64xf32>
    %231 = math.tanh %230 : vector<8x64xf32>
    %232 = arith.mulf %225, %231 : vector<8x64xf32>
    %c40 = arith.constant 40 : index
    %c0_48 = arith.constant 0 : index
    %233 = vector.load %arg12[%c40, %c0_48] : memref<64x256xf32, #tpu.memory_space<vmem>>, vector<8x256xf32>
    %cst_49 = arith.constant dense<0.000000e+00> : vector<8x256xf32>
    %234 = tpu.matmul %202, %7, %cst_49 {dimension_numbers = #tpu.dot_dimension_numbers<[1], [0], [0], [1], [0, 0, 1, 1], [], []>} : vector<8x64xf32>, vector<64x256xf32>, vector<8x256xf32> -> vector<8x256xf32>
    %235 = arith.addf %233, %234 : vector<8x256xf32>
    %236 = tpu.concatenate %202, %217 in 1 : vector<8x64xf32>, vector<8x64xf32> -> vector<8x128xf32>
    %cst_50 = arith.constant dense<0.000000e+00> : vector<8x256xf32>
    %237 = tpu.matmul %236, %8, %cst_50 {dimension_numbers = #tpu.dot_dimension_numbers<[1], [0], [0], [1], [0, 0, 1, 1], [], []>} : vector<8x128xf32>, vector<128x256xf32>, vector<8x256xf32> -> vector<8x256xf32>
    %238 = arith.addf %237, %12 : vector<8x256xf32>
    %239 = tpu.concatenate %217, %232 in 1 : vector<8x64xf32>, vector<8x64xf32> -> vector<8x128xf32>
    %cst_51 = arith.constant dense<0.000000e+00> : vector<8x256xf32>
    %240 = tpu.matmul %239, %9, %cst_51 {dimension_numbers = #tpu.dot_dimension_numbers<[1], [0], [0], [1], [0, 0, 1, 1], [], []>} : vector<8x128xf32>, vector<128x256xf32>, vector<8x256xf32> -> vector<8x256xf32>
    %241 = arith.addf %240, %15 : vector<8x256xf32>
    %242 = arith.negf %235 : vector<8x256xf32>
    %243 = math.exp %242 : vector<8x256xf32>
    %cst_52 = arith.constant 1.000000e+00 : f32
    %244 = vector.broadcast %cst_52 : f32 to vector<8x256xf32>
    %245 = arith.addf %244, %243 : vector<8x256xf32>
    %246 = arith.divf %244, %245 : vector<8x256xf32>
    %247 = vector.extract_strided_slice %246 {offsets = [0, 0], sizes = [8, 64], strides = [1, 1]} : vector<8x256xf32> to vector<8x64xf32>
    %248 = vector.extract_strided_slice %246 {offsets = [0, 64], sizes = [8, 64], strides = [1, 1]} : vector<8x256xf32> to vector<8x64xf32>
    %249 = vector.extract_strided_slice %246 {offsets = [0, 192], sizes = [8, 64], strides = [1, 1]} : vector<8x256xf32> to vector<8x64xf32>
    %250 = vector.extract_strided_slice %235 {offsets = [0, 128], sizes = [8, 64], strides = [1, 1]} : vector<8x256xf32> to vector<8x64xf32>
    %251 = math.tanh %250 : vector<8x64xf32>
    %252 = arith.mulf %248, %200 : vector<8x64xf32>
    %253 = arith.mulf %247, %251 : vector<8x64xf32>
    %254 = arith.addf %252, %253 : vector<8x64xf32>
    %255 = math.tanh %254 : vector<8x64xf32>
    %256 = arith.mulf %249, %255 : vector<8x64xf32>
    %257 = arith.negf %238 : vector<8x256xf32>
    %258 = math.exp %257 : vector<8x256xf32>
    %cst_53 = arith.constant 1.000000e+00 : f32
    %259 = vector.broadcast %cst_53 : f32 to vector<8x256xf32>
    %260 = arith.addf %259, %258 : vector<8x256xf32>
    %261 = arith.divf %259, %260 : vector<8x256xf32>
    %262 = vector.extract_strided_slice %261 {offsets = [0, 0], sizes = [8, 64], strides = [1, 1]} : vector<8x256xf32> to vector<8x64xf32>
    %263 = vector.extract_strided_slice %261 {offsets = [0, 64], sizes = [8, 64], strides = [1, 1]} : vector<8x256xf32> to vector<8x64xf32>
    %264 = vector.extract_strided_slice %261 {offsets = [0, 192], sizes = [8, 64], strides = [1, 1]} : vector<8x256xf32> to vector<8x64xf32>
    %265 = vector.extract_strided_slice %238 {offsets = [0, 128], sizes = [8, 64], strides = [1, 1]} : vector<8x256xf32> to vector<8x64xf32>
    %266 = math.tanh %265 : vector<8x64xf32>
    %267 = arith.mulf %263, %215 : vector<8x64xf32>
    %268 = arith.mulf %262, %266 : vector<8x64xf32>
    %269 = arith.addf %267, %268 : vector<8x64xf32>
    %270 = math.tanh %269 : vector<8x64xf32>
    %271 = arith.mulf %264, %270 : vector<8x64xf32>
    %272 = arith.negf %241 : vector<8x256xf32>
    %273 = math.exp %272 : vector<8x256xf32>
    %cst_54 = arith.constant 1.000000e+00 : f32
    %274 = vector.broadcast %cst_54 : f32 to vector<8x256xf32>
    %275 = arith.addf %274, %273 : vector<8x256xf32>
    %276 = arith.divf %274, %275 : vector<8x256xf32>
    %277 = vector.extract_strided_slice %276 {offsets = [0, 0], sizes = [8, 64], strides = [1, 1]} : vector<8x256xf32> to vector<8x64xf32>
    %278 = vector.extract_strided_slice %276 {offsets = [0, 64], sizes = [8, 64], strides = [1, 1]} : vector<8x256xf32> to vector<8x64xf32>
    %279 = vector.extract_strided_slice %276 {offsets = [0, 192], sizes = [8, 64], strides = [1, 1]} : vector<8x256xf32> to vector<8x64xf32>
    %280 = vector.extract_strided_slice %241 {offsets = [0, 128], sizes = [8, 64], strides = [1, 1]} : vector<8x256xf32> to vector<8x64xf32>
    %281 = math.tanh %280 : vector<8x64xf32>
    %282 = arith.mulf %278, %230 : vector<8x64xf32>
    %283 = arith.mulf %277, %281 : vector<8x64xf32>
    %284 = arith.addf %282, %283 : vector<8x64xf32>
    %285 = math.tanh %284 : vector<8x64xf32>
    %286 = arith.mulf %279, %285 : vector<8x64xf32>
    %c48 = arith.constant 48 : index
    %c0_55 = arith.constant 0 : index
    %287 = vector.load %arg12[%c48, %c0_55] : memref<64x256xf32, #tpu.memory_space<vmem>>, vector<8x256xf32>
    %cst_56 = arith.constant dense<0.000000e+00> : vector<8x256xf32>
    %288 = tpu.matmul %256, %7, %cst_56 {dimension_numbers = #tpu.dot_dimension_numbers<[1], [0], [0], [1], [0, 0, 1, 1], [], []>} : vector<8x64xf32>, vector<64x256xf32>, vector<8x256xf32> -> vector<8x256xf32>
    %289 = arith.addf %287, %288 : vector<8x256xf32>
    %290 = tpu.concatenate %256, %271 in 1 : vector<8x64xf32>, vector<8x64xf32> -> vector<8x128xf32>
    %cst_57 = arith.constant dense<0.000000e+00> : vector<8x256xf32>
    %291 = tpu.matmul %290, %8, %cst_57 {dimension_numbers = #tpu.dot_dimension_numbers<[1], [0], [0], [1], [0, 0, 1, 1], [], []>} : vector<8x128xf32>, vector<128x256xf32>, vector<8x256xf32> -> vector<8x256xf32>
    %292 = arith.addf %291, %12 : vector<8x256xf32>
    %293 = tpu.concatenate %271, %286 in 1 : vector<8x64xf32>, vector<8x64xf32> -> vector<8x128xf32>
    %cst_58 = arith.constant dense<0.000000e+00> : vector<8x256xf32>
    %294 = tpu.matmul %293, %9, %cst_58 {dimension_numbers = #tpu.dot_dimension_numbers<[1], [0], [0], [1], [0, 0, 1, 1], [], []>} : vector<8x128xf32>, vector<128x256xf32>, vector<8x256xf32> -> vector<8x256xf32>
    %295 = arith.addf %294, %15 : vector<8x256xf32>
    %296 = arith.negf %289 : vector<8x256xf32>
    %297 = math.exp %296 : vector<8x256xf32>
    %cst_59 = arith.constant 1.000000e+00 : f32
    %298 = vector.broadcast %cst_59 : f32 to vector<8x256xf32>
    %299 = arith.addf %298, %297 : vector<8x256xf32>
    %300 = arith.divf %298, %299 : vector<8x256xf32>
    %301 = vector.extract_strided_slice %300 {offsets = [0, 0], sizes = [8, 64], strides = [1, 1]} : vector<8x256xf32> to vector<8x64xf32>
    %302 = vector.extract_strided_slice %300 {offsets = [0, 64], sizes = [8, 64], strides = [1, 1]} : vector<8x256xf32> to vector<8x64xf32>
    %303 = vector.extract_strided_slice %300 {offsets = [0, 192], sizes = [8, 64], strides = [1, 1]} : vector<8x256xf32> to vector<8x64xf32>
    %304 = vector.extract_strided_slice %289 {offsets = [0, 128], sizes = [8, 64], strides = [1, 1]} : vector<8x256xf32> to vector<8x64xf32>
    %305 = math.tanh %304 : vector<8x64xf32>
    %306 = arith.mulf %302, %254 : vector<8x64xf32>
    %307 = arith.mulf %301, %305 : vector<8x64xf32>
    %308 = arith.addf %306, %307 : vector<8x64xf32>
    %309 = math.tanh %308 : vector<8x64xf32>
    %310 = arith.mulf %303, %309 : vector<8x64xf32>
    %311 = arith.negf %292 : vector<8x256xf32>
    %312 = math.exp %311 : vector<8x256xf32>
    %cst_60 = arith.constant 1.000000e+00 : f32
    %313 = vector.broadcast %cst_60 : f32 to vector<8x256xf32>
    %314 = arith.addf %313, %312 : vector<8x256xf32>
    %315 = arith.divf %313, %314 : vector<8x256xf32>
    %316 = vector.extract_strided_slice %315 {offsets = [0, 0], sizes = [8, 64], strides = [1, 1]} : vector<8x256xf32> to vector<8x64xf32>
    %317 = vector.extract_strided_slice %315 {offsets = [0, 64], sizes = [8, 64], strides = [1, 1]} : vector<8x256xf32> to vector<8x64xf32>
    %318 = vector.extract_strided_slice %315 {offsets = [0, 192], sizes = [8, 64], strides = [1, 1]} : vector<8x256xf32> to vector<8x64xf32>
    %319 = vector.extract_strided_slice %292 {offsets = [0, 128], sizes = [8, 64], strides = [1, 1]} : vector<8x256xf32> to vector<8x64xf32>
    %320 = math.tanh %319 : vector<8x64xf32>
    %321 = arith.mulf %317, %269 : vector<8x64xf32>
    %322 = arith.mulf %316, %320 : vector<8x64xf32>
    %323 = arith.addf %321, %322 : vector<8x64xf32>
    %324 = math.tanh %323 : vector<8x64xf32>
    %325 = arith.mulf %318, %324 : vector<8x64xf32>
    %326 = arith.negf %295 : vector<8x256xf32>
    %327 = math.exp %326 : vector<8x256xf32>
    %cst_61 = arith.constant 1.000000e+00 : f32
    %328 = vector.broadcast %cst_61 : f32 to vector<8x256xf32>
    %329 = arith.addf %328, %327 : vector<8x256xf32>
    %330 = arith.divf %328, %329 : vector<8x256xf32>
    %331 = vector.extract_strided_slice %330 {offsets = [0, 0], sizes = [8, 64], strides = [1, 1]} : vector<8x256xf32> to vector<8x64xf32>
    %332 = vector.extract_strided_slice %330 {offsets = [0, 64], sizes = [8, 64], strides = [1, 1]} : vector<8x256xf32> to vector<8x64xf32>
    %333 = vector.extract_strided_slice %330 {offsets = [0, 192], sizes = [8, 64], strides = [1, 1]} : vector<8x256xf32> to vector<8x64xf32>
    %334 = vector.extract_strided_slice %295 {offsets = [0, 128], sizes = [8, 64], strides = [1, 1]} : vector<8x256xf32> to vector<8x64xf32>
    %335 = math.tanh %334 : vector<8x64xf32>
    %336 = arith.mulf %332, %284 : vector<8x64xf32>
    %337 = arith.mulf %331, %335 : vector<8x64xf32>
    %338 = arith.addf %336, %337 : vector<8x64xf32>
    %339 = math.tanh %338 : vector<8x64xf32>
    %340 = arith.mulf %333, %339 : vector<8x64xf32>
    %c56 = arith.constant 56 : index
    %c0_62 = arith.constant 0 : index
    %341 = vector.load %arg12[%c56, %c0_62] : memref<64x256xf32, #tpu.memory_space<vmem>>, vector<8x256xf32>
    %cst_63 = arith.constant dense<0.000000e+00> : vector<8x256xf32>
    %342 = tpu.matmul %310, %7, %cst_63 {dimension_numbers = #tpu.dot_dimension_numbers<[1], [0], [0], [1], [0, 0, 1, 1], [], []>} : vector<8x64xf32>, vector<64x256xf32>, vector<8x256xf32> -> vector<8x256xf32>
    %343 = arith.addf %341, %342 : vector<8x256xf32>
    %344 = tpu.concatenate %310, %325 in 1 : vector<8x64xf32>, vector<8x64xf32> -> vector<8x128xf32>
    %cst_64 = arith.constant dense<0.000000e+00> : vector<8x256xf32>
    %345 = tpu.matmul %344, %8, %cst_64 {dimension_numbers = #tpu.dot_dimension_numbers<[1], [0], [0], [1], [0, 0, 1, 1], [], []>} : vector<8x128xf32>, vector<128x256xf32>, vector<8x256xf32> -> vector<8x256xf32>
    %346 = arith.addf %345, %12 : vector<8x256xf32>
    %347 = tpu.concatenate %325, %340 in 1 : vector<8x64xf32>, vector<8x64xf32> -> vector<8x128xf32>
    %cst_65 = arith.constant dense<0.000000e+00> : vector<8x256xf32>
    %348 = tpu.matmul %347, %9, %cst_65 {dimension_numbers = #tpu.dot_dimension_numbers<[1], [0], [0], [1], [0, 0, 1, 1], [], []>} : vector<8x128xf32>, vector<128x256xf32>, vector<8x256xf32> -> vector<8x256xf32>
    %349 = arith.addf %348, %15 : vector<8x256xf32>
    %350 = arith.negf %343 : vector<8x256xf32>
    %351 = math.exp %350 : vector<8x256xf32>
    %cst_66 = arith.constant 1.000000e+00 : f32
    %352 = vector.broadcast %cst_66 : f32 to vector<8x256xf32>
    %353 = arith.addf %352, %351 : vector<8x256xf32>
    %354 = arith.divf %352, %353 : vector<8x256xf32>
    %355 = vector.extract_strided_slice %354 {offsets = [0, 0], sizes = [8, 64], strides = [1, 1]} : vector<8x256xf32> to vector<8x64xf32>
    %356 = vector.extract_strided_slice %354 {offsets = [0, 64], sizes = [8, 64], strides = [1, 1]} : vector<8x256xf32> to vector<8x64xf32>
    %357 = vector.extract_strided_slice %354 {offsets = [0, 192], sizes = [8, 64], strides = [1, 1]} : vector<8x256xf32> to vector<8x64xf32>
    %358 = vector.extract_strided_slice %343 {offsets = [0, 128], sizes = [8, 64], strides = [1, 1]} : vector<8x256xf32> to vector<8x64xf32>
    %359 = math.tanh %358 : vector<8x64xf32>
    %360 = arith.mulf %356, %308 : vector<8x64xf32>
    %361 = arith.mulf %355, %359 : vector<8x64xf32>
    %362 = arith.addf %360, %361 : vector<8x64xf32>
    %363 = math.tanh %362 : vector<8x64xf32>
    %364 = arith.mulf %357, %363 : vector<8x64xf32>
    %365 = arith.negf %346 : vector<8x256xf32>
    %366 = math.exp %365 : vector<8x256xf32>
    %cst_67 = arith.constant 1.000000e+00 : f32
    %367 = vector.broadcast %cst_67 : f32 to vector<8x256xf32>
    %368 = arith.addf %367, %366 : vector<8x256xf32>
    %369 = arith.divf %367, %368 : vector<8x256xf32>
    %370 = vector.extract_strided_slice %369 {offsets = [0, 0], sizes = [8, 64], strides = [1, 1]} : vector<8x256xf32> to vector<8x64xf32>
    %371 = vector.extract_strided_slice %369 {offsets = [0, 64], sizes = [8, 64], strides = [1, 1]} : vector<8x256xf32> to vector<8x64xf32>
    %372 = vector.extract_strided_slice %369 {offsets = [0, 192], sizes = [8, 64], strides = [1, 1]} : vector<8x256xf32> to vector<8x64xf32>
    %373 = vector.extract_strided_slice %346 {offsets = [0, 128], sizes = [8, 64], strides = [1, 1]} : vector<8x256xf32> to vector<8x64xf32>
    %374 = math.tanh %373 : vector<8x64xf32>
    %375 = arith.mulf %371, %323 : vector<8x64xf32>
    %376 = arith.mulf %370, %374 : vector<8x64xf32>
    %377 = arith.addf %375, %376 : vector<8x64xf32>
    %378 = math.tanh %377 : vector<8x64xf32>
    %379 = arith.mulf %372, %378 : vector<8x64xf32>
    %380 = arith.negf %349 : vector<8x256xf32>
    %381 = math.exp %380 : vector<8x256xf32>
    %cst_68 = arith.constant 1.000000e+00 : f32
    %382 = vector.broadcast %cst_68 : f32 to vector<8x256xf32>
    %383 = arith.addf %382, %381 : vector<8x256xf32>
    %384 = arith.divf %382, %383 : vector<8x256xf32>
    %385 = vector.extract_strided_slice %384 {offsets = [0, 0], sizes = [8, 64], strides = [1, 1]} : vector<8x256xf32> to vector<8x64xf32>
    %386 = vector.extract_strided_slice %384 {offsets = [0, 64], sizes = [8, 64], strides = [1, 1]} : vector<8x256xf32> to vector<8x64xf32>
    %387 = vector.extract_strided_slice %384 {offsets = [0, 192], sizes = [8, 64], strides = [1, 1]} : vector<8x256xf32> to vector<8x64xf32>
    %388 = vector.extract_strided_slice %349 {offsets = [0, 128], sizes = [8, 64], strides = [1, 1]} : vector<8x256xf32> to vector<8x64xf32>
    %389 = math.tanh %388 : vector<8x64xf32>
    %390 = arith.mulf %386, %338 : vector<8x64xf32>
    %391 = arith.mulf %385, %389 : vector<8x64xf32>
    %392 = arith.addf %390, %391 : vector<8x64xf32>
    %393 = math.tanh %392 : vector<8x64xf32>
    %394 = arith.mulf %387, %393 : vector<8x64xf32>
    %395 = tpu.concatenate %364, %379 in 1 : vector<8x64xf32>, vector<8x64xf32> -> vector<8x128xf32>
    %cst_69 = arith.constant dense<0.000000e+00> : vector<8x256xf32>
    %396 = tpu.matmul %395, %8, %cst_69 {dimension_numbers = #tpu.dot_dimension_numbers<[1], [0], [0], [1], [0, 0, 1, 1], [], []>} : vector<8x128xf32>, vector<128x256xf32>, vector<8x256xf32> -> vector<8x256xf32>
    %397 = arith.addf %396, %12 : vector<8x256xf32>
    %398 = tpu.concatenate %379, %394 in 1 : vector<8x64xf32>, vector<8x64xf32> -> vector<8x128xf32>
    %cst_70 = arith.constant dense<0.000000e+00> : vector<8x256xf32>
    %399 = tpu.matmul %398, %9, %cst_70 {dimension_numbers = #tpu.dot_dimension_numbers<[1], [0], [0], [1], [0, 0, 1, 1], [], []>} : vector<8x128xf32>, vector<128x256xf32>, vector<8x256xf32> -> vector<8x256xf32>
    %400 = arith.addf %399, %15 : vector<8x256xf32>
    %401 = arith.negf %397 : vector<8x256xf32>
    %402 = math.exp %401 : vector<8x256xf32>
    %cst_71 = arith.constant 1.000000e+00 : f32
    %403 = vector.broadcast %cst_71 : f32 to vector<8x256xf32>
    %404 = arith.addf %403, %402 : vector<8x256xf32>
    %405 = arith.divf %403, %404 : vector<8x256xf32>
    %406 = vector.extract_strided_slice %405 {offsets = [0, 0], sizes = [8, 64], strides = [1, 1]} : vector<8x256xf32> to vector<8x64xf32>
    %407 = vector.extract_strided_slice %405 {offsets = [0, 64], sizes = [8, 64], strides = [1, 1]} : vector<8x256xf32> to vector<8x64xf32>
    %408 = vector.extract_strided_slice %405 {offsets = [0, 192], sizes = [8, 64], strides = [1, 1]} : vector<8x256xf32> to vector<8x64xf32>
    %409 = vector.extract_strided_slice %397 {offsets = [0, 128], sizes = [8, 64], strides = [1, 1]} : vector<8x256xf32> to vector<8x64xf32>
    %410 = math.tanh %409 : vector<8x64xf32>
    %411 = arith.mulf %407, %377 : vector<8x64xf32>
    %412 = arith.mulf %406, %410 : vector<8x64xf32>
    %413 = arith.addf %411, %412 : vector<8x64xf32>
    %414 = math.tanh %413 : vector<8x64xf32>
    %415 = arith.mulf %408, %414 : vector<8x64xf32>
    %416 = arith.negf %400 : vector<8x256xf32>
    %417 = math.exp %416 : vector<8x256xf32>
    %cst_72 = arith.constant 1.000000e+00 : f32
    %418 = vector.broadcast %cst_72 : f32 to vector<8x256xf32>
    %419 = arith.addf %418, %417 : vector<8x256xf32>
    %420 = arith.divf %418, %419 : vector<8x256xf32>
    %421 = vector.extract_strided_slice %420 {offsets = [0, 0], sizes = [8, 64], strides = [1, 1]} : vector<8x256xf32> to vector<8x64xf32>
    %422 = vector.extract_strided_slice %420 {offsets = [0, 64], sizes = [8, 64], strides = [1, 1]} : vector<8x256xf32> to vector<8x64xf32>
    %423 = vector.extract_strided_slice %420 {offsets = [0, 192], sizes = [8, 64], strides = [1, 1]} : vector<8x256xf32> to vector<8x64xf32>
    %424 = vector.extract_strided_slice %400 {offsets = [0, 128], sizes = [8, 64], strides = [1, 1]} : vector<8x256xf32> to vector<8x64xf32>
    %425 = math.tanh %424 : vector<8x64xf32>
    %426 = arith.mulf %422, %392 : vector<8x64xf32>
    %427 = arith.mulf %421, %425 : vector<8x64xf32>
    %428 = arith.addf %426, %427 : vector<8x64xf32>
    %429 = math.tanh %428 : vector<8x64xf32>
    %430 = arith.mulf %423, %429 : vector<8x64xf32>
    %431 = tpu.concatenate %415, %430 in 1 : vector<8x64xf32>, vector<8x64xf32> -> vector<8x128xf32>
    %cst_73 = arith.constant dense<0.000000e+00> : vector<8x256xf32>
    %432 = tpu.matmul %431, %9, %cst_73 {dimension_numbers = #tpu.dot_dimension_numbers<[1], [0], [0], [1], [0, 0, 1, 1], [], []>} : vector<8x128xf32>, vector<128x256xf32>, vector<8x256xf32> -> vector<8x256xf32>
    %433 = arith.addf %432, %15 : vector<8x256xf32>
    %434 = arith.negf %433 : vector<8x256xf32>
    %435 = math.exp %434 : vector<8x256xf32>
    %cst_74 = arith.constant 1.000000e+00 : f32
    %436 = vector.broadcast %cst_74 : f32 to vector<8x256xf32>
    %437 = arith.addf %436, %435 : vector<8x256xf32>
    %438 = arith.divf %436, %437 : vector<8x256xf32>
    %439 = vector.extract_strided_slice %438 {offsets = [0, 0], sizes = [8, 64], strides = [1, 1]} : vector<8x256xf32> to vector<8x64xf32>
    %440 = vector.extract_strided_slice %438 {offsets = [0, 64], sizes = [8, 64], strides = [1, 1]} : vector<8x256xf32> to vector<8x64xf32>
    %441 = vector.extract_strided_slice %438 {offsets = [0, 192], sizes = [8, 64], strides = [1, 1]} : vector<8x256xf32> to vector<8x64xf32>
    %442 = vector.extract_strided_slice %433 {offsets = [0, 128], sizes = [8, 64], strides = [1, 1]} : vector<8x256xf32> to vector<8x64xf32>
    %443 = math.tanh %442 : vector<8x64xf32>
    %444 = arith.mulf %440, %428 : vector<8x64xf32>
    %445 = arith.mulf %439, %443 : vector<8x64xf32>
    %446 = arith.addf %444, %445 : vector<8x64xf32>
    %447 = math.tanh %446 : vector<8x64xf32>
    %448 = arith.mulf %441, %447 : vector<8x64xf32>
    %c0_75 = arith.constant 0 : index
    %c0_76 = arith.constant 0 : index
    %449 = vector.load %arg9[%c0_75, %c0_76] : memref<64x1xf32, #tpu.memory_space<vmem>>, vector<64x1xf32>
    %cst_77 = arith.constant dense<0.000000e+00> : vector<8x1xf32>
    %450 = tpu.matmul %448, %449, %cst_77 {dimension_numbers = #tpu.dot_dimension_numbers<[1], [0], [0], [1], [0, 0, 1, 1], [], []>} : vector<8x64xf32>, vector<64x1xf32>, vector<8x1xf32> -> vector<8x1xf32>
    %c0_78 = arith.constant 0 : index
    %c0_79 = arith.constant 0 : index
    %451 = vector.load %arg10[%c0_78, %c0_79] : memref<1x1xf32, #tpu.memory_space<vmem>>, vector<1x1xf32>
    %452 = vector.broadcast %451 : vector<1x1xf32> to vector<8x1xf32>
    %453 = arith.addf %450, %452 : vector<8x1xf32>
    %c0_80 = arith.constant 0 : index
    %c0_81 = arith.constant 0 : index
    %454 = vector.load %arg11[%c0_80, %c0_81] : memref<8x1xf32, #tpu.memory_space<vmem>>, vector<8x1xf32>
    tpu.vector_store %arg11[%c0_80, %c0_81], %453 {strides = array<i32>} : memref<8x1xf32, #tpu.memory_space<vmem>>, vector<8x1xf32>,
    return
  }
  func.func @transform_0(%arg0: i32) -> (i32, i32) {
    %c0_i32 = arith.constant 0 : i32
    %c0_i32_0 = arith.constant 0 : i32
    %c0_i32_1 = arith.constant 0 : i32
    return %c0_i32, %c0_i32_0 : i32, i32
  }
  func.func @transform_1(%arg0: i32) -> (i32, i32) {
    %c0_i32 = arith.constant 0 : i32
    %c0_i32_0 = arith.constant 0 : i32
    %c0_i32_1 = arith.constant 0 : i32
    return %c0_i32, %c0_i32_0 : i32, i32
  }
  func.func @transform_2(%arg0: i32) -> (i32, i32) {
    %c0_i32 = arith.constant 0 : i32
    %c0_i32_0 = arith.constant 0 : i32
    %c0_i32_1 = arith.constant 0 : i32
    return %c0_i32, %c0_i32_0 : i32, i32
  }
  func.func @transform_3(%arg0: i32) -> (i32, i32) {
    %c0_i32 = arith.constant 0 : i32
    %c0_i32_0 = arith.constant 0 : i32
    %c0_i32_1 = arith.constant 0 : i32
    return %c0_i32, %c0_i32_0 : i32, i32
  }
  func.func @transform_4(%arg0: i32) -> (i32, i32) {
    %c0_i32 = arith.constant 0 : i32
    %c0_i32_0 = arith.constant 0 : i32
    %c0_i32_1 = arith.constant 0 : i32
    return %c0_i32, %c0_i32_0 : i32, i32
  }
  func.func @transform_5(%arg0: i32) -> (i32, i32) {
    %c0_i32 = arith.constant 0 : i32
    %c0_i32_0 = arith.constant 0 : i32
    %c0_i32_1 = arith.constant 0 : i32
    return %c0_i32, %c0_i32_0 : i32, i32
  }
  func.func @transform_6(%arg0: i32) -> (i32, i32) {
    %c0_i32 = arith.constant 0 : i32
    %c0_i32_0 = arith.constant 0 : i32
    %c0_i32_1 = arith.constant 0 : i32
    return %c0_i32, %c0_i32_0 : i32, i32
  }
  func.func @transform_7(%arg0: i32) -> (i32, i32) {
    %c0_i32 = arith.constant 0 : i32
    %c0_i32_0 = arith.constant 0 : i32
    %c0_i32_1 = arith.constant 0 : i32
    return %c0_i32, %c0_i32_0 : i32, i32
  }
  func.func @transform_8(%arg0: i32) -> (i32, i32) {
    %c0_i32 = arith.constant 0 : i32
    %c0_i32_0 = arith.constant 0 : i32
    %c0_i32_1 = arith.constant 0 : i32
    return %c0_i32, %c0_i32_0 : i32, i32
  }
  func.func @transform_9(%arg0: i32) -> (i32, i32) {
    %c0_i32 = arith.constant 0 : i32
    %c0_i32_0 = arith.constant 0 : i32
    %c0_i32_1 = arith.constant 0 : i32
    return %c0_i32, %c0_i32_0 : i32, i32
  }
  func.func @transform_10(%arg0: i32) -> (i32, i32) {
    %c0_i32 = arith.constant 0 : i32
    %c0_i32_0 = arith.constant 0 : i32
    %c0_i32_1 = arith.constant 0 : i32
    return %c0_i32, %c0_i32_0 : i32, i32
  }
}

</mosaic_0001>

<llo_original>
// kernel: tpu_custom_call.1
$region0: #{tpu_custom_call.1}
  #allocation0 [shape = 'u32[]', space=smem, size = 0x4, offset = 0x4, fixed_abs, tag = 'smem constant byte address 0x4 - core index']
  #allocation1 [shape = 'u32[144,128]{1,0:T(1,128)}', space=vmem, size = 0x12000, scoped, tag = 'internal scratch']
  #allocation2 [shape = 'f32[64,256]{1,0:T(8,128)}', space=vmem, size = 0x10000, scoped, tag = 'scratch operand']
  #allocation3 [shape = 'f32[1,1]{1,0:T(1,128)S(1)}', space=vmem, size = 0x200, scoped, tag = 'scoped memory for tpu_custom_call.1']
  %s0 = inlined_call_operand.vmem [shape: f32[64,16], index: 0, kind: input, shape index: {}]
  %s1 = inlined_call_operand.hbm [shape: f32[16,256], index: 1, kind: input, shape index: {}]
  %s2 = inlined_call_operand.vmem [shape: f32[64,256], index: 2, kind: input, shape index: {}]
  %s3 = inlined_call_operand.vmem [shape: f32[1,256], index: 3, kind: input, shape index: {}]
  %s4 = inlined_call_operand.hbm [shape: f32[128,256], index: 4, kind: input, shape index: {}]
  %s5 = inlined_call_operand.vmem [shape: f32[1,256], index: 5, kind: input, shape index: {}]
  %s6 = inlined_call_operand.hbm [shape: f32[128,256], index: 6, kind: input, shape index: {}]
  %s7 = inlined_call_operand.vmem [shape: f32[1,256], index: 7, kind: input, shape index: {}]
  %s8 = inlined_call_operand.vmem [shape: f32[64,1], index: 8, kind: input, shape index: {}]
  %s9 = inlined_call_operand.<no memory space> [shape: f32[1,1], index: 9, kind: input, shape index: {}]
  %s10 = inlined_call_operand.vmem [shape: f32[8,1], index: 10, kind: output, shape index: {}]
  %s11 = sld [smem:[#allocation0]]
  $region62: #{tpu_custom_call.1} parent=0
    _
  %s13 = ssub.s32 1, %s11
  %s14 = scalar_select 0, %s13, %s11
  %v15 = vstv %s9
  %16 = vst [vmem:[#allocation3] sm:$0x1] %v15
  $region1: #{tpu_custom_call.1} parent=0
    #allocation4 [shape = 'u8[16384]{0}', space=vmem, size = 0x4000, scoped, tag = 'input window, operand 1, single buffered']
    #allocation5 [shape = 's32[1]{0}', space=sflag, size = 0x4, scoped, tag = 'scoped memory for tpu_custom_call.1']
    #allocation6 [shape = 'u8[131072]{0}', space=vmem, size = 0x20000, scoped, tag = 'input window, operand 4, single buffered']
    #allocation7 [shape = 's32[1]{0}', space=sflag, size = 0x4, scoped, tag = 'scoped memory for tpu_custom_call.1']
    #allocation8 [shape = 'u8[131072]{0}', space=vmem, size = 0x20000, scoped, tag = 'input window, operand 6, single buffered']
    %17 = vsyncpa [#allocation5], 0
    %18 = vsyncpa [#allocation7], 0
    // Predicated region
    $region2: #{tpu_custom_call.1} parent=1 // pred_check
      _
    $region3: #{tpu_custom_call.1} parent=1 // pred_check_branch
      %20 = sbr.rel (0) target = $region5
    $region4: #{tpu_custom_call.1} parent=1 // pred_region
      _
    $region5: #{tpu_custom_call.1} parent=1 // pred_fallthru
      _
    // Predicated region
    $region6: #{tpu_custom_call.1} parent=1 // pred_check
      _
    $region7: #{tpu_custom_call.1} parent=1 // pred_check_branch
      %22 = sbr.rel (0) target = $region9
    $region8: #{tpu_custom_call.1} parent=1 // pred_region
      %s24 = ssub.s32 512, 512
      %25 = vsyncadd [#allocation5], %s24
      %s26 = sshll.u32 [#allocation4], 4
      %s27 = int_to_ptr.vmem [resolvable:$true] %s26
      %32 = dma.hbm_to_vmem [thread:$0]  %s1, 512, %s27, [#allocation5], 256, 256, 16
    $region9: #{tpu_custom_call.1} parent=1 // pred_fallthru
      _
    // Predicated region
    $region10: #{tpu_custom_call.1} parent=1 // pred_check
      _
    $region11: #{tpu_custom_call.1} parent=1 // pred_check_branch
      %34 = sbr.rel (0) target = $region13
    $region12: #{tpu_custom_call.1} parent=1 // pred_region
      _
    $region13: #{tpu_custom_call.1} parent=1 // pred_fallthru
      _
    // Predicated region
    $region14: #{tpu_custom_call.1} parent=1 // pred_check
      _
    $region15: #{tpu_custom_call.1} parent=1 // pred_check_branch
      %36 = sbr.rel (0) target = $region17
    $region16: #{tpu_custom_call.1} parent=1 // pred_region
      _
    $region17: #{tpu_custom_call.1} parent=1 // pred_fallthru
      _
    // Predicated region
    $region18: #{tpu_custom_call.1} parent=1 // pred_check
      _
    $region19: #{tpu_custom_call.1} parent=1 // pred_check_branch
      %38 = sbr.rel (0) target = $region21
    $region20: #{tpu_custom_call.1} parent=1 // pred_region
      %s40 = ssub.s32 4096, 4096
      %41 = vsyncadd [#allocation7], %s40
      %s42 = sshll.u32 [#allocation6], 4
      %s43 = int_to_ptr.vmem [resolvable:$true] %s42
      %48 = dma.hbm_to_vmem [thread:$0]  %s4, 4096, %s43, [#allocation7], 256, 256, 16
    $region21: #{tpu_custom_call.1} parent=1 // pred_fallthru
      _
    // Predicated region
    $region22: #{tpu_custom_call.1} parent=1 // pred_check
      _
    $region23: #{tpu_custom_call.1} parent=1 // pred_check_branch
      %50 = sbr.rel (0) target = $region25
    $region24: #{tpu_custom_call.1} parent=1 // pred_region
      _
    $region25: #{tpu_custom_call.1} parent=1 // pred_fallthru
      _
    // Predicated region
    $region26: #{tpu_custom_call.1} parent=1 // pred_check
      _
    $region27: #{tpu_custom_call.1} parent=1 // pred_check_branch
      %52 = sbr.rel (0) target = $region29
    $region28: #{tpu_custom_call.1} parent=1 // pred_region
      %s54 = ssub.s32 4096, 4096
      %55 = vsyncadd [#allocation7], %s54
      %s56 = sshll.u32 [#allocation8], 4
      %s57 = int_to_ptr.vmem [resolvable:$true] %s56
      %62 = dma.hbm_to_vmem [thread:$0]  %s6, 4096, %s57, [#allocation7], 256, 256, 16
    $region29: #{tpu_custom_call.1} parent=1 // pred_fallthru
      _
    // Predicated region
    $region30: #{tpu_custom_call.1} parent=1 // pred_check
      _
    $region31: #{tpu_custom_call.1} parent=1 // pred_check_branch
      %64 = sbr.rel (0) target = $region33
    $region32: #{tpu_custom_call.1} parent=1 // pred_region
      _
    $region33: #{tpu_custom_call.1} parent=1 // pred_fallthru
      _
    // Predicated region
    $region34: #{tpu_custom_call.1} parent=1 // pred_check
      _
    $region35: #{tpu_custom_call.1} parent=1 // pred_check_branch
      %66 = sbr.rel (0) target = $region37
    $region36: #{tpu_custom_call.1} parent=1 // pred_region
      _
    $region37: #{tpu_custom_call.1} parent=1 // pred_fallthru
      _
    // Predicated region
    $region38: #{tpu_custom_call.1} parent=1 // pred_check
      _
    $region39: #{tpu_custom_call.1} parent=1 // pred_check_branch
      %68 = sbr.rel (0) target = $region41
    $region40: #{tpu_custom_call.1} parent=1 // pred_region
      _
    $region41: #{tpu_custom_call.1} parent=1 // pred_fallthru
      _
    // Predicated region
    $region42: #{tpu_custom_call.1} parent=1 // pred_check
      _
    $region43: #{tpu_custom_call.1} parent=1 // pred_check_branch
      %70 = sbr.rel (0) target = $region45
    $region44: #{tpu_custom_call.1} parent=1 // pred_region
      %71 = dma.done [#allocation5], 512
    $region45: #{tpu_custom_call.1} parent=1 // pred_fallthru
      _
    // Predicated region
    $region46: #{tpu_custom_call.1} parent=1 // pred_check
      _
    $region47: #{tpu_custom_call.1} parent=1 // pred_check_branch
      %73 = sbr.rel (0) target = $region49
    $region48: #{tpu_custom_call.1} parent=1 // pred_region
      %74 = dma.done [#allocation7], 4096
    $region49: #{tpu_custom_call.1} parent=1 // pred_fallthru
      _
    // Predicated region
    $region50: #{tpu_custom_call.1} parent=1 // pred_check
      _
    $region51: #{tpu_custom_call.1} parent=1 // pred_check_branch
      %76 = sbr.rel (0) target = $region53
    $region52: #{tpu_custom_call.1} parent=1 // pred_region
      %77 = dma.done [#allocation7], 4096
    $region53: #{tpu_custom_call.1} parent=1 // pred_fallthru
      _
    %v78 = vld [vmem:[%s0] sm:$0xff]
    %v79 = vld [vmem:[%s0 + $0x8] sm:$0xff]
    %v80 = vld [vmem:[%s0 + $0x10] sm:$0xff]
    %v81 = vld [vmem:[%s0 + $0x18] sm:$0xff]
    %v82 = vld [vmem:[%s0 + $0x20] sm:$0xff]
    %v83 = vld [vmem:[%s0 + $0x28] sm:$0xff]
    %v84 = vld [vmem:[%s0 + $0x30] sm:$0xff]
    %v85 = vld [vmem:[%s0 + $0x38] sm:$0xff]
    %v86 = vld [vmem:[#allocation4] sm:$0xff]
    %v87 = vld [vmem:[#allocation4 + $0x8] sm:$0xff]
    %v88 = vld [vmem:[#allocation4 + $0x10] sm:$0xff]
    %v89 = vld [vmem:[#allocation4 + $0x18] sm:$0xff]
    %v90 = vld [vmem:[%s3] sm:$0x3]
    %v92 = vlaneseq
    %v93 = vshrl.u32 %v92, 7
    %v94 = vsub.s32 0, %v93
    %v95 = vrot.slane %v90, %v94
    %v96 = vlaneseq
    %v97 = vshrl.u32 %v96, 7
    %v98 = vsub.s32 1, %v97
    %v99 = vrot.slane %v90, %v98
    %vm102 = vcmask 130048
    %v104 = vsel %vm102, %v78, 0
    %v107 = vsel %vm102, %v79, 0
    %v110 = vsel %vm102, %v80, 0
    %v113 = vsel %vm102, %v81, 0
    %v116 = vsel %vm102, %v82, 0
    %v119 = vsel %vm102, %v83, 0
    %v122 = vsel %vm102, %v84, 0
    %v125 = vsel %vm102, %v85, 0
    %127 = vmatprep.subr.mxu0 %v87
    %128 = vmatpush1.msra.mxu0 %v86
    %129 = vmatprep.subr.mxu0 %v89
    %130 = vmatpush1.msra.mxu0 %v88
    %131 = vmatprep.subr.mxu0 0.0
    %132 = vmatpush1.msra.mxu0 0.0
    %133 = vmatprep.subr.mxu0 0.0
    %134 = vmatpush1.msra.mxu0 0.0
    %135 = vmatprep.subr.mxu0 0.0
    %136 = vmatpush1.msra.mxu0 0.0
    %137 = vmatprep.subr.mxu0 0.0
    %138 = vmatpush1.msra.mxu0 0.0
    %139 = vmatprep.subr.mxu0 0.0
    %140 = vmatpush1.msra.mxu0 0.0
    %141 = vmatprep.subr.mxu0 0.0
    %142 = vmatpush1.msra.mxu0 0.0
    %143 = vmatprep.subr.mxu0 0.0
    %144 = vmatpush1.msra.mxu0 0.0
    %145 = vmatprep.subr.mxu0 0.0
    %146 = vmatpush1.msra.mxu0 0.0
    %147 = vmatprep.subr.mxu0 0.0
    %148 = vmatpush1.msra.mxu0 0.0
    %149 = vmatprep.subr.mxu0 0.0
    %150 = vmatpush1.msra.mxu0 0.0
    %151 = vmatprep.subr.mxu0 0.0
    %152 = vmatpush1.msra.mxu0 0.0
    %153 = vmatprep.subr.mxu0 0.0
    %154 = vmatpush1.msra.mxu0 0.0
    %155 = vmatprep.subr.mxu0 0.0
    %156 = vmatpush1.msra.mxu0 0.0
    %157 = vmatprep.subr.mxu0 0.0
    %158 = vmatpush1.msra.mxu0 0.0
    %159 = vmatprep.subr.mxu0 0.0
    %160 = vmatpush1.msra.mxu0 0.0
    %161 = vmatprep.subr.mxu0 0.0
    %162 = vmatpush1.msra.mxu0 0.0
    %163 = vmatprep.subr.mxu0 0.0
    %164 = vmatpush1.msra.mxu0 0.0
    %165 = vmatprep.subr.mxu0 0.0
    %166 = vmatpush1.msra.mxu0 0.0
    %167 = vmatprep.subr.mxu0 0.0
    %168 = vmatpush1.msra.mxu0 0.0
    %169 = vmatprep.subr.mxu0 0.0
    %170 = vmatpush1.msra.mxu0 0.0
    %171 = vmatprep.subr.mxu0 0.0
    %172 = vmatpush1.msra.mxu0 0.0
    %173 = vmatprep.subr.mxu0 0.0
    %174 = vmatpush1.msra.mxu0 0.0
    %175 = vmatprep.subr.mxu0 0.0
    %176 = vmatpush1.msra.mxu0 0.0
    %177 = vmatprep.subr.mxu0 0.0
    %178 = vmatpush1.msra.mxu0 0.0
    %179 = vmatprep.subr.mxu0 0.0
    %180 = vmatpush1.msra.mxu0 0.0
    %181 = vmatprep.subr.mxu0 0.0
    %182 = vmatpush1.msra.mxu0 0.0
    %183 = vmatprep.subr.mxu0 0.0
    %184 = vmatpush1.msra.mxu0 0.0
    %185 = vmatprep.subr.mxu0 0.0
    %186 = vmatpush1.msra.mxu0 0.0
    %187 = vmatprep.subr.mxu0 0.0
    %188 = vmatpush1.msra.mxu0 0.0
    %189 = vmatprep.subr.mxu0 0.0
    %190 = vmatpush1.msra.mxu0 0.0
    %191 = vmatprep.mubr.f32.mxu0 0.0
    %192 = vmatmul.mubr.f32.gmra.mrb[0].mxu0 %v104
    %v193 = vpop.f32.mrb[0].mxu0
    %v194 = vadd.f32 %v95, %v193
    %v195 = vpop.f32.mrb[0].mxu0
    %v196 = vadd.f32 %v99, %v195
    %197 = vmatprep.mubr.f32.mxu0 0.0
    %198 = vmatmul.mubr.f32.gmra.mrb[0].mxu0 %v107
    %v199 = vpop.f32.mrb[0].mxu0
    %v200 = vadd.f32 %v95, %v199
    %v201 = vpop.f32.mrb[0].mxu0
    %v202 = vadd.f32 %v99, %v201
    %203 = vmatprep.mubr.f32.mxu0 0.0
    %204 = vmatmul.mubr.f32.gmra.mrb[0].mxu0 %v110
    %v205 = vpop.f32.mrb[0].mxu0
    %v206 = vadd.f32 %v95, %v205
    %v207 = vpop.f32.mrb[0].mxu0
    %v208 = vadd.f32 %v99, %v207
    %209 = vmatprep.mubr.f32.mxu0 0.0
    %210 = vmatmul.mubr.f32.gmra.mrb[0].mxu0 %v113
    %v211 = vpop.f32.mrb[0].mxu0
    %v212 = vadd.f32 %v95, %v211
    %v213 = vpop.f32.mrb[0].mxu0
    %v214 = vadd.f32 %v99, %v213
    %215 = vmatprep.mubr.f32.mxu0 0.0
    %216 = vmatmul.mubr.f32.gmra.mrb[0].mxu0 %v116
    %v217 = vpop.f32.mrb[0].mxu0
    %v218 = vadd.f32 %v95, %v217
    %v219 = vpop.f32.mrb[0].mxu0
    %v220 = vadd.f32 %v99, %v219
    %221 = vmatprep.mubr.f32.mxu0 0.0
    %222 = vmatmul.mubr.f32.gmra.mrb[0].mxu0 %v119
    %v223 = vpop.f32.mrb[0].mxu0
    %v224 = vadd.f32 %v95, %v223
    %v225 = vpop.f32.mrb[0].mxu0
    %v226 = vadd.f32 %v99, %v225
    %227 = vmatprep.mubr.f32.mxu0 0.0
    %228 = vmatmul.mubr.f32.gmra.mrb[0].mxu0 %v122
    %v229 = vpop.f32.mrb[0].mxu0
    %v230 = vadd.f32 %v95, %v229
    %v231 = vpop.f32.mrb[0].mxu0
    %v232 = vadd.f32 %v99, %v231
    %233 = vmatprep.mubr.f32.mxu0 0.0
    %234 = vmatmul.mubr.f32.gmra.mrb[0].mxu0 %v125
    %v235 = vpop.f32.mrb[0].mxu0
    %v236 = vadd.f32 %v95, %v235
    %v237 = vpop.f32.mrb[0].mxu0
    %v238 = vadd.f32 %v99, %v237
    %239 = vdwg.mxu0
    %240 = vst [vmem:[#allocation2] sm:$0xff] %v194
    %241 = vst [vmem:[#allocation2 + $0x8] sm:$0xff] %v196
    %242 = vst [vmem:[#allocation2 + $0x10] sm:$0xff] %v200
    %243 = vst [vmem:[#allocation2 + $0x18] sm:$0xff] %v202
    %244 = vst [vmem:[#allocation2 + $0x20] sm:$0xff] %v206
    %245 = vst [vmem:[#allocation2 + $0x28] sm:$0xff] %v208
    %246 = vst [vmem:[#allocation2 + $0x30] sm:$0xff] %v212
    %247 = vst [vmem:[#allocation2 + $0x38] sm:$0xff] %v214
    %248 = vst [vmem:[#allocation2 + $0x40] sm:$0xff] %v218
    %249 = vst [vmem:[#allocation2 + $0x48] sm:$0xff] %v220
    %250 = vst [vmem:[#allocation2 + $0x50] sm:$0xff] %v224
    %251 = vst [vmem:[#allocation2 + $0x58] sm:$0xff] %v226
    %252 = vst [vmem:[#allocation2 + $0x60] sm:$0xff] %v230
    %253 = vst [vmem:[#allocation2 + $0x68] sm:$0xff] %v232
    %254 = vst [vmem:[#allocation2 + $0x70] sm:$0xff] %v236
    %255 = vst [vmem:[#allocation2 + $0x78] sm:$0xff] %v238
    %v256 = vld [vmem:[%s2] sm:$0xff]
    %v257 = vld [vmem:[%s2 + $0x8] sm:$0xff]
    %v258 = vld [vmem:[%s2 + $0x10] sm:$0xff]
    %v259 = vld [vmem:[%s2 + $0x18] sm:$0xff]
    %v260 = vld [vmem:[%s2 + $0x20] sm:$0xff]
    %v261 = vld [vmem:[%s2 + $0x28] sm:$0xff]
    %v262 = vld [vmem:[%s2 + $0x30] sm:$0xff]
    %v263 = vld [vmem:[%s2 + $0x38] sm:$0xff]
    %v264 = vld [vmem:[%s2 + $0x40] sm:$0xff]
    %v265 = vld [vmem:[%s2 + $0x48] sm:$0xff]
    %v266 = vld [vmem:[%s2 + $0x50] sm:$0xff]
    %v267 = vld [vmem:[%s2 + $0x58] sm:$0xff]
    %v268 = vld [vmem:[%s2 + $0x60] sm:$0xff]
    %v269 = vld [vmem:[%s2 + $0x68] sm:$0xff]
    %v270 = vld [vmem:[%s2 + $0x70] sm:$0xff]
    %v271 = vld [vmem:[%s2 + $0x78] sm:$0xff]
    %v272 = vld [vmem:[#allocation6] sm:$0xff]
    %v273 = vld [vmem:[#allocation6 + $0x8] sm:$0xff]
    %v274 = vld [vmem:[#allocation6 + $0x10] sm:$0xff]
    %v275 = vld [vmem:[#allocation6 + $0x18] sm:$0xff]
    %v276 = vld [vmem:[#allocation6 + $0x20] sm:$0xff]
    %v277 = vld [vmem:[#allocation6 + $0x28] sm:$0xff]
    %v278 = vld [vmem:[#allocation6 + $0x30] sm:$0xff]
    %v279 = vld [vmem:[#allocation6 + $0x38] sm:$0xff]
    %v280 = vld [vmem:[#allocation6 + $0x40] sm:$0xff]
    %v281 = vld [vmem:[#allocation6 + $0x48] sm:$0xff]
    %v282 = vld [vmem:[#allocation6 + $0x50] sm:$0xff]
    %v283 = vld [vmem:[#allocation6 + $0x58] sm:$0xff]
    %v284 = vld [vmem:[#allocation6 + $0x60] sm:$0xff]
    %v285 = vld [vmem:[#allocation6 + $0x68] sm:$0xff]
    %v286 = vld [vmem:[#allocation6 + $0x70] sm:$0xff]
    %v287 = vld [vmem:[#allocation6 + $0x78] sm:$0xff]
    %v288 = vld [vmem:[#allocation6 + $0x80] sm:$0xff]
    %v289 = vld [vmem:[#allocation6 + $0x88] sm:$0xff]
    %v290 = vld [vmem:[#allocation6 + $0x90] sm:$0xff]
    %v291 = vld [vmem:[#allocation6 + $0x98] sm:$0xff]
    %v292 = vld [vmem:[#allocation6 + $0xa0] sm:$0xff]
    %v293 = vld [vmem:[#allocation6 + $0xa8] sm:$0xff]
    %v294 = vld [vmem:[#allocation6 + $0xb0] sm:$0xff]
    %v295 = vld [vmem:[#allocation6 + $0xb8] sm:$0xff]
    %v296 = vld [vmem:[#allocation6 + $0xc0] sm:$0xff]
    %v297 = vld [vmem:[#allocation6 + $0xc8] sm:$0xff]
    %v298 = vld [vmem:[#allocation6 + $0xd0] sm:$0xff]
    %v299 = vld [vmem:[#allocation6 + $0xd8] sm:$0xff]
    %v300 = vld [vmem:[#allocation6 + $0xe0] sm:$0xff]
    %v301 = vld [vmem:[#allocation6 + $0xe8] sm:$0xff]
    %v302 = vld [vmem:[#allocation6 + $0xf0] sm:$0xff]
    %v303 = vld [vmem:[#allocation6 + $0xf8] sm:$0xff]
    %v304 = vld [vmem:[#allocation8] sm:$0xff]
    %v305 = vld [vmem:[#allocation8 + $0x8] sm:$0xff]
    %v306 = vld [vmem:[#allocation8 + $0x10] sm:$0xff]
    %v307 = vld [vmem:[#allocation8 + $0x18] sm:$0xff]
    %v308 = vld [vmem:[#allocation8 + $0x20] sm:$0xff]
    %v309 = vld [vmem:[#allocation8 + $0x28] sm:$0xff]
    %v310 = vld [vmem:[#allocation8 + $0x30] sm:$0xff]
    %v311 = vld [vmem:[#allocation8 + $0x38] sm:$0xff]
    %v312 = vld [vmem:[#allocation8 + $0x40] sm:$0xff]
    %v313 = vld [vmem:[#allocation8 + $0x48] sm:$0xff]
    %v314 = vld [vmem:[#allocation8 + $0x50] sm:$0xff]
    %v315 = vld [vmem:[#allocation8 + $0x58] sm:$0xff]
    %v316 = vld [vmem:[#allocation8 + $0x60] sm:$0xff]
    %v317 = vld [vmem:[#allocation8 + $0x68] sm:$0xff]
    %v318 = vld [vmem:[#allocation8 + $0x70] sm:$0xff]
    %v319 = vld [vmem:[#allocation8 + $0x78] sm:$0xff]
    %v320 = vld [vmem:[#allocation8 + $0x80] sm:$0xff]
    %v321 = vld [vmem:[#allocation8 + $0x88] sm:$0xff]
    %v322 = vld [vmem:[#allocation8 + $0x90] sm:$0xff]
    %v323 = vld [vmem:[#allocation8 + $0x98] sm:$0xff]
    %v324 = vld [vmem:[#allocation8 + $0xa0] sm:$0xff]
    %v325 = vld [vmem:[#allocation8 + $0xa8] sm:$0xff]
    %v326 = vld [vmem:[#allocation8 + $0xb0] sm:$0xff]
    %v327 = vld [vmem:[#allocation8 + $0xb8] sm:$0xff]
    %v328 = vld [vmem:[#allocation8 + $0xc0] sm:$0xff]
    %v329 = vld [vmem:[#allocation8 + $0xc8] sm:$0xff]
    %v330 = vld [vmem:[#allocation8 + $0xd0] sm:$0xff]
    %v331 = vld [vmem:[#allocation8 + $0xd8] sm:$0xff]
    %v332 = vld [vmem:[#allocation8 + $0xe0] sm:$0xff]
    %v333 = vld [vmem:[#allocation8 + $0xe8] sm:$0xff]
    %v334 = vld [vmem:[#allocation8 + $0xf0] sm:$0xff]
    %v335 = vld [vmem:[#allocation8 + $0xf8] sm:$0xff]
    %v336 = vld [vmem:[%s5] sm:$0x3]
    %v338 = vlaneseq
    %v339 = vshrl.u32 %v338, 7
    %v340 = vsub.s32 0, %v339
    %v341 = vrot.slane %v336, %v340
    %v342 = vlaneseq
    %v343 = vshrl.u32 %v342, 7
    %v344 = vsub.s32 1, %v343
    %v345 = vrot.slane %v336, %v344
    %v348 = vld [vmem:[%s7] sm:$0x3]
    %v350 = vlaneseq
    %v351 = vshrl.u32 %v350, 7
    %v352 = vsub.s32 0, %v351
    %v353 = vrot.slane %v348, %v352
    %v354 = vlaneseq
    %v355 = vshrl.u32 %v354, 7
    %v356 = vsub.s32 1, %v355
    %v357 = vrot.slane %v348, %v356
    %v360 = vld [vmem:[#allocation2] sm:$0xff]
    %v361 = vld [vmem:[#allocation2 + $0x8] sm:$0xff]
    %vm362 = vcmask 523264
    %v364 = vsel %vm362, 0.0, 0
    %366 = vmatprep.subr.mxu0 %v257
    %367 = vmatpush1.msra.mxu0 %v256
    %368 = vmatprep.subr.mxu0 %v259
    %369 = vmatpush1.msra.mxu0 %v258
    %370 = vmatprep.subr.mxu0 %v261
    %371 = vmatpush1.msra.mxu0 %v260
    %372 = vmatprep.subr.mxu0 %v263
    %373 = vmatpush1.msra.mxu0 %v262
    %374 = vmatprep.subr.mxu0 %v265
    %375 = vmatpush1.msra.mxu0 %v264
    %376 = vmatprep.subr.mxu0 %v267
    %377 = vmatpush1.msra.mxu0 %v266
    %378 = vmatprep.subr.mxu0 %v269
    %379 = vmatpush1.msra.mxu0 %v268
    %380 = vmatprep.subr.mxu0 %v271
    %381 = vmatpush1.msra.mxu0 %v270
    %382 = vmatprep.subr.mxu0 0.0
    %383 = vmatpush1.msra.mxu0 0.0
    %384 = vmatprep.subr.mxu0 0.0
    %385 = vmatpush1.msra.mxu0 0.0
    %386 = vmatprep.subr.mxu0 0.0
    %387 = vmatpush1.msra.mxu0 0.0
    %388 = vmatprep.subr.mxu0 0.0
    %389 = vmatpush1.msra.mxu0 0.0
    %390 = vmatprep.subr.mxu0 0.0
    %391 = vmatpush1.msra.mxu0 0.0
    %392 = vmatprep.subr.mxu0 0.0
    %393 = vmatpush1.msra.mxu0 0.0
    %394 = vmatprep.subr.mxu0 0.0
    %395 = vmatpush1.msra.mxu0 0.0
    %396 = vmatprep.subr.mxu0 0.0
    %397 = vmatpush1.msra.mxu0 0.0
    %398 = vmatprep.subr.mxu0 0.0
    %399 = vmatpush1.msra.mxu0 0.0
    %400 = vmatprep.subr.mxu0 0.0
    %401 = vmatpush1.msra.mxu0 0.0
    %402 = vmatprep.subr.mxu0 0.0
    %403 = vmatpush1.msra.mxu0 0.0
    %404 = vmatprep.subr.mxu0 0.0
    %405 = vmatpush1.msra.mxu0 0.0
    %406 = vmatprep.subr.mxu0 0.0
    %407 = vmatpush1.msra.mxu0 0.0
    %408 = vmatprep.subr.mxu0 0.0
    %409 = vmatpush1.msra.mxu0 0.0
    %410 = vmatprep.subr.mxu0 0.0
    %411 = vmatpush1.msra.mxu0 0.0
    %412 = vmatprep.subr.mxu0 0.0
    %413 = vmatpush1.msra.mxu0 0.0
    %414 = vmatprep.subr.mxu0 0.0
    %415 = vmatpush1.msra.mxu0 0.0
    %416 = vmatprep.subr.mxu0 0.0
    %417 = vmatpush1.msra.mxu0 0.0
    %418 = vmatprep.subr.mxu0 0.0
    %419 = vmatpush1.msra.mxu0 0.0
    %420 = vmatprep.subr.mxu0 0.0
    %421 = vmatpush1.msra.mxu0 0.0
    %422 = vmatprep.subr.mxu0 0.0
    %423 = vmatpush1.msra.mxu0 0.0
    %424 = vmatprep.subr.mxu0 0.0
    %425 = vmatpush1.msra.mxu0 0.0
    %426 = vmatprep.subr.mxu0 0.0
    %427 = vmatpush1.msra.mxu0 0.0
    %428 = vmatprep.subr.mxu0 0.0
    %429 = vmatpush1.msra.mxu0 0.0
    %430 = vmatprep.mubr.f32.mxu0 0.0
    %431 = vmatmul.mubr.f32.gmra.mrb[0].mxu0 %v364
    %v432 = vpop.f32.mrb[0].mxu0
    %v433 = vadd.f32 0.0, %v432
    %v434 = vpop.f32.mrb[0].mxu0
    %v435 = vadd.f32 0.0, %v434
    %436 = vdwg.mxu0
    %v437 = vadd.f32 %v360, %v433
    %v438 = vadd.f32 %v361, %v435
    %v439 = vxor.u32 %v437, 2147483648
    %v440 = vxor.u32 %v438, 2147483648
    %v441 = vmul.f32 %v439, 1.442695
    %v442 = vpow.pop %v441
    %v443 = vmul.f32 %v440, 1.442695
    %v444 = vpow.pop %v443
    %v445 = vadd.f32 %v442, 1.0
    %v446 = vadd.f32 %v444, 1.0
    %v447 = vrcp.pop %v445
    %v448 = vmul.f32 1.0, %v447
    %v449 = vrcp.pop %v446
    %v450 = vmul.f32 1.0, %v449
    %v451 = vtanh.pop %v438
    %v452 = vmul.f32 %v448, 0.0
    %v453 = vmul.f32 %v448, %v451
    %455 = vrot.lane.b32.xlu0 %v453, 64
    %v456 = vpop.permute.xlu0 %455
    %v458 = vadd.f32 %v452, %v456
    %v459 = vtanh.pop %v458
    %v460 = vmul.f32 %v450, %v459
    %v461 = vld [vmem:[#allocation2 + $0x10] sm:$0xff]
    %v462 = vld [vmem:[#allocation2 + $0x18] sm:$0xff]
    %464 = vrot.lane.b32.xlu0 %v460, 64
    %v465 = vpop.permute.xlu0 %464
    %v466 = vsel %vm362, %v465, 0
    %468 = vmatprep.subr.mxu0 %v257
    %469 = vmatpush1.msra.mxu0 %v256
    %470 = vmatprep.subr.mxu0 %v259
    %471 = vmatpush1.msra.mxu0 %v258
    %472 = vmatprep.subr.mxu0 %v261
    %473 = vmatpush1.msra.mxu0 %v260
    %474 = vmatprep.subr.mxu0 %v263
    %475 = vmatpush1.msra.mxu0 %v262
    %476 = vmatprep.subr.mxu0 %v265
    %477 = vmatpush1.msra.mxu0 %v264
    %478 = vmatprep.subr.mxu0 %v267
    %479 = vmatpush1.msra.mxu0 %v266
    %480 = vmatprep.subr.mxu0 %v269
    %481 = vmatpush1.msra.mxu0 %v268
    %482 = vmatprep.subr.mxu0 %v271
    %483 = vmatpush1.msra.mxu0 %v270
    %484 = vmatprep.subr.mxu0 0.0
    %485 = vmatpush1.msra.mxu0 0.0
    %486 = vmatprep.subr.mxu0 0.0
    %487 = vmatpush1.msra.mxu0 0.0
    %488 = vmatprep.subr.mxu0 0.0
    %489 = vmatpush1.msra.mxu0 0.0
    %490 = vmatprep.subr.mxu0 0.0
    %491 = vmatpush1.msra.mxu0 0.0
    %492 = vmatprep.subr.mxu0 0.0
    %493 = vmatpush1.msra.mxu0 0.0
    %494 = vmatprep.subr.mxu0 0.0
    %495 = vmatpush1.msra.mxu0 0.0
    %496 = vmatprep.subr.mxu0 0.0
    %497 = vmatpush1.msra.mxu0 0.0
    %498 = vmatprep.subr.mxu0 0.0
    %499 = vmatpush1.msra.mxu0 0.0
    %500 = vmatprep.subr.mxu0 0.0
    %501 = vmatpush1.msra.mxu0 0.0
    %502 = vmatprep.subr.mxu0 0.0
    %503 = vmatpush1.msra.mxu0 0.0
    %504 = vmatprep.subr.mxu0 0.0
    %505 = vmatpush1.msra.mxu0 0.0
    %506 = vmatprep.subr.mxu0 0.0
    %507 = vmatpush1.msra.mxu0 0.0
    %508 = vmatprep.subr.mxu0 0.0
    %509 = vmatpush1.msra.mxu0 0.0
    %510 = vmatprep.subr.mxu0 0.0
    %511 = vmatpush1.msra.mxu0 0.0
    %512 = vmatprep.subr.mxu0 0.0
    %513 = vmatpush1.msra.mxu0 0.0
    %514 = vmatprep.subr.mxu0 0.0
    %515 = vmatpush1.msra.mxu0 0.0
    %516 = vmatprep.subr.mxu0 0.0
    %517 = vmatpush1.msra.mxu0 0.0
    %518 = vmatprep.subr.mxu0 0.0
    %519 = vmatpush1.msra.mxu0 0.0
    %520 = vmatprep.subr.mxu0 0.0
    %521 = vmatpush1.msra.mxu0 0.0
    %522 = vmatprep.subr.mxu0 0.0
    %523 = vmatpush1.msra.mxu0 0.0
    %524 = vmatprep.subr.mxu0 0.0
    %525 = vmatpush1.msra.mxu0 0.0
    %526 = vmatprep.subr.mxu0 0.0
    %527 = vmatpush1.msra.mxu0 0.0
    %528 = vmatprep.subr.mxu0 0.0
    %529 = vmatpush1.msra.mxu0 0.0
    %530 = vmatprep.subr.mxu0 0.0
    %531 = vmatpush1.msra.mxu0 0.0
    %532 = vmatprep.mubr.f32.mxu0 0.0
    %533 = vmatmul.mubr.f32.gmra.mrb[0].mxu0 %v466
    %v534 = vpop.f32.mrb[0].mxu0
    %v535 = vadd.f32 0.0, %v534
    %v536 = vpop.f32.mrb[0].mxu0
    %v537 = vadd.f32 0.0, %v536
    %538 = vdwg.mxu0
    %v539 = vadd.f32 %v461, %v535
    %v540 = vadd.f32 %v462, %v537
    %v542 = vsel %vm362, %v465, 0.0
    %543 = vmatprep.subr.mxu0 %v273
    %544 = vmatpush1.msra.mxu0 %v272
    %545 = vmatprep.subr.mxu0 %v275
    %546 = vmatpush1.msra.mxu0 %v274
    %547 = vmatprep.subr.mxu0 %v277
    %548 = vmatpush1.msra.mxu0 %v276
    %549 = vmatprep.subr.mxu0 %v279
    %550 = vmatpush1.msra.mxu0 %v278
    %551 = vmatprep.subr.mxu0 %v281
    %552 = vmatpush1.msra.mxu0 %v280
    %553 = vmatprep.subr.mxu0 %v283
    %554 = vmatpush1.msra.mxu0 %v282
    %555 = vmatprep.subr.mxu0 %v285
    %556 = vmatpush1.msra.mxu0 %v284
    %557 = vmatprep.subr.mxu0 %v287
    %558 = vmatpush1.msra.mxu0 %v286
    %559 = vmatprep.subr.mxu0 %v289
    %560 = vmatpush1.msra.mxu0 %v288
    %561 = vmatprep.subr.mxu0 %v291
    %562 = vmatpush1.msra.mxu0 %v290
    %563 = vmatprep.subr.mxu0 %v293
    %564 = vmatpush1.msra.mxu0 %v292
    %565 = vmatprep.subr.mxu0 %v295
    %566 = vmatpush1.msra.mxu0 %v294
    %567 = vmatprep.subr.mxu0 %v297
    %568 = vmatpush1.msra.mxu0 %v296
    %569 = vmatprep.subr.mxu0 %v299
    %570 = vmatpush1.msra.mxu0 %v298
    %571 = vmatprep.subr.mxu0 %v301
    %572 = vmatpush1.msra.mxu0 %v300
    %573 = vmatprep.subr.mxu0 %v303
    %574 = vmatpush1.msra.mxu0 %v302
    %575 = vmatprep.subr.mxu0 0.0
    %576 = vmatpush1.msra.mxu0 0.0
    %577 = vmatprep.subr.mxu0 0.0
    %578 = vmatpush1.msra.mxu0 0.0
    %579 = vmatprep.subr.mxu0 0.0
    %580 = vmatpush1.msra.mxu0 0.0
    %581 = vmatprep.subr.mxu0 0.0
    %582 = vmatpush1.msra.mxu0 0.0
    %583 = vmatprep.subr.mxu0 0.0
    %584 = vmatpush1.msra.mxu0 0.0
    %585 = vmatprep.subr.mxu0 0.0
    %586 = vmatpush1.msra.mxu0 0.0
    %587 = vmatprep.subr.mxu0 0.0
    %588 = vmatpush1.msra.mxu0 0.0
    %589 = vmatprep.subr.mxu0 0.0
    %590 = vmatpush1.msra.mxu0 0.0
    %591 = vmatprep.subr.mxu0 0.0
    %592 = vmatpush1.msra.mxu0 0.0
    %593 = vmatprep.subr.mxu0 0.0
    %594 = vmatpush1.msra.mxu0 0.0
    %595 = vmatprep.subr.mxu0 0.0
    %596 = vmatpush1.msra.mxu0 0.0
    %597 = vmatprep.subr.mxu0 0.0
    %598 = vmatpush1.msra.mxu0 0.0
    %599 = vmatprep.subr.mxu0 0.0
    %600 = vmatpush1.msra.mxu0 0.0
    %601 = vmatprep.subr.mxu0 0.0
    %602 = vmatpush1.msra.mxu0 0.0
    %603 = vmatprep.subr.mxu0 0.0
    %604 = vmatpush1.msra.mxu0 0.0
    %605 = vmatprep.subr.mxu0 0.0
    %606 = vmatpush1.msra.mxu0 0.0
    %607 = vmatprep.mubr.f32.mxu0 0.0
    %608 = vmatmul.mubr.f32.gmra.mrb[0].mxu0 %v542
    %v609 = vpop.f32.mrb[0].mxu0
    %v610 = vadd.f32 %v341, %v609
    %v611 = vpop.f32.mrb[0].mxu0
    %v612 = vadd.f32 %v345, %v611
    %613 = vdwg.mxu0
    %v614 = vxor.u32 %v539, 2147483648
    %v615 = vxor.u32 %v540, 2147483648
    %v616 = vmul.f32 %v614, 1.442695
    %v617 = vpow.pop %v616
    %v618 = vmul.f32 %v615, 1.442695
    %v619 = vpow.pop %v618
    %v620 = vadd.f32 %v617, 1.0
    %v621 = vadd.f32 %v619, 1.0
    %v622 = vrcp.pop %v620
    %v623 = vmul.f32 1.0, %v622
    %v624 = vrcp.pop %v621
    %v625 = vmul.f32 1.0, %v624
    %v626 = vtanh.pop %v540
    %v627 = vmul.f32 %v623, %v458
    %v628 = vmul.f32 %v623, %v626
    %630 = vrot.lane.b32.xlu0 %v628, 64
    %v631 = vpop.permute.xlu0 %630
    %v633 = vadd.f32 %v627, %v631
    %v634 = vtanh.pop %v633
    %v635 = vmul.f32 %v625, %v634
    %v636 = vxor.u32 %v610, 2147483648
    %v637 = vxor.u32 %v612, 2147483648
    %v638 = vmul.f32 %v636, 1.442695
    %v639 = vpow.pop %v638
    %v640 = vmul.f32 %v637, 1.442695
    %v641 = vpow.pop %v640
    %v642 = vadd.f32 %v639, 1.0
    %v643 = vadd.f32 %v641, 1.0
    %v644 = vrcp.pop %v642
    %v645 = vmul.f32 1.0, %v644
    %v646 = vrcp.pop %v643
    %v647 = vmul.f32 1.0, %v646
    %v648 = vtanh.pop %v612
    %v649 = vmul.f32 %v645, 0.0
    %v650 = vmul.f32 %v645, %v648
    %652 = vrot.lane.b32.xlu0 %v650, 64
    %v653 = vpop.permute.xlu0 %652
    %v655 = vadd.f32 %v649, %v653
    %v656 = vtanh.pop %v655
    %v657 = vmul.f32 %v647, %v656
    %v658 = vld [vmem:[#allocation2 + $0x20] sm:$0xff]
    %v659 = vld [vmem:[#allocation2 + $0x28] sm:$0xff]
    %661 = vrot.lane.b32.xlu0 %v635, 64
    %v662 = vpop.permute.xlu0 %661
    %v663 = vsel %vm362, %v662, 0
    %665 = vmatprep.subr.mxu0 %v257
    %666 = vmatpush1.msra.mxu0 %v256
    %667 = vmatprep.subr.mxu0 %v259
    %668 = vmatpush1.msra.mxu0 %v258
    %669 = vmatprep.subr.mxu0 %v261
    %670 = vmatpush1.msra.mxu0 %v260
    %671 = vmatprep.subr.mxu0 %v263
    %672 = vmatpush1.msra.mxu0 %v262
    %673 = vmatprep.subr.mxu0 %v265
    %674 = vmatpush1.msra.mxu0 %v264
    %675 = vmatprep.subr.mxu0 %v267
    %676 = vmatpush1.msra.mxu0 %v266
    %677 = vmatprep.subr.mxu0 %v269
    %678 = vmatpush1.msra.mxu0 %v268
    %679 = vmatprep.subr.mxu0 %v271
    %680 = vmatpush1.msra.mxu0 %v270
    %681 = vmatprep.subr.mxu0 0.0
    %682 = vmatpush1.msra.mxu0 0.0
    %683 = vmatprep.subr.mxu0 0.0
    %684 = vmatpush1.msra.mxu0 0.0
    %685 = vmatprep.subr.mxu0 0.0
    %686 = vmatpush1.msra.mxu0 0.0
    %687 = vmatprep.subr.mxu0 0.0
    %688 = vmatpush1.msra.mxu0 0.0
    %689 = vmatprep.subr.mxu0 0.0
    %690 = vmatpush1.msra.mxu0 0.0
    %691 = vmatprep.subr.mxu0 0.0
    %692 = vmatpush1.msra.mxu0 0.0
    %693 = vmatprep.subr.mxu0 0.0
    %694 = vmatpush1.msra.mxu0 0.0
    %695 = vmatprep.subr.mxu0 0.0
    %696 = vmatpush1.msra.mxu0 0.0
    %697 = vmatprep.subr.mxu0 0.0
    %698 = vmatpush1.msra.mxu0 0.0
    %699 = vmatprep.subr.mxu0 0.0
    %700 = vmatpush1.msra.mxu0 0.0
    %701 = vmatprep.subr.mxu0 0.0
    %702 = vmatpush1.msra.mxu0 0.0
    %703 = vmatprep.subr.mxu0 0.0
    %704 = vmatpush1.msra.mxu0 0.0
    %705 = vmatprep.subr.mxu0 0.0
    %706 = vmatpush1.msra.mxu0 0.0
    %707 = vmatprep.subr.mxu0 0.0
    %708 = vmatpush1.msra.mxu0 0.0
    %709 = vmatprep.subr.mxu0 0.0
    %710 = vmatpush1.msra.mxu0 0.0
    %711 = vmatprep.subr.mxu0 0.0
    %712 = vmatpush1.msra.mxu0 0.0
    %713 = vmatprep.subr.mxu0 0.0
    %714 = vmatpush1.msra.mxu0 0.0
    %715 = vmatprep.subr.mxu0 0.0
    %716 = vmatpush1.msra.mxu0 0.0
    %717 = vmatprep.subr.mxu0 0.0
    %718 = vmatpush1.msra.mxu0 0.0
    %719 = vmatprep.subr.mxu0 0.0
    %720 = vmatpush1.msra.mxu0 0.0
    %721 = vmatprep.subr.mxu0 0.0
    %722 = vmatpush1.msra.mxu0 0.0
    %723 = vmatprep.subr.mxu0 0.0
    %724 = vmatpush1.msra.mxu0 0.0
    %725 = vmatprep.subr.mxu0 0.0
    %726 = vmatpush1.msra.mxu0 0.0
    %727 = vmatprep.subr.mxu0 0.0
    %728 = vmatpush1.msra.mxu0 0.0
    %729 = vmatprep.mubr.f32.mxu0 0.0
    %730 = vmatmul.mubr.f32.gmra.mrb[0].mxu0 %v663
    %v731 = vpop.f32.mrb[0].mxu0
    %v732 = vadd.f32 0.0, %v731
    %v733 = vpop.f32.mrb[0].mxu0
    %v734 = vadd.f32 0.0, %v733
    %735 = vdwg.mxu0
    %v736 = vadd.f32 %v658, %v732
    %v737 = vadd.f32 %v659, %v734
    %v739 = vsel %vm362, %v662, %v657
    %740 = vmatprep.subr.mxu0 %v273
    %741 = vmatpush1.msra.mxu0 %v272
    %742 = vmatprep.subr.mxu0 %v275
    %743 = vmatpush1.msra.mxu0 %v274
    %744 = vmatprep.subr.mxu0 %v277
    %745 = vmatpush1.msra.mxu0 %v276
    %746 = vmatprep.subr.mxu0 %v279
    %747 = vmatpush1.msra.mxu0 %v278
    %748 = vmatprep.subr.mxu0 %v281
    %749 = vmatpush1.msra.mxu0 %v280
    %750 = vmatprep.subr.mxu0 %v283
    %751 = vmatpush1.msra.mxu0 %v282
    %752 = vmatprep.subr.mxu0 %v285
    %753 = vmatpush1.msra.mxu0 %v284
    %754 = vmatprep.subr.mxu0 %v287
    %755 = vmatpush1.msra.mxu0 %v286
    %756 = vmatprep.subr.mxu0 %v289
    %757 = vmatpush1.msra.mxu0 %v288
    %758 = vmatprep.subr.mxu0 %v291
    %759 = vmatpush1.msra.mxu0 %v290
    %760 = vmatprep.subr.mxu0 %v293
    %761 = vmatpush1.msra.mxu0 %v292
    %762 = vmatprep.subr.mxu0 %v295
    %763 = vmatpush1.msra.mxu0 %v294
    %764 = vmatprep.subr.mxu0 %v297
    %765 = vmatpush1.msra.mxu0 %v296
    %766 = vmatprep.subr.mxu0 %v299
    %767 = vmatpush1.msra.mxu0 %v298
    %768 = vmatprep.subr.mxu0 %v301
    %769 = vmatpush1.msra.mxu0 %v300
    %770 = vmatprep.subr.mxu0 %v303
    %771 = vmatpush1.msra.mxu0 %v302
    %772 = vmatprep.subr.mxu0 0.0
    %773 = vmatpush1.msra.mxu0 0.0
    %774 = vmatprep.subr.mxu0 0.0
    %775 = vmatpush1.msra.mxu0 0.0
    %776 = vmatprep.subr.mxu0 0.0
    %777 = vmatpush1.msra.mxu0 0.0
    %778 = vmatprep.subr.mxu0 0.0
    %779 = vmatpush1.msra.mxu0 0.0
    %780 = vmatprep.subr.mxu0 0.0
    %781 = vmatpush1.msra.mxu0 0.0
    %782 = vmatprep.subr.mxu0 0.0
    %783 = vmatpush1.msra.mxu0 0.0
    %784 = vmatprep.subr.mxu0 0.0
    %785 = vmatpush1.msra.mxu0 0.0
    %786 = vmatprep.subr.mxu0 0.0
    %787 = vmatpush1.msra.mxu0 0.0
    %788 = vmatprep.subr.mxu0 0.0
    %789 = vmatpush1.msra.mxu0 0.0
    %790 = vmatprep.subr.mxu0 0.0
    %791 = vmatpush1.msra.mxu0 0.0
    %792 = vmatprep.subr.mxu0 0.0
    %793 = vmatpush1.msra.mxu0 0.0
    %794 = vmatprep.subr.mxu0 0.0
    %795 = vmatpush1.msra.mxu0 0.0
    %796 = vmatprep.subr.mxu0 0.0
    %797 = vmatpush1.msra.mxu0 0.0
    %798 = vmatprep.subr.mxu0 0.0
    %799 = vmatpush1.msra.mxu0 0.0
    %800 = vmatprep.subr.mxu0 0.0
    %801 = vmatpush1.msra.mxu0 0.0
    %802 = vmatprep.subr.mxu0 0.0
    %803 = vmatpush1.msra.mxu0 0.0
    %804 = vmatprep.mubr.f32.mxu0 0.0
    %805 = vmatmul.mubr.f32.gmra.mrb[0].mxu0 %v739
    %v806 = vpop.f32.mrb[0].mxu0
    %v807 = vadd.f32 %v341, %v806
    %v808 = vpop.f32.mrb[0].mxu0
    %v809 = vadd.f32 %v345, %v808
    %810 = vdwg.mxu0
    %812 = vrot.lane.b32.xlu0 %v657, 64
    %v813 = vpop.permute.xlu0 %812
    %v815 = vsel %vm362, %v813, 0.0
    %816 = vmatprep.subr.mxu0 %v305
    %817 = vmatpush1.msra.mxu0 %v304
    %818 = vmatprep.subr.mxu0 %v307
    %819 = vmatpush1.msra.mxu0 %v306
    %820 = vmatprep.subr.mxu0 %v309
    %821 = vmatpush1.msra.mxu0 %v308
    %822 = vmatprep.subr.mxu0 %v311
    %823 = vmatpush1.msra.mxu0 %v310
    %824 = vmatprep.subr.mxu0 %v313
    %825 = vmatpush1.msra.mxu0 %v312
    %826 = vmatprep.subr.mxu0 %v315
    %827 = vmatpush1.msra.mxu0 %v314
    %828 = vmatprep.subr.mxu0 %v317
    %829 = vmatpush1.msra.mxu0 %v316
    %830 = vmatprep.subr.mxu0 %v319
    %831 = vmatpush1.msra.mxu0 %v318
    %832 = vmatprep.subr.mxu0 %v321
    %833 = vmatpush1.msra.mxu0 %v320
    %834 = vmatprep.subr.mxu0 %v323
    %835 = vmatpush1.msra.mxu0 %v322
    %836 = vmatprep.subr.mxu0 %v325
    %837 = vmatpush1.msra.mxu0 %v324
    %838 = vmatprep.subr.mxu0 %v327
    %839 = vmatpush1.msra.mxu0 %v326
    %840 = vmatprep.subr.mxu0 %v329
    %841 = vmatpush1.msra.mxu0 %v328
    %842 = vmatprep.subr.mxu0 %v331
    %843 = vmatpush1.msra.mxu0 %v330
    %844 = vmatprep.subr.mxu0 %v333
    %845 = vmatpush1.msra.mxu0 %v332
    %846 = vmatprep.subr.mxu0 %v335
    %847 = vmatpush1.msra.mxu0 %v334
    %848 = vmatprep.subr.mxu0 0.0
    %849 = vmatpush1.msra.mxu0 0.0
    %850 = vmatprep.subr.mxu0 0.0
    %851 = vmatpush1.msra.mxu0 0.0
    %852 = vmatprep.subr.mxu0 0.0
    %853 = vmatpush1.msra.mxu0 0.0
    %854 = vmatprep.subr.mxu0 0.0
    %855 = vmatpush1.msra.mxu0 0.0
    %856 = vmatprep.subr.mxu0 0.0
    %857 = vmatpush1.msra.mxu0 0.0
    %858 = vmatprep.subr.mxu0 0.0
    %859 = vmatpush1.msra.mxu0 0.0
    %860 = vmatprep.subr.mxu0 0.0
    %861 = vmatpush1.msra.mxu0 0.0
    %862 = vmatprep.subr.mxu0 0.0
    %863 = vmatpush1.msra.mxu0 0.0
    %864 = vmatprep.subr.mxu0 0.0
    %865 = vmatpush1.msra.mxu0 0.0
    %866 = vmatprep.subr.mxu0 0.0
    %867 = vmatpush1.msra.mxu0 0.0
    %868 = vmatprep.subr.mxu0 0.0
    %869 = vmatpush1.msra.mxu0 0.0
    %870 = vmatprep.subr.mxu0 0.0
    %871 = vmatpush1.msra.mxu0 0.0
    %872 = vmatprep.subr.mxu0 0.0
    %873 = vmatpush1.msra.mxu0 0.0
    %874 = vmatprep.subr.mxu0 0.0
    %875 = vmatpush1.msra.mxu0 0.0
    %876 = vmatprep.subr.mxu0 0.0
    %877 = vmatpush1.msra.mxu0 0.0
    %878 = vmatprep.subr.mxu0 0.0
    %879 = vmatpush1.msra.mxu0 0.0
    %880 = vmatprep.mubr.f32.mxu0 0.0
    %881 = vmatmul.mubr.f32.gmra.mrb[0].mxu0 %v815
    %v882 = vpop.f32.mrb[0].mxu0
    %v883 = vadd.f32 %v353, %v882
    %v884 = vpop.f32.mrb[0].mxu0
    %v885 = vadd.f32 %v357, %v884
    %886 = vdwg.mxu0
    %v887 = vxor.u32 %v736, 2147483648
    %v888 = vxor.u32 %v737, 2147483648
    %v889 = vmul.f32 %v887, 1.442695
    %v890 = vpow.pop %v889
    %v891 = vmul.f32 %v888, 1.442695
    %v892 = vpow.pop %v891
    %v893 = vadd.f32 %v890, 1.0
    %v894 = vadd.f32 %v892, 1.0
    %v895 = vrcp.pop %v893
    %v896 = vmul.f32 1.0, %v895
    %v897 = vrcp.pop %v894
    %v898 = vmul.f32 1.0, %v897
    %v899 = vtanh.pop %v737
    %v900 = vmul.f32 %v896, %v633
    %v901 = vmul.f32 %v896, %v899
    %903 = vrot.lane.b32.xlu0 %v901, 64
    %v904 = vpop.permute.xlu0 %903
    %v906 = vadd.f32 %v900, %v904
    %v907 = vtanh.pop %v906
    %v908 = vmul.f32 %v898, %v907
    %v909 = vxor.u32 %v807, 2147483648
    %v910 = vxor.u32 %v809, 2147483648
    %v911 = vmul.f32 %v909, 1.442695
    %v912 = vpow.pop %v911
    %v913 = vmul.f32 %v910, 1.442695
    %v914 = vpow.pop %v913
    %v915 = vadd.f32 %v912, 1.0
    %v916 = vadd.f32 %v914, 1.0
    %v917 = vrcp.pop %v915
    %v918 = vmul.f32 1.0, %v917
    %v919 = vrcp.pop %v916
    %v920 = vmul.f32 1.0, %v919
    %v921 = vtanh.pop %v809
    %v922 = vmul.f32 %v918, %v655
    %v923 = vmul.f32 %v918, %v921
    %925 = vrot.lane.b32.xlu0 %v923, 64
    %v926 = vpop.permute.xlu0 %925
    %v928 = vadd.f32 %v922, %v926
    %v929 = vtanh.pop %v928
    %v930 = vmul.f32 %v920, %v929
    %v931 = vxor.u32 %v883, 2147483648
    %v932 = vxor.u32 %v885, 2147483648
    %v933 = vmul.f32 %v931, 1.442695
    %v934 = vpow.pop %v933
    %v935 = vmul.f32 %v932, 1.442695
    %v936 = vpow.pop %v935
    %v937 = vadd.f32 %v934, 1.0
    %v938 = vadd.f32 %v936, 1.0
    %v939 = vrcp.pop %v937
    %v940 = vmul.f32 1.0, %v939
    %v941 = vrcp.pop %v938
    %v942 = vmul.f32 1.0, %v941
    %v943 = vtanh.pop %v885
    %v944 = vmul.f32 %v940, 0.0
    %v945 = vmul.f32 %v940, %v943
    %947 = vrot.lane.b32.xlu0 %v945, 64
    %v948 = vpop.permute.xlu0 %947
    %v950 = vadd.f32 %v944, %v948
    %v951 = vtanh.pop %v950
    %v952 = vmul.f32 %v942, %v951
    %v953 = vld [vmem:[#allocation2 + $0x30] sm:$0xff]
    %v954 = vld [vmem:[#allocation2 + $0x38] sm:$0xff]
    %956 = vrot.lane.b32.xlu0 %v908, 64
    %v957 = vpop.permute.xlu0 %956
    %v958 = vsel %vm362, %v957, 0
    %960 = vmatprep.subr.mxu0 %v257
    %961 = vmatpush1.msra.mxu0 %v256
    %962 = vmatprep.subr.mxu0 %v259
    %963 = vmatpush1.msra.mxu0 %v258
    %964 = vmatprep.subr.mxu0 %v261
    %965 = vmatpush1.msra.mxu0 %v260
    %966 = vmatprep.subr.mxu0 %v263
    %967 = vmatpush1.msra.mxu0 %v262
    %968 = vmatprep.subr.mxu0 %v265
    %969 = vmatpush1.msra.mxu0 %v264
    %970 = vmatprep.subr.mxu0 %v267
    %971 = vmatpush1.msra.mxu0 %v266
    %972 = vmatprep.subr.mxu0 %v269
    %973 = vmatpush1.msra.mxu0 %v268
    %974 = vmatprep.subr.mxu0 %v271
    %975 = vmatpush1.msra.mxu0 %v270
    %976 = vmatprep.subr.mxu0 0.0
    %977 = vmatpush1.msra.mxu0 0.0
    %978 = vmatprep.subr.mxu0 0.0
    %979 = vmatpush1.msra.mxu0 0.0
    %980 = vmatprep.subr.mxu0 0.0
    %981 = vmatpush1.msra.mxu0 0.0
    %982 = vmatprep.subr.mxu0 0.0
    %983 = vmatpush1.msra.mxu0 0.0
    %984 = vmatprep.subr.mxu0 0.0
    %985 = vmatpush1.msra.mxu0 0.0
    %986 = vmatprep.subr.mxu0 0.0
    %987 = vmatpush1.msra.mxu0 0.0
    %988 = vmatprep.subr.mxu0 0.0
    %989 = vmatpush1.msra.mxu0 0.0
    %990 = vmatprep.subr.mxu0 0.0
    %991 = vmatpush1.msra.mxu0 0.0
    %992 = vmatprep.subr.mxu0 0.0
    %993 = vmatpush1.msra.mxu0 0.0
    %994 = vmatprep.subr.mxu0 0.0
    %995 = vmatpush1.msra.mxu0 0.0
    %996 = vmatprep.subr.mxu0 0.0
    %997 = vmatpush1.msra.mxu0 0.0
    %998 = vmatprep.subr.mxu0 0.0
    %999 = vmatpush1.msra.mxu0 0.0
    %1000 = vmatprep.subr.mxu0 0.0
    %1001 = vmatpush1.msra.mxu0 0.0
    %1002 = vmatprep.subr.mxu0 0.0
    %1003 = vmatpush1.msra.mxu0 0.0
    %1004 = vmatprep.subr.mxu0 0.0
    %1005 = vmatpush1.msra.mxu0 0.0
    %1006 = vmatprep.subr.mxu0 0.0
    %1007 = vmatpush1.msra.mxu0 0.0
    %1008 = vmatprep.subr.mxu0 0.0
    %1009 = vmatpush1.msra.mxu0 0.0
    %1010 = vmatprep.subr.mxu0 0.0
    %1011 = vmatpush1.msra.mxu0 0.0
    %1012 = vmatprep.subr.mxu0 0.0
    %1013 = vmatpush1.msra.mxu0 0.0
    %1014 = vmatprep.subr.mxu0 0.0
    %1015 = vmatpush1.msra.mxu0 0.0
    %1016 = vmatprep.subr.mxu0 0.0
    %1017 = vmatpush1.msra.mxu0 0.0
    %1018 = vmatprep.subr.mxu0 0.0
    %1019 = vmatpush1.msra.mxu0 0.0
    %1020 = vmatprep.subr.mxu0 0.0
    %1021 = vmatpush1.msra.mxu0 0.0
    %1022 = vmatprep.subr.mxu0 0.0
    %1023 = vmatpush1.msra.mxu0 0.0
    %1024 = vmatprep.mubr.f32.mxu0 0.0
    %1025 = vmatmul.mubr.f32.gmra.mrb[0].mxu0 %v958
    %v1026 = vpop.f32.mrb[0].mxu0
    %v1027 = vadd.f32 0.0, %v1026
    %v1028 = vpop.f32.mrb[0].mxu0
    %v1029 = vadd.f32 0.0, %v1028
    %1030 = vdwg.mxu0
    %v1031 = vadd.f32 %v953, %v1027
    %v1032 = vadd.f32 %v954, %v1029
    %v1034 = vsel %vm362, %v957, %v930
    %1035 = vmatprep.subr.mxu0 %v273
    %1036 = vmatpush1.msra.mxu0 %v272
    %1037 = vmatprep.subr.mxu0 %v275
    %1038 = vmatpush1.msra.mxu0 %v274
    %1039 = vmatprep.subr.mxu0 %v277
    %1040 = vmatpush1.msra.mxu0 %v276
    %1041 = vmatprep.subr.mxu0 %v279
    %1042 = vmatpush1.msra.mxu0 %v278
    %1043 = vmatprep.subr.mxu0 %v281
    %1044 = vmatpush1.msra.mxu0 %v280
    %1045 = vmatprep.subr.mxu0 %v283
    %1046 = vmatpush1.msra.mxu0 %v282
    %1047 = vmatprep.subr.mxu0 %v285
    %1048 = vmatpush1.msra.mxu0 %v284
    %1049 = vmatprep.subr.mxu0 %v287
    %1050 = vmatpush1.msra.mxu0 %v286
    %1051 = vmatprep.subr.mxu0 %v289
    %1052 = vmatpush1.msra.mxu0 %v288
    %1053 = vmatprep.subr.mxu0 %v291
    %1054 = vmatpush1.msra.mxu0 %v290
    %1055 = vmatprep.subr.mxu0 %v293
    %1056 = vmatpush1.msra.mxu0 %v292
    %1057 = vmatprep.subr.mxu0 %v295
    %1058 = vmatpush1.msra.mxu0 %v294
    %1059 = vmatprep.subr.mxu0 %v297
    %1060 = vmatpush1.msra.mxu0 %v296
    %1061 = vmatprep.subr.mxu0 %v299
    %1062 = vmatpush1.msra.mxu0 %v298
    %1063 = vmatprep.subr.mxu0 %v301
    %1064 = vmatpush1.msra.mxu0 %v300
    %1065 = vmatprep.subr.mxu0 %v303
    %1066 = vmatpush1.msra.mxu0 %v302
    %1067 = vmatprep.subr.mxu0 0.0
    %1068 = vmatpush1.msra.mxu0 0.0
    %1069 = vmatprep.subr.mxu0 0.0
    %1070 = vmatpush1.msra.mxu0 0.0
    %1071 = vmatprep.subr.mxu0 0.0
    %1072 = vmatpush1.msra.mxu0 0.0
    %1073 = vmatprep.subr.mxu0 0.0
    %1074 = vmatpush1.msra.mxu0 0.0
    %1075 = vmatprep.subr.mxu0 0.0
    %1076 = vmatpush1.msra.mxu0 0.0
    %1077 = vmatprep.subr.mxu0 0.0
    %1078 = vmatpush1.msra.mxu0 0.0
    %1079 = vmatprep.subr.mxu0 0.0
    %1080 = vmatpush1.msra.mxu0 0.0
    %1081 = vmatprep.subr.mxu0 0.0
    %1082 = vmatpush1.msra.mxu0 0.0
    %1083 = vmatprep.subr.mxu0 0.0
    %1084 = vmatpush1.msra.mxu0 0.0
    %1085 = vmatprep.subr.mxu0 0.0
    %1086 = vmatpush1.msra.mxu0 0.0
    %1087 = vmatprep.subr.mxu0 0.0
    %1088 = vmatpush1.msra.mxu0 0.0
    %1089 = vmatprep.subr.mxu0 0.0
    %1090 = vmatpush1.msra.mxu0 0.0
    %1091 = vmatprep.subr.mxu0 0.0
    %1092 = vmatpush1.msra.mxu0 0.0
    %1093 = vmatprep.subr.mxu0 0.0
    %1094 = vmatpush1.msra.mxu0 0.0
    %1095 = vmatprep.subr.mxu0 0.0
    %1096 = vmatpush1.msra.mxu0 0.0
    %1097 = vmatprep.subr.mxu0 0.0
    %1098 = vmatpush1.msra.mxu0 0.0
    %1099 = vmatprep.mubr.f32.mxu0 0.0
    %1100 = vmatmul.mubr.f32.gmra.mrb[0].mxu0 %v1034
    %v1101 = vpop.f32.mrb[0].mxu0
    %v1102 = vadd.f32 %v341, %v1101
    %v1103 = vpop.f32.mrb[0].mxu0
    %v1104 = vadd.f32 %v345, %v1103
    %1105 = vdwg.mxu0
    %1107 = vrot.lane.b32.xlu0 %v930, 64
    %v1108 = vpop.permute.xlu0 %1107
    %v1110 = vsel %vm362, %v1108, %v952
    %1111 = vmatprep.subr.mxu0 %v305
    %1112 = vmatpush1.msra.mxu0 %v304
    %1113 = vmatprep.subr.mxu0 %v307
    %1114 = vmatpush1.msra.mxu0 %v306
    %1115 = vmatprep.subr.mxu0 %v309
    %1116 = vmatpush1.msra.mxu0 %v308
    %1117 = vmatprep.subr.mxu0 %v311
    %1118 = vmatpush1.msra.mxu0 %v310
    %1119 = vmatprep.subr.mxu0 %v313
    %1120 = vmatpush1.msra.mxu0 %v312
    %1121 = vmatprep.subr.mxu0 %v315
    %1122 = vmatpush1.msra.mxu0 %v314
    %1123 = vmatprep.subr.mxu0 %v317
    %1124 = vmatpush1.msra.mxu0 %v316
    %1125 = vmatprep.subr.mxu0 %v319
    %1126 = vmatpush1.msra.mxu0 %v318
    %1127 = vmatprep.subr.mxu0 %v321
    %1128 = vmatpush1.msra.mxu0 %v320
    %1129 = vmatprep.subr.mxu0 %v323
    %1130 = vmatpush1.msra.mxu0 %v322
    %1131 = vmatprep.subr.mxu0 %v325
    %1132 = vmatpush1.msra.mxu0 %v324
    %1133 = vmatprep.subr.mxu0 %v327
    %1134 = vmatpush1.msra.mxu0 %v326
    %1135 = vmatprep.subr.mxu0 %v329
    %1136 = vmatpush1.msra.mxu0 %v328
    %1137 = vmatprep.subr.mxu0 %v331
    %1138 = vmatpush1.msra.mxu0 %v330
    %1139 = vmatprep.subr.mxu0 %v333
    %1140 = vmatpush1.msra.mxu0 %v332
    %1141 = vmatprep.subr.mxu0 %v335
    %1142 = vmatpush1.msra.mxu0 %v334
    %1143 = vmatprep.subr.mxu0 0.0
    %1144 = vmatpush1.msra.mxu0 0.0
    %1145 = vmatprep.subr.mxu0 0.0
    %1146 = vmatpush1.msra.mxu0 0.0
    %1147 = vmatprep.subr.mxu0 0.0
    %1148 = vmatpush1.msra.mxu0 0.0
    %1149 = vmatprep.subr.mxu0 0.0
    %1150 = vmatpush1.msra.mxu0 0.0
    %1151 = vmatprep.subr.mxu0 0.0
    %1152 = vmatpush1.msra.mxu0 0.0
    %1153 = vmatprep.subr.mxu0 0.0
    %1154 = vmatpush1.msra.mxu0 0.0
    %1155 = vmatprep.subr.mxu0 0.0
    %1156 = vmatpush1.msra.mxu0 0.0
    %1157 = vmatprep.subr.mxu0 0.0
    %1158 = vmatpush1.msra.mxu0 0.0
    %1159 = vmatprep.subr.mxu0 0.0
    %1160 = vmatpush1.msra.mxu0 0.0
    %1161 = vmatprep.subr.mxu0 0.0
    %1162 = vmatpush1.msra.mxu0 0.0
    %1163 = vmatprep.subr.mxu0 0.0
    %1164 = vmatpush1.msra.mxu0 0.0
    %1165 = vmatprep.subr.mxu0 0.0
    %1166 = vmatpush1.msra.mxu0 0.0
    %1167 = vmatprep.subr.mxu0 0.0
    %1168 = vmatpush1.msra.mxu0 0.0
    %1169 = vmatprep.subr.mxu0 0.0
    %1170 = vmatpush1.msra.mxu0 0.0
    %1171 = vmatprep.subr.mxu0 0.0
    %1172 = vmatpush1.msra.mxu0 0.0
    %1173 = vmatprep.subr.mxu0 0.0
    %1174 = vmatpush1.msra.mxu0 0.0
    %1175 = vmatprep.mubr.f32.mxu0 0.0
    %1176 = vmatmul.mubr.f32.gmra.mrb[0].mxu0 %v1110
    %v1177 = vpop.f32.mrb[0].mxu0
    %v1178 = vadd.f32 %v353, %v1177
    %v1179 = vpop.f32.mrb[0].mxu0
    %v1180 = vadd.f32 %v357, %v1179
    %1181 = vdwg.mxu0
    %v1182 = vxor.u32 %v1031, 2147483648
    %v1183 = vxor.u32 %v1032, 2147483648
    %v1184 = vmul.f32 %v1182, 1.442695
    %v1185 = vpow.pop %v1184
    %v1186 = vmul.f32 %v1183, 1.442695
    %v1187 = vpow.pop %v1186
    %v1188 = vadd.f32 %v1185, 1.0
    %v1189 = vadd.f32 %v1187, 1.0
    %v1190 = vrcp.pop %v1188
    %v1191 = vmul.f32 1.0, %v1190
    %v1192 = vrcp.pop %v1189
    %v1193 = vmul.f32 1.0, %v1192
    %v1194 = vtanh.pop %v1032
    %v1195 = vmul.f32 %v1191, %v906
    %v1196 = vmul.f32 %v1191, %v1194
    %1198 = vrot.lane.b32.xlu0 %v1196, 64
    %v1199 = vpop.permute.xlu0 %1198
    %v1201 = vadd.f32 %v1195, %v1199
    %v1202 = vtanh.pop %v1201
    %v1203 = vmul.f32 %v1193, %v1202
    %v1204 = vxor.u32 %v1102, 2147483648
    %v1205 = vxor.u32 %v1104, 2147483648
    %v1206 = vmul.f32 %v1204, 1.442695
    %v1207 = vpow.pop %v1206
    %v1208 = vmul.f32 %v1205, 1.442695
    %v1209 = vpow.pop %v1208
    %v1210 = vadd.f32 %v1207, 1.0
    %v1211 = vadd.f32 %v1209, 1.0
    %v1212 = vrcp.pop %v1210
    %v1213 = vmul.f32 1.0, %v1212
    %v1214 = vrcp.pop %v1211
    %v1215 = vmul.f32 1.0, %v1214
    %v1216 = vtanh.pop %v1104
    %v1217 = vmul.f32 %v1213, %v928
    %v1218 = vmul.f32 %v1213, %v1216
    %1220 = vrot.lane.b32.xlu0 %v1218, 64
    %v1221 = vpop.permute.xlu0 %1220
    %v1223 = vadd.f32 %v1217, %v1221
    %v1224 = vtanh.pop %v1223
    %v1225 = vmul.f32 %v1215, %v1224
    %v1226 = vxor.u32 %v1178, 2147483648
    %v1227 = vxor.u32 %v1180, 2147483648
    %v1228 = vmul.f32 %v1226, 1.442695
    %v1229 = vpow.pop %v1228
    %v1230 = vmul.f32 %v1227, 1.442695
    %v1231 = vpow.pop %v1230
    %v1232 = vadd.f32 %v1229, 1.0
    %v1233 = vadd.f32 %v1231, 1.0
    %v1234 = vrcp.pop %v1232
    %v1235 = vmul.f32 1.0, %v1234
    %v1236 = vrcp.pop %v1233
    %v1237 = vmul.f32 1.0, %v1236
    %v1238 = vtanh.pop %v1180
    %v1239 = vmul.f32 %v1235, %v950
    %v1240 = vmul.f32 %v1235, %v1238
    %1242 = vrot.lane.b32.xlu0 %v1240, 64
    %v1243 = vpop.permute.xlu0 %1242
    %v1245 = vadd.f32 %v1239, %v1243
    %v1246 = vtanh.pop %v1245
    %v1247 = vmul.f32 %v1237, %v1246
    %v1248 = vld [vmem:[#allocation2 + $0x40] sm:$0xff]
    %v1249 = vld [vmem:[#allocation2 + $0x48] sm:$0xff]
    %1251 = vrot.lane.b32.xlu0 %v1203, 64
    %v1252 = vpop.permute.xlu0 %1251
    %v1253 = vsel %vm362, %v1252, 0
    %1255 = vmatprep.subr.mxu0 %v257
    %1256 = vmatpush1.msra.mxu0 %v256
    %1257 = vmatprep.subr.mxu0 %v259
    %1258 = vmatpush1.msra.mxu0 %v258
    %1259 = vmatprep.subr.mxu0 %v261
    %1260 = vmatpush1.msra.mxu0 %v260
    %1261 = vmatprep.subr.mxu0 %v263
    %1262 = vmatpush1.msra.mxu0 %v262
    %1263 = vmatprep.subr.mxu0 %v265
    %1264 = vmatpush1.msra.mxu0 %v264
    %1265 = vmatprep.subr.mxu0 %v267
    %1266 = vmatpush1.msra.mxu0 %v266
    %1267 = vmatprep.subr.mxu0 %v269
    %1268 = vmatpush1.msra.mxu0 %v268
    %1269 = vmatprep.subr.mxu0 %v271
    %1270 = vmatpush1.msra.mxu0 %v270
    %1271 = vmatprep.subr.mxu0 0.0
    %1272 = vmatpush1.msra.mxu0 0.0
    %1273 = vmatprep.subr.mxu0 0.0
    %1274 = vmatpush1.msra.mxu0 0.0
    %1275 = vmatprep.subr.mxu0 0.0
    %1276 = vmatpush1.msra.mxu0 0.0
    %1277 = vmatprep.subr.mxu0 0.0
    %1278 = vmatpush1.msra.mxu0 0.0
    %1279 = vmatprep.subr.mxu0 0.0
    %1280 = vmatpush1.msra.mxu0 0.0
    %1281 = vmatprep.subr.mxu0 0.0
    %1282 = vmatpush1.msra.mxu0 0.0
    %1283 = vmatprep.subr.mxu0 0.0
    %1284 = vmatpush1.msra.mxu0 0.0
    %1285 = vmatprep.subr.mxu0 0.0
    %1286 = vmatpush1.msra.mxu0 0.0
    %1287 = vmatprep.subr.mxu0 0.0
    %1288 = vmatpush1.msra.mxu0 0.0
    %1289 = vmatprep.subr.mxu0 0.0
    %1290 = vmatpush1.msra.mxu0 0.0
    %1291 = vmatprep.subr.mxu0 0.0
    %1292 = vmatpush1.msra.mxu0 0.0
    %1293 = vmatprep.subr.mxu0 0.0
    %1294 = vmatpush1.msra.mxu0 0.0
    %1295 = vmatprep.subr.mxu0 0.0
    %1296 = vmatpush1.msra.mxu0 0.0
    %1297 = vmatprep.subr.mxu0 0.0
    %1298 = vmatpush1.msra.mxu0 0.0
    %1299 = vmatprep.subr.mxu0 0.0
    %1300 = vmatpush1.msra.mxu0 0.0
    %1301 = vmatprep.subr.mxu0 0.0
    %1302 = vmatpush1.msra.mxu0 0.0
    %1303 = vmatprep.subr.mxu0 0.0
    %1304 = vmatpush1.msra.mxu0 0.0
    %1305 = vmatprep.subr.mxu0 0.0
    %1306 = vmatpush1.msra.mxu0 0.0
    %1307 = vmatprep.subr.mxu0 0.0
    %1308 = vmatpush1.msra.mxu0 0.0
    %1309 = vmatprep.subr.mxu0 0.0
    %1310 = vmatpush1.msra.mxu0 0.0
    %1311 = vmatprep.subr.mxu0 0.0
    %1312 = vmatpush1.msra.mxu0 0.0
    %1313 = vmatprep.subr.mxu0 0.0
    %1314 = vmatpush1.msra.mxu0 0.0
    %1315 = vmatprep.subr.mxu0 0.0
    %1316 = vmatpush1.msra.mxu0 0.0
    %1317 = vmatprep.subr.mxu0 0.0
    %1318 = vmatpush1.msra.mxu0 0.0
    %1319 = vmatprep.mubr.f32.mxu0 0.0
    %1320 = vmatmul.mubr.f32.gmra.mrb[0].mxu0 %v1253
    %v1321 = vpop.f32.mrb[0].mxu0
    %v1322 = vadd.f32 0.0, %v1321
    %v1323 = vpop.f32.mrb[0].mxu0
    %v1324 = vadd.f32 0.0, %v1323
    %1325 = vdwg.mxu0
    %v1326 = vadd.f32 %v1248, %v1322
    %v1327 = vadd.f32 %v1249, %v1324
    %v1329 = vsel %vm362, %v1252, %v1225
    %1330 = vmatprep.subr.mxu0 %v273
    %1331 = vmatpush1.msra.mxu0 %v272
    %1332 = vmatprep.subr.mxu0 %v275
    %1333 = vmatpush1.msra.mxu0 %v274
    %1334 = vmatprep.subr.mxu0 %v277
    %1335 = vmatpush1.msra.mxu0 %v276
    %1336 = vmatprep.subr.mxu0 %v279
    %1337 = vmatpush1.msra.mxu0 %v278
    %1338 = vmatprep.subr.mxu0 %v281
    %1339 = vmatpush1.msra.mxu0 %v280
    %1340 = vmatprep.subr.mxu0 %v283
    %1341 = vmatpush1.msra.mxu0 %v282
    %1342 = vmatprep.subr.mxu0 %v285
    %1343 = vmatpush1.msra.mxu0 %v284
    %1344 = vmatprep.subr.mxu0 %v287
    %1345 = vmatpush1.msra.mxu0 %v286
    %1346 = vmatprep.subr.mxu0 %v289
    %1347 = vmatpush1.msra.mxu0 %v288
    %1348 = vmatprep.subr.mxu0 %v291
    %1349 = vmatpush1.msra.mxu0 %v290
    %1350 = vmatprep.subr.mxu0 %v293
    %1351 = vmatpush1.msra.mxu0 %v292
    %1352 = vmatprep.subr.mxu0 %v295
    %1353 = vmatpush1.msra.mxu0 %v294
    %1354 = vmatprep.subr.mxu0 %v297
    %1355 = vmatpush1.msra.mxu0 %v296
    %1356 = vmatprep.subr.mxu0 %v299
    %1357 = vmatpush1.msra.mxu0 %v298
    %1358 = vmatprep.subr.mxu0 %v301
    %1359 = vmatpush1.msra.mxu0 %v300
    %1360 = vmatprep.subr.mxu0 %v303
    %1361 = vmatpush1.msra.mxu0 %v302
    %1362 = vmatprep.subr.mxu0 0.0
    %1363 = vmatpush1.msra.mxu0 0.0
    %1364 = vmatprep.subr.mxu0 0.0
    %1365 = vmatpush1.msra.mxu0 0.0
    %1366 = vmatprep.subr.mxu0 0.0
    %1367 = vmatpush1.msra.mxu0 0.0
    %1368 = vmatprep.subr.mxu0 0.0
    %1369 = vmatpush1.msra.mxu0 0.0
    %1370 = vmatprep.subr.mxu0 0.0
    %1371 = vmatpush1.msra.mxu0 0.0
    %1372 = vmatprep.subr.mxu0 0.0
    %1373 = vmatpush1.msra.mxu0 0.0
    %1374 = vmatprep.subr.mxu0 0.0
    %1375 = vmatpush1.msra.mxu0 0.0
    %1376 = vmatprep.subr.mxu0 0.0
    %1377 = vmatpush1.msra.mxu0 0.0
    %1378 = vmatprep.subr.mxu0 0.0
    %1379 = vmatpush1.msra.mxu0 0.0
    %1380 = vmatprep.subr.mxu0 0.0
    %1381 = vmatpush1.msra.mxu0 0.0
    %1382 = vmatprep.subr.mxu0 0.0
    %1383 = vmatpush1.msra.mxu0 0.0
    %1384 = vmatprep.subr.mxu0 0.0
    %1385 = vmatpush1.msra.mxu0 0.0
    %1386 = vmatprep.subr.mxu0 0.0
    %1387 = vmatpush1.msra.mxu0 0.0
    %1388 = vmatprep.subr.mxu0 0.0
    %1389 = vmatpush1.msra.mxu0 0.0
    %1390 = vmatprep.subr.mxu0 0.0
    %1391 = vmatpush1.msra.mxu0 0.0
    %1392 = vmatprep.subr.mxu0 0.0
    %1393 = vmatpush1.msra.mxu0 0.0
    %1394 = vmatprep.mubr.f32.mxu0 0.0
    %1395 = vmatmul.mubr.f32.gmra.mrb[0].mxu0 %v1329
    %v1396 = vpop.f32.mrb[0].mxu0
    %v1397 = vadd.f32 %v341, %v1396
    %v1398 = vpop.f32.mrb[0].mxu0
    %v1399 = vadd.f32 %v345, %v1398
    %1400 = vdwg.mxu0
    %1402 = vrot.lane.b32.xlu0 %v1225, 64
    %v1403 = vpop.permute.xlu0 %1402
    %v1405 = vsel %vm362, %v1403, %v1247
    %1406 = vmatprep.subr.mxu0 %v305
    %1407 = vmatpush1.msra.mxu0 %v304
    %1408 = vmatprep.subr.mxu0 %v307
    %1409 = vmatpush1.msra.mxu0 %v306
    %1410 = vmatprep.subr.mxu0 %v309
    %1411 = vmatpush1.msra.mxu0 %v308
    %1412 = vmatprep.subr.mxu0 %v311
    %1413 = vmatpush1.msra.mxu0 %v310
    %1414 = vmatprep.subr.mxu0 %v313
    %1415 = vmatpush1.msra.mxu0 %v312
    %1416 = vmatprep.subr.mxu0 %v315
    %1417 = vmatpush1.msra.mxu0 %v314
    %1418 = vmatprep.subr.mxu0 %v317
    %1419 = vmatpush1.msra.mxu0 %v316
    %1420 = vmatprep.subr.mxu0 %v319
    %1421 = vmatpush1.msra.mxu0 %v318
    %1422 = vmatprep.subr.mxu0 %v321
    %1423 = vmatpush1.msra.mxu0 %v320
    %1424 = vmatprep.subr.mxu0 %v323
    %1425 = vmatpush1.msra.mxu0 %v322
    %1426 = vmatprep.subr.mxu0 %v325
    %1427 = vmatpush1.msra.mxu0 %v324
    %1428 = vmatprep.subr.mxu0 %v327
    %1429 = vmatpush1.msra.mxu0 %v326
    %1430 = vmatprep.subr.mxu0 %v329
    %1431 = vmatpush1.msra.mxu0 %v328
    %1432 = vmatprep.subr.mxu0 %v331
    %1433 = vmatpush1.msra.mxu0 %v330
    %1434 = vmatprep.subr.mxu0 %v333
    %1435 = vmatpush1.msra.mxu0 %v332
    %1436 = vmatprep.subr.mxu0 %v335
    %1437 = vmatpush1.msra.mxu0 %v334
    %1438 = vmatprep.subr.mxu0 0.0
    %1439 = vmatpush1.msra.mxu0 0.0
    %1440 = vmatprep.subr.mxu0 0.0
    %1441 = vmatpush1.msra.mxu0 0.0
    %1442 = vmatprep.subr.mxu0 0.0
    %1443 = vmatpush1.msra.mxu0 0.0
    %1444 = vmatprep.subr.mxu0 0.0
    %1445 = vmatpush1.msra.mxu0 0.0
    %1446 = vmatprep.subr.mxu0 0.0
    %1447 = vmatpush1.msra.mxu0 0.0
    %1448 = vmatprep.subr.mxu0 0.0
    %1449 = vmatpush1.msra.mxu0 0.0
    %1450 = vmatprep.subr.mxu0 0.0
    %1451 = vmatpush1.msra.mxu0 0.0
    %1452 = vmatprep.subr.mxu0 0.0
    %1453 = vmatpush1.msra.mxu0 0.0
    %1454 = vmatprep.subr.mxu0 0.0
    %1455 = vmatpush1.msra.mxu0 0.0
    %1456 = vmatprep.subr.mxu0 0.0
    %1457 = vmatpush1.msra.mxu0 0.0
    %1458 = vmatprep.subr.mxu0 0.0
    %1459 = vmatpush1.msra.mxu0 0.0
    %1460 = vmatprep.subr.mxu0 0.0
    %1461 = vmatpush1.msra.mxu0 0.0
    %1462 = vmatprep.subr.mxu0 0.0
    %1463 = vmatpush1.msra.mxu0 0.0
    %1464 = vmatprep.subr.mxu0 0.0
    %1465 = vmatpush1.msra.mxu0 0.0
    %1466 = vmatprep.subr.mxu0 0.0
    %1467 = vmatpush1.msra.mxu0 0.0
    %1468 = vmatprep.subr.mxu0 0.0
    %1469 = vmatpush1.msra.mxu0 0.0
    %1470 = vmatprep.mubr.f32.mxu0 0.0
    %1471 = vmatmul.mubr.f32.gmra.mrb[0].mxu0 %v1405
    %v1472 = vpop.f32.mrb[0].mxu0
    %v1473 = vadd.f32 %v353, %v1472
    %v1474 = vpop.f32.mrb[0].mxu0
    %v1475 = vadd.f32 %v357, %v1474
    %1476 = vdwg.mxu0
    %v1477 = vxor.u32 %v1326, 2147483648
    %v1478 = vxor.u32 %v1327, 2147483648
    %v1479 = vmul.f32 %v1477, 1.442695
    %v1480 = vpow.pop %v1479
    %v1481 = vmul.f32 %v1478, 1.442695
    %v1482 = vpow.pop %v1481
    %v1483 = vadd.f32 %v1480, 1.0
    %v1484 = vadd.f32 %v1482, 1.0
    %v1485 = vrcp.pop %v1483
    %v1486 = vmul.f32 1.0, %v1485
    %v1487 = vrcp.pop %v1484
    %v1488 = vmul.f32 1.0, %v1487
    %v1489 = vtanh.pop %v1327
    %v1490 = vmul.f32 %v1486, %v1201
    %v1491 = vmul.f32 %v1486, %v1489
    %1493 = vrot.lane.b32.xlu0 %v1491, 64
    %v1494 = vpop.permute.xlu0 %1493
    %v1496 = vadd.f32 %v1490, %v1494
    %v1497 = vtanh.pop %v1496
    %v1498 = vmul.f32 %v1488, %v1497
    %v1499 = vxor.u32 %v1397, 2147483648
    %v1500 = vxor.u32 %v1399, 2147483648
    %v1501 = vmul.f32 %v1499, 1.442695
    %v1502 = vpow.pop %v1501
    %v1503 = vmul.f32 %v1500, 1.442695
    %v1504 = vpow.pop %v1503
    %v1505 = vadd.f32 %v1502, 1.0
    %v1506 = vadd.f32 %v1504, 1.0
    %v1507 = vrcp.pop %v1505
    %v1508 = vmul.f32 1.0, %v1507
    %v1509 = vrcp.pop %v1506
    %v1510 = vmul.f32 1.0, %v1509
    %v1511 = vtanh.pop %v1399
    %v1512 = vmul.f32 %v1508, %v1223
    %v1513 = vmul.f32 %v1508, %v1511
    %1515 = vrot.lane.b32.xlu0 %v1513, 64
    %v1516 = vpop.permute.xlu0 %1515
    %v1518 = vadd.f32 %v1512, %v1516
    %v1519 = vtanh.pop %v1518
    %v1520 = vmul.f32 %v1510, %v1519
    %v1521 = vxor.u32 %v1473, 2147483648
    %v1522 = vxor.u32 %v1475, 2147483648
    %v1523 = vmul.f32 %v1521, 1.442695
    %v1524 = vpow.pop %v1523
    %v1525 = vmul.f32 %v1522, 1.442695
    %v1526 = vpow.pop %v1525
    %v1527 = vadd.f32 %v1524, 1.0
    %v1528 = vadd.f32 %v1526, 1.0
    %v1529 = vrcp.pop %v1527
    %v1530 = vmul.f32 1.0, %v1529
    %v1531 = vrcp.pop %v1528
    %v1532 = vmul.f32 1.0, %v1531
    %v1533 = vtanh.pop %v1475
    %v1534 = vmul.f32 %v1530, %v1245
    %v1535 = vmul.f32 %v1530, %v1533
    %1537 = vrot.lane.b32.xlu0 %v1535, 64
    %v1538 = vpop.permute.xlu0 %1537
    %v1540 = vadd.f32 %v1534, %v1538
    %v1541 = vtanh.pop %v1540
    %v1542 = vmul.f32 %v1532, %v1541
    %v1543 = vld [vmem:[#allocation2 + $0x50] sm:$0xff]
    %v1544 = vld [vmem:[#allocation2 + $0x58] sm:$0xff]
    %1546 = vrot.lane.b32.xlu0 %v1498, 64
    %v1547 = vpop.permute.xlu0 %1546
    %v1548 = vsel %vm362, %v1547, 0
    %1550 = vmatprep.subr.mxu0 %v257
    %1551 = vmatpush1.msra.mxu0 %v256
    %1552 = vmatprep.subr.mxu0 %v259
    %1553 = vmatpush1.msra.mxu0 %v258
    %1554 = vmatprep.subr.mxu0 %v261
    %1555 = vmatpush1.msra.mxu0 %v260
    %1556 = vmatprep.subr.mxu0 %v263
    %1557 = vmatpush1.msra.mxu0 %v262
    %1558 = vmatprep.subr.mxu0 %v265
    %1559 = vmatpush1.msra.mxu0 %v264
    %1560 = vmatprep.subr.mxu0 %v267
    %1561 = vmatpush1.msra.mxu0 %v266
    %1562 = vmatprep.subr.mxu0 %v269
    %1563 = vmatpush1.msra.mxu0 %v268
    %1564 = vmatprep.subr.mxu0 %v271
    %1565 = vmatpush1.msra.mxu0 %v270
    %1566 = vmatprep.subr.mxu0 0.0
    %1567 = vmatpush1.msra.mxu0 0.0
    %1568 = vmatprep.subr.mxu0 0.0
    %1569 = vmatpush1.msra.mxu0 0.0
    %1570 = vmatprep.subr.mxu0 0.0
    %1571 = vmatpush1.msra.mxu0 0.0
    %1572 = vmatprep.subr.mxu0 0.0
    %1573 = vmatpush1.msra.mxu0 0.0
    %1574 = vmatprep.subr.mxu0 0.0
    %1575 = vmatpush1.msra.mxu0 0.0
    %1576 = vmatprep.subr.mxu0 0.0
    %1577 = vmatpush1.msra.mxu0 0.0
    %1578 = vmatprep.subr.mxu0 0.0
    %1579 = vmatpush1.msra.mxu0 0.0
    %1580 = vmatprep.subr.mxu0 0.0
    %1581 = vmatpush1.msra.mxu0 0.0
    %1582 = vmatprep.subr.mxu0 0.0
    %1583 = vmatpush1.msra.mxu0 0.0
    %1584 = vmatprep.subr.mxu0 0.0
    %1585 = vmatpush1.msra.mxu0 0.0
    %1586 = vmatprep.subr.mxu0 0.0
    %1587 = vmatpush1.msra.mxu0 0.0
    %1588 = vmatprep.subr.mxu0 0.0
    %1589 = vmatpush1.msra.mxu0 0.0
    %1590 = vmatprep.subr.mxu0 0.0
    %1591 = vmatpush1.msra.mxu0 0.0
    %1592 = vmatprep.subr.mxu0 0.0
    %1593 = vmatpush1.msra.mxu0 0.0
    %1594 = vmatprep.subr.mxu0 0.0
    %1595 = vmatpush1.msra.mxu0 0.0
    %1596 = vmatprep.subr.mxu0 0.0
    %1597 = vmatpush1.msra.mxu0 0.0
    %1598 = vmatprep.subr.mxu0 0.0
    %1599 = vmatpush1.msra.mxu0 0.0
    %1600 = vmatprep.subr.mxu0 0.0
    %1601 = vmatpush1.msra.mxu0 0.0
    %1602 = vmatprep.subr.mxu0 0.0
    %1603 = vmatpush1.msra.mxu0 0.0
    %1604 = vmatprep.subr.mxu0 0.0
    %1605 = vmatpush1.msra.mxu0 0.0
    %1606 = vmatprep.subr.mxu0 0.0
    %1607 = vmatpush1.msra.mxu0 0.0
    %1608 = vmatprep.subr.mxu0 0.0
    %1609 = vmatpush1.msra.mxu0 0.0
    %1610 = vmatprep.subr.mxu0 0.0
    %1611 = vmatpush1.msra.mxu0 0.0
    %1612 = vmatprep.subr.mxu0 0.0
    %1613 = vmatpush1.msra.mxu0 0.0
    %1614 = vmatprep.mubr.f32.mxu0 0.0
    %1615 = vmatmul.mubr.f32.gmra.mrb[0].mxu0 %v1548
    %v1616 = vpop.f32.mrb[0].mxu0
    %v1617 = vadd.f32 0.0, %v1616
    %v1618 = vpop.f32.mrb[0].mxu0
    %v1619 = vadd.f32 0.0, %v1618
    %1620 = vdwg.mxu0
    %v1621 = vadd.f32 %v1543, %v1617
    %v1622 = vadd.f32 %v1544, %v1619
    %v1624 = vsel %vm362, %v1547, %v1520
    %1625 = vmatprep.subr.mxu0 %v273
    %1626 = vmatpush1.msra.mxu0 %v272
    %1627 = vmatprep.subr.mxu0 %v275
    %1628 = vmatpush1.msra.mxu0 %v274
    %1629 = vmatprep.subr.mxu0 %v277
    %1630 = vmatpush1.msra.mxu0 %v276
    %1631 = vmatprep.subr.mxu0 %v279
    %1632 = vmatpush1.msra.mxu0 %v278
    %1633 = vmatprep.subr.mxu0 %v281
    %1634 = vmatpush1.msra.mxu0 %v280
    %1635 = vmatprep.subr.mxu0 %v283
    %1636 = vmatpush1.msra.mxu0 %v282
    %1637 = vmatprep.subr.mxu0 %v285
    %1638 = vmatpush1.msra.mxu0 %v284
    %1639 = vmatprep.subr.mxu0 %v287
    %1640 = vmatpush1.msra.mxu0 %v286
    %1641 = vmatprep.subr.mxu0 %v289
    %1642 = vmatpush1.msra.mxu0 %v288
    %1643 = vmatprep.subr.mxu0 %v291
    %1644 = vmatpush1.msra.mxu0 %v290
    %1645 = vmatprep.subr.mxu0 %v293
    %1646 = vmatpush1.msra.mxu0 %v292
    %1647 = vmatprep.subr.mxu0 %v295
    %1648 = vmatpush1.msra.mxu0 %v294
    %1649 = vmatprep.subr.mxu0 %v297
    %1650 = vmatpush1.msra.mxu0 %v296
    %1651 = vmatprep.subr.mxu0 %v299
    %1652 = vmatpush1.msra.mxu0 %v298
    %1653 = vmatprep.subr.mxu0 %v301
    %1654 = vmatpush1.msra.mxu0 %v300
    %1655 = vmatprep.subr.mxu0 %v303
    %1656 = vmatpush1.msra.mxu0 %v302
    %1657 = vmatprep.subr.mxu0 0.0
    %1658 = vmatpush1.msra.mxu0 0.0
    %1659 = vmatprep.subr.mxu0 0.0
    %1660 = vmatpush1.msra.mxu0 0.0
    %1661 = vmatprep.subr.mxu0 0.0
    %1662 = vmatpush1.msra.mxu0 0.0
    %1663 = vmatprep.subr.mxu0 0.0
    %1664 = vmatpush1.msra.mxu0 0.0
    %1665 = vmatprep.subr.mxu0 0.0
    %1666 = vmatpush1.msra.mxu0 0.0
    %1667 = vmatprep.subr.mxu0 0.0
    %1668 = vmatpush1.msra.mxu0 0.0
    %1669 = vmatprep.subr.mxu0 0.0
    %1670 = vmatpush1.msra.mxu0 0.0
    %1671 = vmatprep.subr.mxu0 0.0
    %1672 = vmatpush1.msra.mxu0 0.0
    %1673 = vmatprep.subr.mxu0 0.0
    %1674 = vmatpush1.msra.mxu0 0.0
    %1675 = vmatprep.subr.mxu0 0.0
    %1676 = vmatpush1.msra.mxu0 0.0
    %1677 = vmatprep.subr.mxu0 0.0
    %1678 = vmatpush1.msra.mxu0 0.0
    %1679 = vmatprep.subr.mxu0 0.0
    %1680 = vmatpush1.msra.mxu0 0.0
    %1681 = vmatprep.subr.mxu0 0.0
    %1682 = vmatpush1.msra.mxu0 0.0
    %1683 = vmatprep.subr.mxu0 0.0
    %1684 = vmatpush1.msra.mxu0 0.0
    %1685 = vmatprep.subr.mxu0 0.0
    %1686 = vmatpush1.msra.mxu0 0.0
    %1687 = vmatprep.subr.mxu0 0.0
    %1688 = vmatpush1.msra.mxu0 0.0
    %1689 = vmatprep.mubr.f32.mxu0 0.0
    %1690 = vmatmul.mubr.f32.gmra.mrb[0].mxu0 %v1624
    %v1691 = vpop.f32.mrb[0].mxu0
    %v1692 = vadd.f32 %v341, %v1691
    %v1693 = vpop.f32.mrb[0].mxu0
    %v1694 = vadd.f32 %v345, %v1693
    %1695 = vdwg.mxu0
    %1697 = vrot.lane.b32.xlu0 %v1520, 64
    %v1698 = vpop.permute.xlu0 %1697
    %v1700 = vsel %vm362, %v1698, %v1542
    %1701 = vmatprep.subr.mxu0 %v305
    %1702 = vmatpush1.msra.mxu0 %v304
    %1703 = vmatprep.subr.mxu0 %v307
    %1704 = vmatpush1.msra.mxu0 %v306
    %1705 = vmatprep.subr.mxu0 %v309
    %1706 = vmatpush1.msra.mxu0 %v308
    %1707 = vmatprep.subr.mxu0 %v311
    %1708 = vmatpush1.msra.mxu0 %v310
    %1709 = vmatprep.subr.mxu0 %v313
    %1710 = vmatpush1.msra.mxu0 %v312
    %1711 = vmatprep.subr.mxu0 %v315
    %1712 = vmatpush1.msra.mxu0 %v314
    %1713 = vmatprep.subr.mxu0 %v317
    %1714 = vmatpush1.msra.mxu0 %v316
    %1715 = vmatprep.subr.mxu0 %v319
    %1716 = vmatpush1.msra.mxu0 %v318
    %1717 = vmatprep.subr.mxu0 %v321
    %1718 = vmatpush1.msra.mxu0 %v320
    %1719 = vmatprep.subr.mxu0 %v323
    %1720 = vmatpush1.msra.mxu0 %v322
    %1721 = vmatprep.subr.mxu0 %v325
    %1722 = vmatpush1.msra.mxu0 %v324
    %1723 = vmatprep.subr.mxu0 %v327
    %1724 = vmatpush1.msra.mxu0 %v326
    %1725 = vmatprep.subr.mxu0 %v329
    %1726 = vmatpush1.msra.mxu0 %v328
    %1727 = vmatprep.subr.mxu0 %v331
    %1728 = vmatpush1.msra.mxu0 %v330
    %1729 = vmatprep.subr.mxu0 %v333
    %1730 = vmatpush1.msra.mxu0 %v332
    %1731 = vmatprep.subr.mxu0 %v335
    %1732 = vmatpush1.msra.mxu0 %v334
    %1733 = vmatprep.subr.mxu0 0.0
    %1734 = vmatpush1.msra.mxu0 0.0
    %1735 = vmatprep.subr.mxu0 0.0
    %1736 = vmatpush1.msra.mxu0 0.0
    %1737 = vmatprep.subr.mxu0 0.0
    %1738 = vmatpush1.msra.mxu0 0.0
    %1739 = vmatprep.subr.mxu0 0.0
    %1740 = vmatpush1.msra.mxu0 0.0
    %1741 = vmatprep.subr.mxu0 0.0
    %1742 = vmatpush1.msra.mxu0 0.0
    %1743 = vmatprep.subr.mxu0 0.0
    %1744 = vmatpush1.msra.mxu0 0.0
    %1745 = vmatprep.subr.mxu0 0.0
    %1746 = vmatpush1.msra.mxu0 0.0
    %1747 = vmatprep.subr.mxu0 0.0
    %1748 = vmatpush1.msra.mxu0 0.0
    %1749 = vmatprep.subr.mxu0 0.0
    %1750 = vmatpush1.msra.mxu0 0.0
    %1751 = vmatprep.subr.mxu0 0.0
    %1752 = vmatpush1.msra.mxu0 0.0
    %1753 = vmatprep.subr.mxu0 0.0
    %1754 = vmatpush1.msra.mxu0 0.0
    %1755 = vmatprep.subr.mxu0 0.0
    %1756 = vmatpush1.msra.mxu0 0.0
    %1757 = vmatprep.subr.mxu0 0.0
    %1758 = vmatpush1.msra.mxu0 0.0
    %1759 = vmatprep.subr.mxu0 0.0
    %1760 = vmatpush1.msra.mxu0 0.0
    %1761 = vmatprep.subr.mxu0 0.0
    %1762 = vmatpush1.msra.mxu0 0.0
    %1763 = vmatprep.subr.mxu0 0.0
    %1764 = vmatpush1.msra.mxu0 0.0
    %1765 = vmatprep.mubr.f32.mxu0 0.0
    %1766 = vmatmul.mubr.f32.gmra.mrb[0].mxu0 %v1700
    %v1767 = vpop.f32.mrb[0].mxu0
    %v1768 = vadd.f32 %v353, %v1767
    %v1769 = vpop.f32.mrb[0].mxu0
    %v1770 = vadd.f32 %v357, %v1769
    %1771 = vdwg.mxu0
    %v1772 = vxor.u32 %v1621, 2147483648
    %v1773 = vxor.u32 %v1622, 2147483648
    %v1774 = vmul.f32 %v1772, 1.442695
    %v1775 = vpow.pop %v1774
    %v1776 = vmul.f32 %v1773, 1.442695
    %v1777 = vpow.pop %v1776
    %v1778 = vadd.f32 %v1775, 1.0
    %v1779 = vadd.f32 %v1777, 1.0
    %v1780 = vrcp.pop %v1778
    %v1781 = vmul.f32 1.0, %v1780
    %v1782 = vrcp.pop %v1779
    %v1783 = vmul.f32 1.0, %v1782
    %v1784 = vtanh.pop %v1622
    %v1785 = vmul.f32 %v1781, %v1496
    %v1786 = vmul.f32 %v1781, %v1784
    %1788 = vrot.lane.b32.xlu0 %v1786, 64
    %v1789 = vpop.permute.xlu0 %1788
    %v1791 = vadd.f32 %v1785, %v1789
    %v1792 = vtanh.pop %v1791
    %v1793 = vmul.f32 %v1783, %v1792
    %v1794 = vxor.u32 %v1692, 2147483648
    %v1795 = vxor.u32 %v1694, 2147483648
    %v1796 = vmul.f32 %v1794, 1.442695
    %v1797 = vpow.pop %v1796
    %v1798 = vmul.f32 %v1795, 1.442695
    %v1799 = vpow.pop %v1798
    %v1800 = vadd.f32 %v1797, 1.0
    %v1801 = vadd.f32 %v1799, 1.0
    %v1802 = vrcp.pop %v1800
    %v1803 = vmul.f32 1.0, %v1802
    %v1804 = vrcp.pop %v1801
    %v1805 = vmul.f32 1.0, %v1804
    %v1806 = vtanh.pop %v1694
    %v1807 = vmul.f32 %v1803, %v1518
    %v1808 = vmul.f32 %v1803, %v1806
    %1810 = vrot.lane.b32.xlu0 %v1808, 64
    %v1811 = vpop.permute.xlu0 %1810
    %v1813 = vadd.f32 %v1807, %v1811
    %v1814 = vtanh.pop %v1813
    %v1815 = vmul.f32 %v1805, %v1814
    %v1816 = vxor.u32 %v1768, 2147483648
    %v1817 = vxor.u32 %v1770, 2147483648
    %v1818 = vmul.f32 %v1816, 1.442695
    %v1819 = vpow.pop %v1818
    %v1820 = vmul.f32 %v1817, 1.442695
    %v1821 = vpow.pop %v1820
    %v1822 = vadd.f32 %v1819, 1.0
    %v1823 = vadd.f32 %v1821, 1.0
    %v1824 = vrcp.pop %v1822
    %v1825 = vmul.f32 1.0, %v1824
    %v1826 = vrcp.pop %v1823
    %v1827 = vmul.f32 1.0, %v1826
    %v1828 = vtanh.pop %v1770
    %v1829 = vmul.f32 %v1825, %v1540
    %v1830 = vmul.f32 %v1825, %v1828
    %1832 = vrot.lane.b32.xlu0 %v1830, 64
    %v1833 = vpop.permute.xlu0 %1832
    %v1835 = vadd.f32 %v1829, %v1833
    %v1836 = vtanh.pop %v1835
    %v1837 = vmul.f32 %v1827, %v1836
    %v1838 = vld [vmem:[#allocation2 + $0x60] sm:$0xff]
    %v1839 = vld [vmem:[#allocation2 + $0x68] sm:$0xff]
    %1841 = vrot.lane.b32.xlu0 %v1793, 64
    %v1842 = vpop.permute.xlu0 %1841
    %v1843 = vsel %vm362, %v1842, 0
    %1845 = vmatprep.subr.mxu0 %v257
    %1846 = vmatpush1.msra.mxu0 %v256
    %1847 = vmatprep.subr.mxu0 %v259
    %1848 = vmatpush1.msra.mxu0 %v258
    %1849 = vmatprep.subr.mxu0 %v261
    %1850 = vmatpush1.msra.mxu0 %v260
    %1851 = vmatprep.subr.mxu0 %v263
    %1852 = vmatpush1.msra.mxu0 %v262
    %1853 = vmatprep.subr.mxu0 %v265
    %1854 = vmatpush1.msra.mxu0 %v264
    %1855 = vmatprep.subr.mxu0 %v267
    %1856 = vmatpush1.msra.mxu0 %v266
    %1857 = vmatprep.subr.mxu0 %v269
    %1858 = vmatpush1.msra.mxu0 %v268
    %1859 = vmatprep.subr.mxu0 %v271
    %1860 = vmatpush1.msra.mxu0 %v270
    %1861 = vmatprep.subr.mxu0 0.0
    %1862 = vmatpush1.msra.mxu0 0.0
    %1863 = vmatprep.subr.mxu0 0.0
    %1864 = vmatpush1.msra.mxu0 0.0
    %1865 = vmatprep.subr.mxu0 0.0
    %1866 = vmatpush1.msra.mxu0 0.0
    %1867 = vmatprep.subr.mxu0 0.0
    %1868 = vmatpush1.msra.mxu0 0.0
    %1869 = vmatprep.subr.mxu0 0.0
    %1870 = vmatpush1.msra.mxu0 0.0
    %1871 = vmatprep.subr.mxu0 0.0
    %1872 = vmatpush1.msra.mxu0 0.0
    %1873 = vmatprep.subr.mxu0 0.0
    %1874 = vmatpush1.msra.mxu0 0.0
    %1875 = vmatprep.subr.mxu0 0.0
    %1876 = vmatpush1.msra.mxu0 0.0
    %1877 = vmatprep.subr.mxu0 0.0
    %1878 = vmatpush1.msra.mxu0 0.0
    %1879 = vmatprep.subr.mxu0 0.0
    %1880 = vmatpush1.msra.mxu0 0.0
    %1881 = vmatprep.subr.mxu0 0.0
    %1882 = vmatpush1.msra.mxu0 0.0
    %1883 = vmatprep.subr.mxu0 0.0
    %1884 = vmatpush1.msra.mxu0 0.0
    %1885 = vmatprep.subr.mxu0 0.0
    %1886 = vmatpush1.msra.mxu0 0.0
    %1887 = vmatprep.subr.mxu0 0.0
    %1888 = vmatpush1.msra.mxu0 0.0
    %1889 = vmatprep.subr.mxu0 0.0
    %1890 = vmatpush1.msra.mxu0 0.0
    %1891 = vmatprep.subr.mxu0 0.0
    %1892 = vmatpush1.msra.mxu0 0.0
    %1893 = vmatprep.subr.mxu0 0.0
    %1894 = vmatpush1.msra.mxu0 0.0
    %1895 = vmatprep.subr.mxu0 0.0
    %1896 = vmatpush1.msra.mxu0 0.0
    %1897 = vmatprep.subr.mxu0 0.0
    %1898 = vmatpush1.msra.mxu0 0.0
    %1899 = vmatprep.subr.mxu0 0.0
    %1900 = vmatpush1.msra.mxu0 0.0
    %1901 = vmatprep.subr.mxu0 0.0
    %1902 = vmatpush1.msra.mxu0 0.0
    %1903 = vmatprep.subr.mxu0 0.0
    %1904 = vmatpush1.msra.mxu0 0.0
    %1905 = vmatprep.subr.mxu0 0.0
    %1906 = vmatpush1.msra.mxu0 0.0
    %1907 = vmatprep.subr.mxu0 0.0
    %1908 = vmatpush1.msra.mxu0 0.0
    %1909 = vmatprep.mubr.f32.mxu0 0.0
    %1910 = vmatmul.mubr.f32.gmra.mrb[0].mxu0 %v1843
    %v1911 = vpop.f32.mrb[0].mxu0
    %v1912 = vadd.f32 0.0, %v1911
    %v1913 = vpop.f32.mrb[0].mxu0
    %v1914 = vadd.f32 0.0, %v1913
    %1915 = vdwg.mxu0
    %v1916 = vadd.f32 %v1838, %v1912
    %v1917 = vadd.f32 %v1839, %v1914
    %v1919 = vsel %vm362, %v1842, %v1815
    %1920 = vmatprep.subr.mxu0 %v273
    %1921 = vmatpush1.msra.mxu0 %v272
    %1922 = vmatprep.subr.mxu0 %v275
    %1923 = vmatpush1.msra.mxu0 %v274
    %1924 = vmatprep.subr.mxu0 %v277
    %1925 = vmatpush1.msra.mxu0 %v276
    %1926 = vmatprep.subr.mxu0 %v279
    %1927 = vmatpush1.msra.mxu0 %v278
    %1928 = vmatprep.subr.mxu0 %v281
    %1929 = vmatpush1.msra.mxu0 %v280
    %1930 = vmatprep.subr.mxu0 %v283
    %1931 = vmatpush1.msra.mxu0 %v282
    %1932 = vmatprep.subr.mxu0 %v285
    %1933 = vmatpush1.msra.mxu0 %v284
    %1934 = vmatprep.subr.mxu0 %v287
    %1935 = vmatpush1.msra.mxu0 %v286
    %1936 = vmatprep.subr.mxu0 %v289
    %1937 = vmatpush1.msra.mxu0 %v288
    %1938 = vmatprep.subr.mxu0 %v291
    %1939 = vmatpush1.msra.mxu0 %v290
    %1940 = vmatprep.subr.mxu0 %v293
    %1941 = vmatpush1.msra.mxu0 %v292
    %1942 = vmatprep.subr.mxu0 %v295
    %1943 = vmatpush1.msra.mxu0 %v294
    %1944 = vmatprep.subr.mxu0 %v297
    %1945 = vmatpush1.msra.mxu0 %v296
    %1946 = vmatprep.subr.mxu0 %v299
    %1947 = vmatpush1.msra.mxu0 %v298
    %1948 = vmatprep.subr.mxu0 %v301
    %1949 = vmatpush1.msra.mxu0 %v300
    %1950 = vmatprep.subr.mxu0 %v303
    %1951 = vmatpush1.msra.mxu0 %v302
    %1952 = vmatprep.subr.mxu0 0.0
    %1953 = vmatpush1.msra.mxu0 0.0
    %1954 = vmatprep.subr.mxu0 0.0
    %1955 = vmatpush1.msra.mxu0 0.0
    %1956 = vmatprep.subr.mxu0 0.0
    %1957 = vmatpush1.msra.mxu0 0.0
    %1958 = vmatprep.subr.mxu0 0.0
    %1959 = vmatpush1.msra.mxu0 0.0
    %1960 = vmatprep.subr.mxu0 0.0
    %1961 = vmatpush1.msra.mxu0 0.0
    %1962 = vmatprep.subr.mxu0 0.0
    %1963 = vmatpush1.msra.mxu0 0.0
    %1964 = vmatprep.subr.mxu0 0.0
    %1965 = vmatpush1.msra.mxu0 0.0
    %1966 = vmatprep.subr.mxu0 0.0
    %1967 = vmatpush1.msra.mxu0 0.0
    %1968 = vmatprep.subr.mxu0 0.0
    %1969 = vmatpush1.msra.mxu0 0.0
    %1970 = vmatprep.subr.mxu0 0.0
    %1971 = vmatpush1.msra.mxu0 0.0
    %1972 = vmatprep.subr.mxu0 0.0
    %1973 = vmatpush1.msra.mxu0 0.0
    %1974 = vmatprep.subr.mxu0 0.0
    %1975 = vmatpush1.msra.mxu0 0.0
    %1976 = vmatprep.subr.mxu0 0.0
    %1977 = vmatpush1.msra.mxu0 0.0
    %1978 = vmatprep.subr.mxu0 0.0
    %1979 = vmatpush1.msra.mxu0 0.0
    %1980 = vmatprep.subr.mxu0 0.0
    %1981 = vmatpush1.msra.mxu0 0.0
    %1982 = vmatprep.subr.mxu0 0.0
    %1983 = vmatpush1.msra.mxu0 0.0
    %1984 = vmatprep.mubr.f32.mxu0 0.0
    %1985 = vmatmul.mubr.f32.gmra.mrb[0].mxu0 %v1919
    %v1986 = vpop.f32.mrb[0].mxu0
    %v1987 = vadd.f32 %v341, %v1986
    %v1988 = vpop.f32.mrb[0].mxu0
    %v1989 = vadd.f32 %v345, %v1988
    %1990 = vdwg.mxu0
    %1992 = vrot.lane.b32.xlu0 %v1815, 64
    %v1993 = vpop.permute.xlu0 %1992
    %v1995 = vsel %vm362, %v1993, %v1837
    %1996 = vmatprep.subr.mxu0 %v305
    %1997 = vmatpush1.msra.mxu0 %v304
    %1998 = vmatprep.subr.mxu0 %v307
    %1999 = vmatpush1.msra.mxu0 %v306
    %2000 = vmatprep.subr.mxu0 %v309
    %2001 = vmatpush1.msra.mxu0 %v308
    %2002 = vmatprep.subr.mxu0 %v311
    %2003 = vmatpush1.msra.mxu0 %v310
    %2004 = vmatprep.subr.mxu0 %v313
    %2005 = vmatpush1.msra.mxu0 %v312
    %2006 = vmatprep.subr.mxu0 %v315
    %2007 = vmatpush1.msra.mxu0 %v314
    %2008 = vmatprep.subr.mxu0 %v317
    %2009 = vmatpush1.msra.mxu0 %v316
    %2010 = vmatprep.subr.mxu0 %v319
    %2011 = vmatpush1.msra.mxu0 %v318
    %2012 = vmatprep.subr.mxu0 %v321
    %2013 = vmatpush1.msra.mxu0 %v320
    %2014 = vmatprep.subr.mxu0 %v323
    %2015 = vmatpush1.msra.mxu0 %v322
    %2016 = vmatprep.subr.mxu0 %v325
    %2017 = vmatpush1.msra.mxu0 %v324
    %2018 = vmatprep.subr.mxu0 %v327
    %2019 = vmatpush1.msra.mxu0 %v326
    %2020 = vmatprep.subr.mxu0 %v329
    %2021 = vmatpush1.msra.mxu0 %v328
    %2022 = vmatprep.subr.mxu0 %v331
    %2023 = vmatpush1.msra.mxu0 %v330
    %2024 = vmatprep.subr.mxu0 %v333
    %2025 = vmatpush1.msra.mxu0 %v332
    %2026 = vmatprep.subr.mxu0 %v335
    %2027 = vmatpush1.msra.mxu0 %v334
    %2028 = vmatprep.subr.mxu0 0.0
    %2029 = vmatpush1.msra.mxu0 0.0
    %2030 = vmatprep.subr.mxu0 0.0
    %2031 = vmatpush1.msra.mxu0 0.0
    %2032 = vmatprep.subr.mxu0 0.0
    %2033 = vmatpush1.msra.mxu0 0.0
    %2034 = vmatprep.subr.mxu0 0.0
    %2035 = vmatpush1.msra.mxu0 0.0
    %2036 = vmatprep.subr.mxu0 0.0
    %2037 = vmatpush1.msra.mxu0 0.0
    %2038 = vmatprep.subr.mxu0 0.0
    %2039 = vmatpush1.msra.mxu0 0.0
    %2040 = vmatprep.subr.mxu0 0.0
    %2041 = vmatpush1.msra.mxu0 0.0
    %2042 = vmatprep.subr.mxu0 0.0
    %2043 = vmatpush1.msra.mxu0 0.0
    %2044 = vmatprep.subr.mxu0 0.0
    %2045 = vmatpush1.msra.mxu0 0.0
    %2046 = vmatprep.subr.mxu0 0.0
    %2047 = vmatpush1.msra.mxu0 0.0
    %2048 = vmatprep.subr.mxu0 0.0
    %2049 = vmatpush1.msra.mxu0 0.0
    %2050 = vmatprep.subr.mxu0 0.0
    %2051 = vmatpush1.msra.mxu0 0.0
    %2052 = vmatprep.subr.mxu0 0.0
    %2053 = vmatpush1.msra.mxu0 0.0
    %2054 = vmatprep.subr.mxu0 0.0
    %2055 = vmatpush1.msra.mxu0 0.0
    %2056 = vmatprep.subr.mxu0 0.0
    %2057 = vmatpush1.msra.mxu0 0.0
    %2058 = vmatprep.subr.mxu0 0.0
    %2059 = vmatpush1.msra.mxu0 0.0
    %2060 = vmatprep.mubr.f32.mxu0 0.0
    %2061 = vmatmul.mubr.f32.gmra.mrb[0].mxu0 %v1995
    %v2062 = vpop.f32.mrb[0].mxu0
    %v2063 = vadd.f32 %v353, %v2062
    %v2064 = vpop.f32.mrb[0].mxu0
    %v2065 = vadd.f32 %v357, %v2064
    %2066 = vdwg.mxu0
    %v2067 = vxor.u32 %v1916, 2147483648
    %v2068 = vxor.u32 %v1917, 2147483648
    %v2069 = vmul.f32 %v2067, 1.442695
    %v2070 = vpow.pop %v2069
    %v2071 = vmul.f32 %v2068, 1.442695
    %v2072 = vpow.pop %v2071
    %v2073 = vadd.f32 %v2070, 1.0
    %v2074 = vadd.f32 %v2072, 1.0
    %v2075 = vrcp.pop %v2073
    %v2076 = vmul.f32 1.0, %v2075
    %v2077 = vrcp.pop %v2074
    %v2078 = vmul.f32 1.0, %v2077
    %v2079 = vtanh.pop %v1917
    %v2080 = vmul.f32 %v2076, %v1791
    %v2081 = vmul.f32 %v2076, %v2079
    %2083 = vrot.lane.b32.xlu0 %v2081, 64
    %v2084 = vpop.permute.xlu0 %2083
    %v2086 = vadd.f32 %v2080, %v2084
    %v2087 = vtanh.pop %v2086
    %v2088 = vmul.f32 %v2078, %v2087
    %v2089 = vxor.u32 %v1987, 2147483648
    %v2090 = vxor.u32 %v1989, 2147483648
    %v2091 = vmul.f32 %v2089, 1.442695
    %v2092 = vpow.pop %v2091
    %v2093 = vmul.f32 %v2090, 1.442695
    %v2094 = vpow.pop %v2093
    %v2095 = vadd.f32 %v2092, 1.0
    %v2096 = vadd.f32 %v2094, 1.0
    %v2097 = vrcp.pop %v2095
    %v2098 = vmul.f32 1.0, %v2097
    %v2099 = vrcp.pop %v2096
    %v2100 = vmul.f32 1.0, %v2099
    %v2101 = vtanh.pop %v1989
    %v2102 = vmul.f32 %v2098, %v1813
    %v2103 = vmul.f32 %v2098, %v2101
    %2105 = vrot.lane.b32.xlu0 %v2103, 64
    %v2106 = vpop.permute.xlu0 %2105
    %v2108 = vadd.f32 %v2102, %v2106
    %v2109 = vtanh.pop %v2108
    %v2110 = vmul.f32 %v2100, %v2109
    %v2111 = vxor.u32 %v2063, 2147483648
    %v2112 = vxor.u32 %v2065, 2147483648
    %v2113 = vmul.f32 %v2111, 1.442695
    %v2114 = vpow.pop %v2113
    %v2115 = vmul.f32 %v2112, 1.442695
    %v2116 = vpow.pop %v2115
    %v2117 = vadd.f32 %v2114, 1.0
    %v2118 = vadd.f32 %v2116, 1.0
    %v2119 = vrcp.pop %v2117
    %v2120 = vmul.f32 1.0, %v2119
    %v2121 = vrcp.pop %v2118
    %v2122 = vmul.f32 1.0, %v2121
    %v2123 = vtanh.pop %v2065
    %v2124 = vmul.f32 %v2120, %v1835
    %v2125 = vmul.f32 %v2120, %v2123
    %2127 = vrot.lane.b32.xlu0 %v2125, 64
    %v2128 = vpop.permute.xlu0 %2127
    %v2130 = vadd.f32 %v2124, %v2128
    %v2131 = vtanh.pop %v2130
    %v2132 = vmul.f32 %v2122, %v2131
    %v2133 = vld [vmem:[#allocation2 + $0x70] sm:$0xff]
    %v2134 = vld [vmem:[#allocation2 + $0x78] sm:$0xff]
    %2136 = vrot.lane.b32.xlu0 %v2088, 64
    %v2137 = vpop.permute.xlu0 %2136
    %v2138 = vsel %vm362, %v2137, 0
    %2140 = vmatprep.subr.mxu0 %v257
    %2141 = vmatpush1.msra.mxu0 %v256
    %2142 = vmatprep.subr.mxu0 %v259
    %2143 = vmatpush1.msra.mxu0 %v258
    %2144 = vmatprep.subr.mxu0 %v261
    %2145 = vmatpush1.msra.mxu0 %v260
    %2146 = vmatprep.subr.mxu0 %v263
    %2147 = vmatpush1.msra.mxu0 %v262
    %2148 = vmatprep.subr.mxu0 %v265
    %2149 = vmatpush1.msra.mxu0 %v264
    %2150 = vmatprep.subr.mxu0 %v267
    %2151 = vmatpush1.msra.mxu0 %v266
    %2152 = vmatprep.subr.mxu0 %v269
    %2153 = vmatpush1.msra.mxu0 %v268
    %2154 = vmatprep.subr.mxu0 %v271
    %2155 = vmatpush1.msra.mxu0 %v270
    %2156 = vmatprep.subr.mxu0 0.0
    %2157 = vmatpush1.msra.mxu0 0.0
    %2158 = vmatprep.subr.mxu0 0.0
    %2159 = vmatpush1.msra.mxu0 0.0
    %2160 = vmatprep.subr.mxu0 0.0
    %2161 = vmatpush1.msra.mxu0 0.0
    %2162 = vmatprep.subr.mxu0 0.0
    %2163 = vmatpush1.msra.mxu0 0.0
    %2164 = vmatprep.subr.mxu0 0.0
    %2165 = vmatpush1.msra.mxu0 0.0
    %2166 = vmatprep.subr.mxu0 0.0
    %2167 = vmatpush1.msra.mxu0 0.0
    %2168 = vmatprep.subr.mxu0 0.0
    %2169 = vmatpush1.msra.mxu0 0.0
    %2170 = vmatprep.subr.mxu0 0.0
    %2171 = vmatpush1.msra.mxu0 0.0
    %2172 = vmatprep.subr.mxu0 0.0
    %2173 = vmatpush1.msra.mxu0 0.0
    %2174 = vmatprep.subr.mxu0 0.0
    %2175 = vmatpush1.msra.mxu0 0.0
    %2176 = vmatprep.subr.mxu0 0.0
    %2177 = vmatpush1.msra.mxu0 0.0
    %2178 = vmatprep.subr.mxu0 0.0
    %2179 = vmatpush1.msra.mxu0 0.0
    %2180 = vmatprep.subr.mxu0 0.0
    %2181 = vmatpush1.msra.mxu0 0.0
    %2182 = vmatprep.subr.mxu0 0.0
    %2183 = vmatpush1.msra.mxu0 0.0
    %2184 = vmatprep.subr.mxu0 0.0
    %2185 = vmatpush1.msra.mxu0 0.0
    %2186 = vmatprep.subr.mxu0 0.0
    %2187 = vmatpush1.msra.mxu0 0.0
    %2188 = vmatprep.subr.mxu0 0.0
    %2189 = vmatpush1.msra.mxu0 0.0
    %2190 = vmatprep.subr.mxu0 0.0
    %2191 = vmatpush1.msra.mxu0 0.0
    %2192 = vmatprep.subr.mxu0 0.0
    %2193 = vmatpush1.msra.mxu0 0.0
    %2194 = vmatprep.subr.mxu0 0.0
    %2195 = vmatpush1.msra.mxu0 0.0
    %2196 = vmatprep.subr.mxu0 0.0
    %2197 = vmatpush1.msra.mxu0 0.0
    %2198 = vmatprep.subr.mxu0 0.0
    %2199 = vmatpush1.msra.mxu0 0.0
    %2200 = vmatprep.subr.mxu0 0.0
    %2201 = vmatpush1.msra.mxu0 0.0
    %2202 = vmatprep.subr.mxu0 0.0
    %2203 = vmatpush1.msra.mxu0 0.0
    %2204 = vmatprep.mubr.f32.mxu0 0.0
    %2205 = vmatmul.mubr.f32.gmra.mrb[0].mxu0 %v2138
    %v2206 = vpop.f32.mrb[0].mxu0
    %v2207 = vadd.f32 0.0, %v2206
    %v2208 = vpop.f32.mrb[0].mxu0
    %v2209 = vadd.f32 0.0, %v2208
    %2210 = vdwg.mxu0
    %v2211 = vadd.f32 %v2133, %v2207
    %v2212 = vadd.f32 %v2134, %v2209
    %v2214 = vsel %vm362, %v2137, %v2110
    %2215 = vmatprep.subr.mxu0 %v273
    %2216 = vmatpush1.msra.mxu0 %v272
    %2217 = vmatprep.subr.mxu0 %v275
    %2218 = vmatpush1.msra.mxu0 %v274
    %2219 = vmatprep.subr.mxu0 %v277
    %2220 = vmatpush1.msra.mxu0 %v276
    %2221 = vmatprep.subr.mxu0 %v279
    %2222 = vmatpush1.msra.mxu0 %v278
    %2223 = vmatprep.subr.mxu0 %v281
    %2224 = vmatpush1.msra.mxu0 %v280
    %2225 = vmatprep.subr.mxu0 %v283
    %2226 = vmatpush1.msra.mxu0 %v282
    %2227 = vmatprep.subr.mxu0 %v285
    %2228 = vmatpush1.msra.mxu0 %v284
    %2229 = vmatprep.subr.mxu0 %v287
    %2230 = vmatpush1.msra.mxu0 %v286
    %2231 = vmatprep.subr.mxu0 %v289
    %2232 = vmatpush1.msra.mxu0 %v288
    %2233 = vmatprep.subr.mxu0 %v291
    %2234 = vmatpush1.msra.mxu0 %v290
    %2235 = vmatprep.subr.mxu0 %v293
    %2236 = vmatpush1.msra.mxu0 %v292
    %2237 = vmatprep.subr.mxu0 %v295
    %2238 = vmatpush1.msra.mxu0 %v294
    %2239 = vmatprep.subr.mxu0 %v297
    %2240 = vmatpush1.msra.mxu0 %v296
    %2241 = vmatprep.subr.mxu0 %v299
    %2242 = vmatpush1.msra.mxu0 %v298
    %2243 = vmatprep.subr.mxu0 %v301
    %2244 = vmatpush1.msra.mxu0 %v300
    %2245 = vmatprep.subr.mxu0 %v303
    %2246 = vmatpush1.msra.mxu0 %v302
    %2247 = vmatprep.subr.mxu0 0.0
    %2248 = vmatpush1.msra.mxu0 0.0
    %2249 = vmatprep.subr.mxu0 0.0
    %2250 = vmatpush1.msra.mxu0 0.0
    %2251 = vmatprep.subr.mxu0 0.0
    %2252 = vmatpush1.msra.mxu0 0.0
    %2253 = vmatprep.subr.mxu0 0.0
    %2254 = vmatpush1.msra.mxu0 0.0
    %2255 = vmatprep.subr.mxu0 0.0
    %2256 = vmatpush1.msra.mxu0 0.0
    %2257 = vmatprep.subr.mxu0 0.0
    %2258 = vmatpush1.msra.mxu0 0.0
    %2259 = vmatprep.subr.mxu0 0.0
    %2260 = vmatpush1.msra.mxu0 0.0
    %2261 = vmatprep.subr.mxu0 0.0
    %2262 = vmatpush1.msra.mxu0 0.0
    %2263 = vmatprep.subr.mxu0 0.0
    %2264 = vmatpush1.msra.mxu0 0.0
    %2265 = vmatprep.subr.mxu0 0.0
    %2266 = vmatpush1.msra.mxu0 0.0
    %2267 = vmatprep.subr.mxu0 0.0
    %2268 = vmatpush1.msra.mxu0 0.0
    %2269 = vmatprep.subr.mxu0 0.0
    %2270 = vmatpush1.msra.mxu0 0.0
    %2271 = vmatprep.subr.mxu0 0.0
    %2272 = vmatpush1.msra.mxu0 0.0
    %2273 = vmatprep.subr.mxu0 0.0
    %2274 = vmatpush1.msra.mxu0 0.0
    %2275 = vmatprep.subr.mxu0 0.0
    %2276 = vmatpush1.msra.mxu0 0.0
    %2277 = vmatprep.subr.mxu0 0.0
    %2278 = vmatpush1.msra.mxu0 0.0
    %2279 = vmatprep.mubr.f32.mxu0 0.0
    %2280 = vmatmul.mubr.f32.gmra.mrb[0].mxu0 %v2214
    %v2281 = vpop.f32.mrb[0].mxu0
    %v2282 = vadd.f32 %v341, %v2281
    %v2283 = vpop.f32.mrb[0].mxu0
    %v2284 = vadd.f32 %v345, %v2283
    %2285 = vdwg.mxu0
    %2287 = vrot.lane.b32.xlu0 %v2110, 64
    %v2288 = vpop.permute.xlu0 %2287
    %v2290 = vsel %vm362, %v2288, %v2132
    %2291 = vmatprep.subr.mxu0 %v305
    %2292 = vmatpush1.msra.mxu0 %v304
    %2293 = vmatprep.subr.mxu0 %v307
    %2294 = vmatpush1.msra.mxu0 %v306
    %2295 = vmatprep.subr.mxu0 %v309
    %2296 = vmatpush1.msra.mxu0 %v308
    %2297 = vmatprep.subr.mxu0 %v311
    %2298 = vmatpush1.msra.mxu0 %v310
    %2299 = vmatprep.subr.mxu0 %v313
    %2300 = vmatpush1.msra.mxu0 %v312
    %2301 = vmatprep.subr.mxu0 %v315
    %2302 = vmatpush1.msra.mxu0 %v314
    %2303 = vmatprep.subr.mxu0 %v317
    %2304 = vmatpush1.msra.mxu0 %v316
    %2305 = vmatprep.subr.mxu0 %v319
    %2306 = vmatpush1.msra.mxu0 %v318
    %2307 = vmatprep.subr.mxu0 %v321
    %2308 = vmatpush1.msra.mxu0 %v320
    %2309 = vmatprep.subr.mxu0 %v323
    %2310 = vmatpush1.msra.mxu0 %v322
    %2311 = vmatprep.subr.mxu0 %v325
    %2312 = vmatpush1.msra.mxu0 %v324
    %2313 = vmatprep.subr.mxu0 %v327
    %2314 = vmatpush1.msra.mxu0 %v326
    %2315 = vmatprep.subr.mxu0 %v329
    %2316 = vmatpush1.msra.mxu0 %v328
    %2317 = vmatprep.subr.mxu0 %v331
    %2318 = vmatpush1.msra.mxu0 %v330
    %2319 = vmatprep.subr.mxu0 %v333
    %2320 = vmatpush1.msra.mxu0 %v332
    %2321 = vmatprep.subr.mxu0 %v335
    %2322 = vmatpush1.msra.mxu0 %v334
    %2323 = vmatprep.subr.mxu0 0.0
    %2324 = vmatpush1.msra.mxu0 0.0
    %2325 = vmatprep.subr.mxu0 0.0
    %2326 = vmatpush1.msra.mxu0 0.0
    %2327 = vmatprep.subr.mxu0 0.0
    %2328 = vmatpush1.msra.mxu0 0.0
    %2329 = vmatprep.subr.mxu0 0.0
    %2330 = vmatpush1.msra.mxu0 0.0
    %2331 = vmatprep.subr.mxu0 0.0
    %2332 = vmatpush1.msra.mxu0 0.0
    %2333 = vmatprep.subr.mxu0 0.0
    %2334 = vmatpush1.msra.mxu0 0.0
    %2335 = vmatprep.subr.mxu0 0.0
    %2336 = vmatpush1.msra.mxu0 0.0
    %2337 = vmatprep.subr.mxu0 0.0
    %2338 = vmatpush1.msra.mxu0 0.0
    %2339 = vmatprep.subr.mxu0 0.0
    %2340 = vmatpush1.msra.mxu0 0.0
    %2341 = vmatprep.subr.mxu0 0.0
    %2342 = vmatpush1.msra.mxu0 0.0
    %2343 = vmatprep.subr.mxu0 0.0
    %2344 = vmatpush1.msra.mxu0 0.0
    %2345 = vmatprep.subr.mxu0 0.0
    %2346 = vmatpush1.msra.mxu0 0.0
    %2347 = vmatprep.subr.mxu0 0.0
    %2348 = vmatpush1.msra.mxu0 0.0
    %2349 = vmatprep.subr.mxu0 0.0
    %2350 = vmatpush1.msra.mxu0 0.0
    %2351 = vmatprep.subr.mxu0 0.0
    %2352 = vmatpush1.msra.mxu0 0.0
    %2353 = vmatprep.subr.mxu0 0.0
    %2354 = vmatpush1.msra.mxu0 0.0
    %2355 = vmatprep.mubr.f32.mxu0 0.0
    %2356 = vmatmul.mubr.f32.gmra.mrb[0].mxu0 %v2290
    %v2357 = vpop.f32.mrb[0].mxu0
    %v2358 = vadd.f32 %v353, %v2357
    %v2359 = vpop.f32.mrb[0].mxu0
    %v2360 = vadd.f32 %v357, %v2359
    %2361 = vdwg.mxu0
    %v2362 = vxor.u32 %v2211, 2147483648
    %v2363 = vxor.u32 %v2212, 2147483648
    %v2364 = vmul.f32 %v2362, 1.442695
    %v2365 = vpow.pop %v2364
    %v2366 = vmul.f32 %v2363, 1.442695
    %v2367 = vpow.pop %v2366
    %v2368 = vadd.f32 %v2365, 1.0
    %v2369 = vadd.f32 %v2367, 1.0
    %v2370 = vrcp.pop %v2368
    %v2371 = vmul.f32 1.0, %v2370
    %v2372 = vrcp.pop %v2369
    %v2373 = vmul.f32 1.0, %v2372
    %v2374 = vtanh.pop %v2212
    %v2375 = vmul.f32 %v2371, %v2086
    %v2376 = vmul.f32 %v2371, %v2374
    %2378 = vrot.lane.b32.xlu0 %v2376, 64
    %v2379 = vpop.permute.xlu0 %2378
    %v2381 = vadd.f32 %v2375, %v2379
    %v2382 = vtanh.pop %v2381
    %v2383 = vmul.f32 %v2373, %v2382
    %v2384 = vxor.u32 %v2282, 2147483648
    %v2385 = vxor.u32 %v2284, 2147483648
    %v2386 = vmul.f32 %v2384, 1.442695
    %v2387 = vpow.pop %v2386
    %v2388 = vmul.f32 %v2385, 1.442695
    %v2389 = vpow.pop %v2388
    %v2390 = vadd.f32 %v2387, 1.0
    %v2391 = vadd.f32 %v2389, 1.0
    %v2392 = vrcp.pop %v2390
    %v2393 = vmul.f32 1.0, %v2392
    %v2394 = vrcp.pop %v2391
    %v2395 = vmul.f32 1.0, %v2394
    %v2396 = vtanh.pop %v2284
    %v2397 = vmul.f32 %v2393, %v2108
    %v2398 = vmul.f32 %v2393, %v2396
    %2400 = vrot.lane.b32.xlu0 %v2398, 64
    %v2401 = vpop.permute.xlu0 %2400
    %v2403 = vadd.f32 %v2397, %v2401
    %v2404 = vtanh.pop %v2403
    %v2405 = vmul.f32 %v2395, %v2404
    %v2406 = vxor.u32 %v2358, 2147483648
    %v2407 = vxor.u32 %v2360, 2147483648
    %v2408 = vmul.f32 %v2406, 1.442695
    %v2409 = vpow.pop %v2408
    %v2410 = vmul.f32 %v2407, 1.442695
    %v2411 = vpow.pop %v2410
    %v2412 = vadd.f32 %v2409, 1.0
    %v2413 = vadd.f32 %v2411, 1.0
    %v2414 = vrcp.pop %v2412
    %v2415 = vmul.f32 1.0, %v2414
    %v2416 = vrcp.pop %v2413
    %v2417 = vmul.f32 1.0, %v2416
    %v2418 = vtanh.pop %v2360
    %v2419 = vmul.f32 %v2415, %v2130
    %v2420 = vmul.f32 %v2415, %v2418
    %2422 = vrot.lane.b32.xlu0 %v2420, 64
    %v2423 = vpop.permute.xlu0 %2422
    %v2425 = vadd.f32 %v2419, %v2423
    %v2426 = vtanh.pop %v2425
    %v2427 = vmul.f32 %v2417, %v2426
    %2429 = vrot.lane.b32.xlu0 %v2383, 64
    %v2430 = vpop.permute.xlu0 %2429
    %v2432 = vsel %vm362, %v2430, %v2405
    %2433 = vmatprep.subr.mxu0 %v273
    %2434 = vmatpush1.msra.mxu0 %v272
    %2435 = vmatprep.subr.mxu0 %v275
    %2436 = vmatpush1.msra.mxu0 %v274
    %2437 = vmatprep.subr.mxu0 %v277
    %2438 = vmatpush1.msra.mxu0 %v276
    %2439 = vmatprep.subr.mxu0 %v279
    %2440 = vmatpush1.msra.mxu0 %v278
    %2441 = vmatprep.subr.mxu0 %v281
    %2442 = vmatpush1.msra.mxu0 %v280
    %2443 = vmatprep.subr.mxu0 %v283
    %2444 = vmatpush1.msra.mxu0 %v282
    %2445 = vmatprep.subr.mxu0 %v285
    %2446 = vmatpush1.msra.mxu0 %v284
    %2447 = vmatprep.subr.mxu0 %v287
    %2448 = vmatpush1.msra.mxu0 %v286
    %2449 = vmatprep.subr.mxu0 %v289
    %2450 = vmatpush1.msra.mxu0 %v288
    %2451 = vmatprep.subr.mxu0 %v291
    %2452 = vmatpush1.msra.mxu0 %v290
    %2453 = vmatprep.subr.mxu0 %v293
    %2454 = vmatpush1.msra.mxu0 %v292
    %2455 = vmatprep.subr.mxu0 %v295
    %2456 = vmatpush1.msra.mxu0 %v294
    %2457 = vmatprep.subr.mxu0 %v297
    %2458 = vmatpush1.msra.mxu0 %v296
    %2459 = vmatprep.subr.mxu0 %v299
    %2460 = vmatpush1.msra.mxu0 %v298
    %2461 = vmatprep.subr.mxu0 %v301
    %2462 = vmatpush1.msra.mxu0 %v300
    %2463 = vmatprep.subr.mxu0 %v303
    %2464 = vmatpush1.msra.mxu0 %v302
    %2465 = vmatprep.subr.mxu0 0.0
    %2466 = vmatpush1.msra.mxu0 0.0
    %2467 = vmatprep.subr.mxu0 0.0
    %2468 = vmatpush1.msra.mxu0 0.0
    %2469 = vmatprep.subr.mxu0 0.0
    %2470 = vmatpush1.msra.mxu0 0.0
    %2471 = vmatprep.subr.mxu0 0.0
    %2472 = vmatpush1.msra.mxu0 0.0
    %2473 = vmatprep.subr.mxu0 0.0
    %2474 = vmatpush1.msra.mxu0 0.0
    %2475 = vmatprep.subr.mxu0 0.0
    %2476 = vmatpush1.msra.mxu0 0.0
    %2477 = vmatprep.subr.mxu0 0.0
    %2478 = vmatpush1.msra.mxu0 0.0
    %2479 = vmatprep.subr.mxu0 0.0
    %2480 = vmatpush1.msra.mxu0 0.0
    %2481 = vmatprep.subr.mxu0 0.0
    %2482 = vmatpush1.msra.mxu0 0.0
    %2483 = vmatprep.subr.mxu0 0.0
    %2484 = vmatpush1.msra.mxu0 0.0
    %2485 = vmatprep.subr.mxu0 0.0
    %2486 = vmatpush1.msra.mxu0 0.0
    %2487 = vmatprep.subr.mxu0 0.0
    %2488 = vmatpush1.msra.mxu0 0.0
    %2489 = vmatprep.subr.mxu0 0.0
    %2490 = vmatpush1.msra.mxu0 0.0
    %2491 = vmatprep.subr.mxu0 0.0
    %2492 = vmatpush1.msra.mxu0 0.0
    %2493 = vmatprep.subr.mxu0 0.0
    %2494 = vmatpush1.msra.mxu0 0.0
    %2495 = vmatprep.subr.mxu0 0.0
    %2496 = vmatpush1.msra.mxu0 0.0
    %2497 = vmatprep.mubr.f32.mxu0 0.0
    %2498 = vmatmul.mubr.f32.gmra.mrb[0].mxu0 %v2432
    %v2499 = vpop.f32.mrb[0].mxu0
    %v2500 = vadd.f32 %v341, %v2499
    %v2501 = vpop.f32.mrb[0].mxu0
    %v2502 = vadd.f32 %v345, %v2501
    %2503 = vdwg.mxu0
    %2505 = vrot.lane.b32.xlu0 %v2405, 64
    %v2506 = vpop.permute.xlu0 %2505
    %v2508 = vsel %vm362, %v2506, %v2427
    %2509 = vmatprep.subr.mxu0 %v305
    %2510 = vmatpush1.msra.mxu0 %v304
    %2511 = vmatprep.subr.mxu0 %v307
    %2512 = vmatpush1.msra.mxu0 %v306
    %2513 = vmatprep.subr.mxu0 %v309
    %2514 = vmatpush1.msra.mxu0 %v308
    %2515 = vmatprep.subr.mxu0 %v311
    %2516 = vmatpush1.msra.mxu0 %v310
    %2517 = vmatprep.subr.mxu0 %v313
    %2518 = vmatpush1.msra.mxu0 %v312
    %2519 = vmatprep.subr.mxu0 %v315
    %2520 = vmatpush1.msra.mxu0 %v314
    %2521 = vmatprep.subr.mxu0 %v317
    %2522 = vmatpush1.msra.mxu0 %v316
    %2523 = vmatprep.subr.mxu0 %v319
    %2524 = vmatpush1.msra.mxu0 %v318
    %2525 = vmatprep.subr.mxu0 %v321
    %2526 = vmatpush1.msra.mxu0 %v320
    %2527 = vmatprep.subr.mxu0 %v323
    %2528 = vmatpush1.msra.mxu0 %v322
    %2529 = vmatprep.subr.mxu0 %v325
    %2530 = vmatpush1.msra.mxu0 %v324
    %2531 = vmatprep.subr.mxu0 %v327
    %2532 = vmatpush1.msra.mxu0 %v326
    %2533 = vmatprep.subr.mxu0 %v329
    %2534 = vmatpush1.msra.mxu0 %v328
    %2535 = vmatprep.subr.mxu0 %v331
    %2536 = vmatpush1.msra.mxu0 %v330
    %2537 = vmatprep.subr.mxu0 %v333
    %2538 = vmatpush1.msra.mxu0 %v332
    %2539 = vmatprep.subr.mxu0 %v335
    %2540 = vmatpush1.msra.mxu0 %v334
    %2541 = vmatprep.subr.mxu0 0.0
    %2542 = vmatpush1.msra.mxu0 0.0
    %2543 = vmatprep.subr.mxu0 0.0
    %2544 = vmatpush1.msra.mxu0 0.0
    %2545 = vmatprep.subr.mxu0 0.0
    %2546 = vmatpush1.msra.mxu0 0.0
    %2547 = vmatprep.subr.mxu0 0.0
    %2548 = vmatpush1.msra.mxu0 0.0
    %2549 = vmatprep.subr.mxu0 0.0
    %2550 = vmatpush1.msra.mxu0 0.0
    %2551 = vmatprep.subr.mxu0 0.0
    %2552 = vmatpush1.msra.mxu0 0.0
    %2553 = vmatprep.subr.mxu0 0.0
    %2554 = vmatpush1.msra.mxu0 0.0
    %2555 = vmatprep.subr.mxu0 0.0
    %2556 = vmatpush1.msra.mxu0 0.0
    %2557 = vmatprep.subr.mxu0 0.0
    %2558 = vmatpush1.msra.mxu0 0.0
    %2559 = vmatprep.subr.mxu0 0.0
    %2560 = vmatpush1.msra.mxu0 0.0
    %2561 = vmatprep.subr.mxu0 0.0
    %2562 = vmatpush1.msra.mxu0 0.0
    %2563 = vmatprep.subr.mxu0 0.0
    %2564 = vmatpush1.msra.mxu0 0.0
    %2565 = vmatprep.subr.mxu0 0.0
    %2566 = vmatpush1.msra.mxu0 0.0
    %2567 = vmatprep.subr.mxu0 0.0
    %2568 = vmatpush1.msra.mxu0 0.0
    %2569 = vmatprep.subr.mxu0 0.0
    %2570 = vmatpush1.msra.mxu0 0.0
    %2571 = vmatprep.subr.mxu0 0.0
    %2572 = vmatpush1.msra.mxu0 0.0
    %2573 = vmatprep.mubr.f32.mxu0 0.0
    %2574 = vmatmul.mubr.f32.gmra.mrb[0].mxu0 %v2508
    %v2575 = vpop.f32.mrb[0].mxu0
    %v2576 = vadd.f32 %v353, %v2575
    %v2577 = vpop.f32.mrb[0].mxu0
    %v2578 = vadd.f32 %v357, %v2577
    %2579 = vdwg.mxu0
    %v2580 = vxor.u32 %v2500, 2147483648
    %v2581 = vxor.u32 %v2502, 2147483648
    %v2582 = vmul.f32 %v2580, 1.442695
    %v2583 = vpow.pop %v2582
    %v2584 = vmul.f32 %v2581, 1.442695
    %v2585 = vpow.pop %v2584
    %v2586 = vadd.f32 %v2583, 1.0
    %v2587 = vadd.f32 %v2585, 1.0
    %v2588 = vrcp.pop %v2586
    %v2589 = vmul.f32 1.0, %v2588
    %v2590 = vrcp.pop %v2587
    %v2591 = vmul.f32 1.0, %v2590
    %v2592 = vtanh.pop %v2502
    %v2593 = vmul.f32 %v2589, %v2403
    %v2594 = vmul.f32 %v2589, %v2592
    %2596 = vrot.lane.b32.xlu0 %v2594, 64
    %v2597 = vpop.permute.xlu0 %2596
    %v2599 = vadd.f32 %v2593, %v2597
    %v2600 = vtanh.pop %v2599
    %v2601 = vmul.f32 %v2591, %v2600
    %v2602 = vxor.u32 %v2576, 2147483648
    %v2603 = vxor.u32 %v2578, 2147483648
    %v2604 = vmul.f32 %v2602, 1.442695
    %v2605 = vpow.pop %v2604
    %v2606 = vmul.f32 %v2603, 1.442695
    %v2607 = vpow.pop %v2606
    %v2608 = vadd.f32 %v2605, 1.0
    %v2609 = vadd.f32 %v2607, 1.0
    %v2610 = vrcp.pop %v2608
    %v2611 = vmul.f32 1.0, %v2610
    %v2612 = vrcp.pop %v2609
    %v2613 = vmul.f32 1.0, %v2612
    %v2614 = vtanh.pop %v2578
    %v2615 = vmul.f32 %v2611, %v2425
    %v2616 = vmul.f32 %v2611, %v2614
    %2618 = vrot.lane.b32.xlu0 %v2616, 64
    %v2619 = vpop.permute.xlu0 %2618
    %v2621 = vadd.f32 %v2615, %v2619
    %v2622 = vtanh.pop %v2621
    %v2623 = vmul.f32 %v2613, %v2622
    %2625 = vrot.lane.b32.xlu0 %v2601, 64
    %v2626 = vpop.permute.xlu0 %2625
    %v2628 = vsel %vm362, %v2626, %v2623
    %2629 = vmatprep.subr.mxu0 %v305
    %2630 = vmatpush1.msra.mxu0 %v304
    %2631 = vmatprep.subr.mxu0 %v307
    %2632 = vmatpush1.msra.mxu0 %v306
    %2633 = vmatprep.subr.mxu0 %v309
    %2634 = vmatpush1.msra.mxu0 %v308
    %2635 = vmatprep.subr.mxu0 %v311
    %2636 = vmatpush1.msra.mxu0 %v310
    %2637 = vmatprep.subr.mxu0 %v313
    %2638 = vmatpush1.msra.mxu0 %v312
    %2639 = vmatprep.subr.mxu0 %v315
    %2640 = vmatpush1.msra.mxu0 %v314
    %2641 = vmatprep.subr.mxu0 %v317
    %2642 = vmatpush1.msra.mxu0 %v316
    %2643 = vmatprep.subr.mxu0 %v319
    %2644 = vmatpush1.msra.mxu0 %v318
    %2645 = vmatprep.subr.mxu0 %v321
    %2646 = vmatpush1.msra.mxu0 %v320
    %2647 = vmatprep.subr.mxu0 %v323
    %2648 = vmatpush1.msra.mxu0 %v322
    %2649 = vmatprep.subr.mxu0 %v325
    %2650 = vmatpush1.msra.mxu0 %v324
    %2651 = vmatprep.subr.mxu0 %v327
    %2652 = vmatpush1.msra.mxu0 %v326
    %2653 = vmatprep.subr.mxu0 %v329
    %2654 = vmatpush1.msra.mxu0 %v328
    %2655 = vmatprep.subr.mxu0 %v331
    %2656 = vmatpush1.msra.mxu0 %v330
    %2657 = vmatprep.subr.mxu0 %v333
    %2658 = vmatpush1.msra.mxu0 %v332
    %2659 = vmatprep.subr.mxu0 %v335
    %2660 = vmatpush1.msra.mxu0 %v334
    %2661 = vmatprep.subr.mxu0 0.0
    %2662 = vmatpush1.msra.mxu0 0.0
    %2663 = vmatprep.subr.mxu0 0.0
    %2664 = vmatpush1.msra.mxu0 0.0
    %2665 = vmatprep.subr.mxu0 0.0
    %2666 = vmatpush1.msra.mxu0 0.0
    %2667 = vmatprep.subr.mxu0 0.0
    %2668 = vmatpush1.msra.mxu0 0.0
    %2669 = vmatprep.subr.mxu0 0.0
    %2670 = vmatpush1.msra.mxu0 0.0
    %2671 = vmatprep.subr.mxu0 0.0
    %2672 = vmatpush1.msra.mxu0 0.0
    %2673 = vmatprep.subr.mxu0 0.0
    %2674 = vmatpush1.msra.mxu0 0.0
    %2675 = vmatprep.subr.mxu0 0.0
    %2676 = vmatpush1.msra.mxu0 0.0
    %2677 = vmatprep.subr.mxu0 0.0
    %2678 = vmatpush1.msra.mxu0 0.0
    %2679 = vmatprep.subr.mxu0 0.0
    %2680 = vmatpush1.msra.mxu0 0.0
    %2681 = vmatprep.subr.mxu0 0.0
    %2682 = vmatpush1.msra.mxu0 0.0
    %2683 = vmatprep.subr.mxu0 0.0
    %2684 = vmatpush1.msra.mxu0 0.0
    %2685 = vmatprep.subr.mxu0 0.0
    %2686 = vmatpush1.msra.mxu0 0.0
    %2687 = vmatprep.subr.mxu0 0.0
    %2688 = vmatpush1.msra.mxu0 0.0
    %2689 = vmatprep.subr.mxu0 0.0
    %2690 = vmatpush1.msra.mxu0 0.0
    %2691 = vmatprep.subr.mxu0 0.0
    %2692 = vmatpush1.msra.mxu0 0.0
    %2693 = vmatprep.mubr.f32.mxu0 0.0
    %2694 = vmatmul.mubr.f32.gmra.mrb[0].mxu0 %v2628
    %v2695 = vpop.f32.mrb[0].mxu0
    %v2696 = vadd.f32 %v353, %v2695
    %v2697 = vpop.f32.mrb[0].mxu0
    %v2698 = vadd.f32 %v357, %v2697
    %2699 = vdwg.mxu0
    %v2700 = vxor.u32 %v2696, 2147483648
    %v2701 = vxor.u32 %v2698, 2147483648
    %v2702 = vmul.f32 %v2700, 1.442695
    %v2703 = vpow.pop %v2702
    %v2704 = vmul.f32 %v2701, 1.442695
    %v2705 = vpow.pop %v2704
    %v2706 = vadd.f32 %v2703, 1.0
    %v2707 = vadd.f32 %v2705, 1.0
    %v2708 = vrcp.pop %v2706
    %v2709 = vmul.f32 1.0, %v2708
    %v2710 = vrcp.pop %v2707
    %v2711 = vmul.f32 1.0, %v2710
    %v2712 = vtanh.pop %v2698
    %v2713 = vmul.f32 %v2709, %v2621
    %v2714 = vmul.f32 %v2709, %v2712
    %2716 = vrot.lane.b32.xlu0 %v2714, 64
    %v2717 = vpop.permute.xlu0 %2716
    %v2719 = vadd.f32 %v2713, %v2717
    %v2720 = vtanh.pop %v2719
    %v2721 = vmul.f32 %v2711, %v2720
    %v2722 = vld [vmem:[%s8] sm:$0xff]
    %v2723 = vld [vmem:[%s8 + $0x8] sm:$0xff]
    %v2724 = vld [vmem:[%s8 + $0x10] sm:$0xff]
    %v2725 = vld [vmem:[%s8 + $0x18] sm:$0xff]
    %v2726 = vld [vmem:[%s8 + $0x20] sm:$0xff]
    %v2727 = vld [vmem:[%s8 + $0x28] sm:$0xff]
    %v2728 = vld [vmem:[%s8 + $0x30] sm:$0xff]
    %v2729 = vld [vmem:[%s8 + $0x38] sm:$0xff]
    %v2730 = vld [vmem:[#allocation3] sm:$0x1]
    %v2732 = vlaneseq
    %v2733 = vshrl.u32 %v2732, 7
    %v2734 = vsub.s32 0, %v2733
    %v2735 = vrot.slane %v2730, %v2734
    %2738 = vrot.lane.b32.xlu0 %v2721, 64
    %v2739 = vpop.permute.xlu0 %2738
    %v2740 = vsel %vm362, %v2739, 0
    %2742 = vmatprep.subr.mxu0 0.0
    %2743 = vmatpush1.msra.mxu0 %v2722
    %2744 = vmatprep.subr.mxu0 0.0
    %2745 = vmatpush1.msra.mxu0 %v2723
    %2746 = vmatprep.subr.mxu0 0.0
    %2747 = vmatpush1.msra.mxu0 %v2724
    %2748 = vmatprep.subr.mxu0 0.0
    %2749 = vmatpush1.msra.mxu0 %v2725
    %2750 = vmatprep.subr.mxu0 0.0
    %2751 = vmatpush1.msra.mxu0 %v2726
    %2752 = vmatprep.subr.mxu0 0.0
    %2753 = vmatpush1.msra.mxu0 %v2727
    %2754 = vmatprep.subr.mxu0 0.0
    %2755 = vmatpush1.msra.mxu0 %v2728
    %2756 = vmatprep.subr.mxu0 0.0
    %2757 = vmatpush1.msra.mxu0 %v2729
    %2758 = vmatprep.subr.mxu0 0.0
    %2759 = vmatpush1.msra.mxu0 0.0
    %2760 = vmatprep.subr.mxu0 0.0
    %2761 = vmatpush1.msra.mxu0 0.0
    %2762 = vmatprep.subr.mxu0 0.0
    %2763 = vmatpush1.msra.mxu0 0.0
    %2764 = vmatprep.subr.mxu0 0.0
    %2765 = vmatpush1.msra.mxu0 0.0
    %2766 = vmatprep.subr.mxu0 0.0
    %2767 = vmatpush1.msra.mxu0 0.0
    %2768 = vmatprep.subr.mxu0 0.0
    %2769 = vmatpush1.msra.mxu0 0.0
    %2770 = vmatprep.subr.mxu0 0.0
    %2771 = vmatpush1.msra.mxu0 0.0
    %2772 = vmatprep.subr.mxu0 0.0
    %2773 = vmatpush1.msra.mxu0 0.0
    %2774 = vmatprep.subr.mxu0 0.0
    %2775 = vmatpush1.msra.mxu0 0.0
    %2776 = vmatprep.subr.mxu0 0.0
    %2777 = vmatpush1.msra.mxu0 0.0
    %2778 = vmatprep.subr.mxu0 0.0
    %2779 = vmatpush1.msra.mxu0 0.0
    %2780 = vmatprep.subr.mxu0 0.0
    %2781 = vmatpush1.msra.mxu0 0.0
    %2782 = vmatprep.subr.mxu0 0.0
    %2783 = vmatpush1.msra.mxu0 0.0
    %2784 = vmatprep.subr.mxu0 0.0
    %2785 = vmatpush1.msra.mxu0 0.0
    %2786 = vmatprep.subr.mxu0 0.0
    %2787 = vmatpush1.msra.mxu0 0.0
    %2788 = vmatprep.subr.mxu0 0.0
    %2789 = vmatpush1.msra.mxu0 0.0
    %2790 = vmatprep.subr.mxu0 0.0
    %2791 = vmatpush1.msra.mxu0 0.0
    %2792 = vmatprep.subr.mxu0 0.0
    %2793 = vmatpush1.msra.mxu0 0.0
    %2794 = vmatprep.subr.mxu0 0.0
    %2795 = vmatpush1.msra.mxu0 0.0
    %2796 = vmatprep.subr.mxu0 0.0
    %2797 = vmatpush1.msra.mxu0 0.0
    %2798 = vmatprep.subr.mxu0 0.0
    %2799 = vmatpush1.msra.mxu0 0.0
    %2800 = vmatprep.subr.mxu0 0.0
    %2801 = vmatpush1.msra.mxu0 0.0
    %2802 = vmatprep.subr.mxu0 0.0
    %2803 = vmatpush1.msra.mxu0 0.0
    %2804 = vmatprep.subr.mxu0 0.0
    %2805 = vmatpush1.msra.mxu0 0.0
    %2806 = vmatprep.mubr.f32.mxu0 0.0
    %2807 = vmatmul.mubr.f32.gmra.mrb[0].mxu0 %v2740
    %v2808 = vpop.f32.mrb[0].mxu0
    %v2809 = vadd.f32 %v2735, %v2808
    %v2810 = vpop.f32.mrb[0].mxu0
    %2811 = vdwg.mxu0
    %vm2812 = vcmask 7168
    %2813 = vst.msk [vmem:[%s10] sm:$0xff] %vm2812, %v2809
    // Predicated region
    $region54: #{tpu_custom_call.1} parent=1 // pred_check
      _
    $region55: #{tpu_custom_call.1} parent=1 // pred_check_branch
      %2815 = sbr.rel (0) target = $region57
    $region56: #{tpu_custom_call.1} parent=1 // pred_region
      _
    $region57: #{tpu_custom_call.1} parent=1 // pred_fallthru
      _
    // Predicated region
    $region58: #{tpu_custom_call.1} parent=1 // pred_check
      _
    $region59: #{tpu_custom_call.1} parent=1 // pred_check_branch
      %2817 = sbr.rel (0) target = $region61
    $region60: #{tpu_custom_call.1} parent=1 // pred_region
      _
    $region61: #{tpu_custom_call.1} parent=1 // pred_fallthru
      _
    %2818 = vsyncpa [#allocation5], 1
    %2819 = vsyncpa [#allocation7], 1

</llo_original>
